<compile_context>
chip_gen: v7x
topology: tpu7x:2x2x1
jax: 0.10.0
libtpu: 0.0.40
codegen_flags: <defaults>
</compile_context>

<pallas_src>
import functools

import jax
import jax.numpy as jnp
from jax.experimental import pallas as pl
from jax.experimental.pallas import tpu as pltpu


def _round_up(x, m):
    return (x + m - 1) // m * m


def _choose_k_tiling(K, tk_max):
    """Pick (Kp, tk) such that Kp is the zero-padded contraction length and tk
    divides Kp exactly. Kp is rounded to 128 (8 for tiny K), not to tk, so we
    never waste up to tk-1 padded columns of FLOPs and DMA."""
    if K < 128:
        Kp = _round_up(K, 8)  # single full-dim K block
        return Kp, Kp
    Kp = _round_up(K, 128)
    for cand in (512, 256, 128):
        if cand <= tk_max and Kp % cand == 0:
            return Kp, cand
    return Kp, 128


def _linear_kernel(x_ref, w_ref, b_ref, o_ref):
    # x_ref: (tm, tk) bf16, w_ref: (tk, tn) bf16, b_ref: (1, tn) f32,
    # o_ref: (tm, tn) f32 — used directly as the accumulator. Its index_map
    # ignores k, so the block stays resident in VMEM across the reduction axis
    # and is written back to HBM only once.
    @pl.when(pl.program_id(2) == 0)
    def _init():
        # Bias-as-init: removes the zero-fill plus a finalize add over the tile.
        o_ref[...] = jnp.broadcast_to(b_ref[...], o_ref.shape)

    o_ref[...] += jnp.dot(
        x_ref[...], w_ref[...], preferred_element_type=jnp.float32
    )


@functools.partial(jax.jit, static_argnames=("tm", "tn", "tk"))
def _linear_2d(x2d, w_p, b2, *, tm, tn, tk):
    """x2d: (M, K), w_p: (Kp, N) already K-padded + bf16, b2: (1, N) f32."""
    M, K = x2d.shape
    Kp, N = w_p.shape

    # Zero-pad x along K only (garbage along the contraction axis would corrupt
    # real outputs). M and N are NOT padded: the grid uses pl.cdiv and Pallas
    # masks the ragged edge blocks, so no extra HBM<->HBM pad/slice passes.
    if Kp != K:
        x2d = jnp.pad(x2d, ((0, 0), (0, Kp - K)))
    x_bf = x2d.astype(w_p.dtype)  # bf16 MXU feed; accumulation stays f32

    # (8, 128)-granular tiles, clamped so they are not absurdly larger than
    # the problem.
    tm = min(tm, _round_up(M, 8))
    tn = min(tn, _round_up(N, 128))

    gm = pl.cdiv(M, tm)
    gn = pl.cdiv(N, tn)
    # v7x has 2 TensorCores: make sure at least one "parallel" grid axis has
    # >= 2 blocks instead of running a (1, 1, k) grid on one core.
    if gm == 1 and gn == 1:
        if N > 128:
            tn = _round_up(-(-N // 2), 128)
            gn = pl.cdiv(N, tn)
        elif M > 8:
            tm = _round_up(-(-M // 2), 8)
            gm = pl.cdiv(M, tm)

    grid = (gm, gn, Kp // tk)

    cost = pl.CostEstimate(
        flops=2 * M * N * Kp,
        transcendentals=0,
        bytes_accessed=(M * Kp + Kp * N) * 2 + (N + M * N) * 4,
    )

    # VMEM per step (bf16 operand blocks + f32 output block, double buffered)
    # is a few MiB for 512-class tiles — well inside the default scoped VMEM
    # on v5e (16 MiB), v6e (32 MiB) and v7x (32 MiB of 64 MiB physical), so
    # vmem_limit_bytes is left at its default.
    # NOTE: if profiling shows the weight DMA still exposed, add
    # pipeline_mode=pl.Buffered(3) on the weight BlockSpec only and re-check
    # the VMEM budget (especially on v7x).
    return pl.pallas_call(
        _linear_kernel,
        out_shape=jax.ShapeDtypeStruct((M, N), jnp.float32),
        grid_spec=pltpu.PrefetchScalarGridSpec(
            num_scalar_prefetch=0,
            grid=grid,
            in_specs=[
                pl.BlockSpec((tm, tk), lambda i, j, k: (i, k)),
                pl.BlockSpec((tk, tn), lambda i, j, k: (k, j)),
                pl.BlockSpec((1, tn), lambda i, j, k: (0, j)),
            ],
            out_specs=pl.BlockSpec((tm, tn), lambda i, j, k: (i, j)),
        ),
        compiler_params=pltpu.CompilerParams(
            dimension_semantics=("parallel", "parallel", "arbitrary"),
        ),
        cost_estimate=cost,
    )(x_bf, w_p, b2)


def embedding_forward(x, weight, bias, *, tm=512, tn=512, tk=512,
                      force_pallas=False, mxu_dtype=jnp.bfloat16):
    """Forward of Embedding (nn.Linear): x: (..., input_size),
    weight: (input_size, hidden_size), bias: (hidden_size,)."""
    orig_shape = x.shape
    K = orig_shape[-1]
    N = weight.shape[1]
    x2d = x.reshape(-1, K)
    M = x2d.shape[0]

    # Small-shape bypass: for tiny problems (the module's actual 16x4 @ 4x32)
    # a (1,1,1)-grid Pallas call is pure fixed overhead — a plain XLA dot with
    # fused bias is strictly faster on every TPU generation.
    if not force_pallas and M * N * K < (1 << 20):
        out2d = x2d @ weight + bias
        return out2d.reshape(*orig_shape[:-1], N)

    Kp, tk = _choose_k_tiling(K, tk)
    # Weight/bias prep is parameter-static: in a real model this is done once
    # at parameter-load time, not per forward call.
    w_p = weight if Kp == K else jnp.pad(weight, ((0, Kp - K), (0, 0)))
    w_p = w_p.astype(mxu_dtype)
    b2 = bias.reshape(1, N).astype(jnp.float32)

    out2d = _linear_2d(x2d, w_p, b2, tm=tm, tn=tn, tk=tk)
    return out2d.reshape(*orig_shape[:-1], N)


if __name__ == "__main__":
    key = jax.random.PRNGKey(0)
    k1, k2, k3, k4 = jax.random.split(key, 4)

    # --- Case 1: the module's actual small shapes (dispatcher takes the XLA bypass)
    input_size, hidden_size = 4, 32
    batch, seq = 2, 8
    bound = 1.0 / (input_size ** 0.5)
    weight = jax.random.uniform(k2, (input_size, hidden_size), jnp.float32, -bound, bound)
    bias = jax.random.uniform(k3, (hidden_size,), jnp.float32, -bound, bound)
    x = jax.random.normal(k1, (batch, seq, input_size), jnp.float32)

    out_small = embedding_forward(x, weight, bias)
    jax.block_until_ready(out_small)
    ref_small = x @ weight + bias
    assert out_small.shape == (batch, seq, hidden_size)
    assert jnp.allclose(out_small, ref_small, atol=1e-5, rtol=1e-5), "small-shape mismatch"

    # --- Case 2: force the Pallas path on a modest shape that exercises ragged
    #     M/N edge blocks, K zero-padding (300 -> 384) and a multi-step K grid.
    in2, hid2 = 300, 260
    batch2, seq2 = 2, 150  # M = 300
    ka, kb, kc = jax.random.split(k4, 3)
    bound2 = 1.0 / (in2 ** 0.5)
    w2 = jax.random.uniform(kb, (in2, hid2), jnp.float32, -bound2, bound2)
    b2v = jax.random.uniform(kc, (hid2,), jnp.float32, -bound2, bound2)
    x2 = jax.random.normal(ka, (batch2, seq2, in2), jnp.float32)

    out2 = embedding_forward(x2, w2, b2v, force_pallas=True)
    jax.block_until_ready(out2)
    assert out2.shape == (batch2, seq2, hid2)

    # Reference with matching bf16 operand rounding, f32 accumulation.
    xb = x2.astype(jnp.bfloat16).astype(jnp.float32)
    wb = w2.astype(jnp.bfloat16).astype(jnp.float32)
    ref2_bf = jnp.dot(xb.reshape(-1, in2), wb,
                      precision=jax.lax.Precision.HIGHEST).reshape(batch2, seq2, hid2) + b2v
    assert jnp.allclose(out2, ref2_bf, atol=1e-3, rtol=1e-3), "pallas path mismatch (bf16 ref)"

    # Loose sanity check against the full-f32 reference.
    ref2 = x2 @ w2 + b2v
    assert jnp.allclose(out2, ref2, atol=5e-2, rtol=5e-2), "pallas path mismatch (f32 ref)"

    print("KERNEL_OK")
</pallas_src>

<mosaic_0001>
module attributes {stable_mosaic.version = 11 : i64} {
  func.func @_linear_kernel(%arg0: i32, %arg1: i32, %arg2: i32, %arg3: memref<304x128xbf16, #tpu.memory_space<vmem>>, %arg4: memref<128x256xbf16, #tpu.memory_space<vmem>>, %arg5: memref<1x256xf32, #tpu.memory_space<vmem>>, %arg6: memref<304x256xf32, #tpu.memory_space<vmem>>) attributes {dimension_semantics = [#tpu.dimension_semantics<parallel>, #tpu.dimension_semantics<parallel>, #tpu.dimension_semantics<arbitrary>], iteration_bounds = array<i64: 1, 2, 3>, scalar_prefetch = 0 : i64, scratch_operands = 0 : i64, tpu.core_type = #tpu.core_type<tc>, window_params = [{transform_indices = @transform_0, window_bounds = array<i64: 304, 128>}, {transform_indices = @transform_1, window_bounds = array<i64: 128, 256>}, {transform_indices = @transform_2, window_bounds = array<i64: 1, 256>}, {transform_indices = @transform_3, window_bounds = array<i64: 304, 256>}]} {
    %c0_i32 = arith.constant 0 : i32
    %0 = arith.cmpi eq, %arg2, %c0_i32 : i32
    %1 = arith.extui %0 : i1 to i32
    %c0_i32_0 = arith.constant 0 : i32
    %2 = arith.cmpi ne, %1, %c0_i32_0 : i32
    scf.if %2 {
      %c0_8 = arith.constant 0 : index
      %c0_9 = arith.constant 0 : index
      %9 = vector.load %arg5[%c0_8, %c0_9] : memref<1x256xf32, #tpu.memory_space<vmem>>, vector<1x256xf32>
      %10 = vector.shape_cast %9 : vector<1x256xf32> to vector<1x256xf32>
      %11 = vector.broadcast %10 : vector<1x256xf32> to vector<304x256xf32>
      %c0_10 = arith.constant 0 : index
      %c0_11 = arith.constant 0 : index
      %12 = vector.load %arg6[%c0_10, %c0_11] : memref<304x256xf32, #tpu.memory_space<vmem>>, vector<304x256xf32>
      tpu.vector_store %arg6[%c0_10, %c0_11], %11 {strides = array<i32>} : memref<304x256xf32, #tpu.memory_space<vmem>>, vector<304x256xf32>,
    } else {
    }
    %c0 = arith.constant 0 : index
    %c0_1 = arith.constant 0 : index
    %3 = vector.load %arg6[%c0, %c0_1] : memref<304x256xf32, #tpu.memory_space<vmem>>, vector<304x256xf32>
    %c0_2 = arith.constant 0 : index
    %c0_3 = arith.constant 0 : index
    %4 = vector.load %arg3[%c0_2, %c0_3] : memref<304x128xbf16, #tpu.memory_space<vmem>>, vector<304x128xbf16>
    %c0_4 = arith.constant 0 : index
    %c0_5 = arith.constant 0 : index
    %5 = vector.load %arg4[%c0_4, %c0_5] : memref<128x256xbf16, #tpu.memory_space<vmem>>, vector<128x256xbf16>
    %cst = arith.constant dense<0.000000e+00> : vector<304x256xf32>
    %6 = tpu.matmul %4, %5, %cst {dimension_numbers = #tpu.dot_dimension_numbers<[1], [0], [0], [1], [0, 0, 1, 1], [], []>} : vector<304x128xbf16>, vector<128x256xbf16>, vector<304x256xf32> -> vector<304x256xf32>
    %7 = arith.addf %3, %6 : vector<304x256xf32>
    %c0_6 = arith.constant 0 : index
    %c0_7 = arith.constant 0 : index
    %8 = vector.load %arg6[%c0_6, %c0_7] : memref<304x256xf32, #tpu.memory_space<vmem>>, vector<304x256xf32>
    tpu.vector_store %arg6[%c0_6, %c0_7], %7 {strides = array<i32>} : memref<304x256xf32, #tpu.memory_space<vmem>>, vector<304x256xf32>,
    return
  }
  func.func @transform_0(%arg0: i32, %arg1: i32, %arg2: i32) -> (i32, i32) {
    %c0_i32 = arith.constant 0 : i32
    return %arg0, %arg2 : i32, i32
  }
  func.func @transform_1(%arg0: i32, %arg1: i32, %arg2: i32) -> (i32, i32) {
    %c0_i32 = arith.constant 0 : i32
    return %arg2, %arg1 : i32, i32
  }
  func.func @transform_2(%arg0: i32, %arg1: i32, %arg2: i32) -> (i32, i32) {
    %c0_i32 = arith.constant 0 : i32
    %c0_i32_0 = arith.constant 0 : i32
    return %c0_i32, %arg1 : i32, i32
  }
  func.func @transform_3(%arg0: i32, %arg1: i32, %arg2: i32) -> (i32, i32) {
    %c0_i32 = arith.constant 0 : i32
    return %arg0, %arg1 : i32, i32
  }
}

</mosaic_0001>

<llo_original>
// kernel: _linear_2d.1
$region0: #{_linear_2d.1}
  #allocation0 [shape = 'u32[]', space=smem, size = 0x4, offset = 0x4, fixed_abs, tag = 'smem constant byte address 0x4 - core index']
  #allocation1 [shape = 'u32[144,128]{1,0:T(1,128)}', space=vmem, size = 0x12000, scoped, tag = 'internal scratch']
  %s0 = inlined_call_operand.vmem [shape: bf16[300,384], index: 0, kind: input, shape index: {}]
  %s1 = inlined_call_operand.vmem [shape: bf16[384,260], index: 1, kind: input, shape index: {}]
  %s2 = inlined_call_operand.vmem [shape: f32[1,260], index: 2, kind: input, shape index: {}]
  %s3 = inlined_call_operand.vmem [shape: f32[300,260], index: 3, kind: output, shape index: {}]
  %s4 = sld [smem:[#allocation0]]
  $region218: #{_linear_2d.1} parent=0
    _
  %s6 = ssub.s32 1, %s4
  %s7 = scalar_select 0, %s6, %s4
  $region1: #{_linear_2d.1} parent=0
    #allocation2 [shape = 'u8[155648]{0}', space=vmem, size = 0x26000, scoped, tag = 'input window, operand 0']
    #allocation3 [shape = 'u8[131072]{0}', space=vmem, size = 0x20000, scoped, tag = 'input window, operand 1']
    #allocation4 [shape = 'u8[622592]{0}', space=vmem, size = 0x98000, scoped, tag = 'output window, operand 0']
    loop: start=0, step=1, limit=8
    $region2: #{_linear_2d.1} parent=1 // loop_pre_header
      _
    $region3: #{_linear_2d.1} parent=1 // loop_header
      %s9 = sphi 0, %s13
      %p10 = scmp.ge.s32.totalorder %s9, 8
      %s16 = sphi 0, %s35
      %s17 = sphi 0, %s31
      %s18 = sphi 0, %s27
      %s19 = sphi 0, %s16
      %s20 = sphi 0, %s17
      %s21 = sphi 0, %s18
      %s22 = sphi 0, %s19
      %s23 = sphi 0, %s20
      %s24 = sphi 0, %s21
      %s40 = sphi 0, %s42
      %s43 = sphi 0, %s40
      %s44 = sphi 0, %s43
      %s60 = sphi 0, %s44
      %s68 = sphi 0, %s70
      %s71 = sphi 0, %s68
      %s72 = sphi 0, %s71
      %s88 = sphi 0, %s72
      %s94 = sphi 0, %s96
      %s97 = sphi 0, %s94
      %s98 = sphi 0, %s97
      %s114 = sphi 0, %s98
      %s122 = sphi 0, %s124
      %s125 = sphi 0, %s122
      %s126 = sphi 0, %s125
      %s142 = sphi 0, %s126
    $region4: #{_linear_2d.1} parent=1 // loop_header_branch
      %12 = sbr.rel (%p10) target = $region8
    $region5: #{_linear_2d.1} parent=1 // loop_body
      %s14 = ssub.s32 %s9, 1
      %s15 = ssub.s32 %s9, 2
      %s25 = sadd.s32 1, %s18
      %p26 = scmp.ge.s32.totalorder %s25, 3
      %s27 = scalar_select %p26, 0, %s25
      %s28 = sadd.s32 1, %s17
      %s29 = scalar_select %p26, %s28, %s17
      %p30 = scmp.ge.s32.totalorder %s29, 2
      %s31 = scalar_select %p30, 0, %s29
      %s32 = sadd.s32 1, %s16
      %s33 = scalar_select %p30, %s32, %s16
      %p34 = scmp.ge.s32.totalorder %s33, 1
      %s35 = scalar_select %p34, 0, %s33
      %s36 = ssub.s32 %s16, %s35
      %s37 = ssub.s32 %s18, %s27
      %s38 = sor.u32 %s36, %s37
      %p39 = scmp.eq.s32.totalorder %s38, 0
      %s41 = sadd.s32 %s40, 1
      %s42 = scalar_select %p39, %s40, %s41
      %p45 = pneg %p39
      %p46 = scmp.eq.s32.totalorder %s9, 5
      %p47 = por %p45, %p46
      %p48 = scmp.ne.s32.totalorder %s40, %s43
      %p49 = scmp.eq.s32.totalorder %s9, 0
      %p50 = por %p48, %p49
      %p51 = scmp.ne.s32.totalorder %s40, %s43
      %p52 = scmp.eq.s32.totalorder %s14, 5
      %p53 = por %p51, %p52
      %p54 = scmp.ne.s32.totalorder %s43, %s44
      %p55 = scmp.eq.s32.totalorder %s14, 0
      %p56 = por %p54, %p55
      %p57 = scmp.ne.s32.totalorder %s43, %s44
      %p58 = scmp.eq.s32.totalorder %s15, 5
      %p59 = por %p57, %p58
      %p61 = scmp.ne.s32.totalorder %s44, %s60
      %p62 = scmp.eq.s32.totalorder %s15, 0
      %p63 = por %p61, %p62
      %s64 = ssub.s32 %s18, %s27
      %s65 = ssub.s32 %s17, %s31
      %s66 = sor.u32 %s64, %s65
      %p67 = scmp.eq.s32.totalorder %s66, 0
      %s69 = sadd.s32 %s68, 1
      %s70 = scalar_select %p67, %s68, %s69
      %p73 = pneg %p67
      %p74 = scmp.eq.s32.totalorder %s9, 5
      %p75 = por %p73, %p74
      %p76 = scmp.ne.s32.totalorder %s68, %s71
      %p77 = scmp.eq.s32.totalorder %s9, 0
      %p78 = por %p76, %p77
      %p79 = scmp.ne.s32.totalorder %s68, %s71
      %p80 = scmp.eq.s32.totalorder %s14, 5
      %p81 = por %p79, %p80
      %p82 = scmp.ne.s32.totalorder %s71, %s72
      %p83 = scmp.eq.s32.totalorder %s14, 0
      %p84 = por %p82, %p83
      %p85 = scmp.ne.s32.totalorder %s71, %s72
      %p86 = scmp.eq.s32.totalorder %s15, 5
      %p87 = por %p85, %p86
      %p89 = scmp.ne.s32.totalorder %s72, %s88
      %p90 = scmp.eq.s32.totalorder %s15, 0
      %p91 = por %p89, %p90
      %s92 = ssub.s32 %s17, %s31
      %p93 = scmp.eq.s32.totalorder %s92, 0
      %s95 = sadd.s32 %s94, 1
      %s96 = scalar_select %p93, %s94, %s95
      %p99 = pneg %p93
      %p100 = scmp.eq.s32.totalorder %s9, 5
      %p101 = por %p99, %p100
      %p102 = scmp.ne.s32.totalorder %s94, %s97
      %p103 = scmp.eq.s32.totalorder %s9, 0
      %p104 = por %p102, %p103
      %p105 = scmp.ne.s32.totalorder %s94, %s97
      %p106 = scmp.eq.s32.totalorder %s14, 5
      %p107 = por %p105, %p106
      %p108 = scmp.ne.s32.totalorder %s97, %s98
      %p109 = scmp.eq.s32.totalorder %s14, 0
      %p110 = por %p108, %p109
      %p111 = scmp.ne.s32.totalorder %s97, %s98
      %p112 = scmp.eq.s32.totalorder %s15, 5
      %p113 = por %p111, %p112
      %p115 = scmp.ne.s32.totalorder %s98, %s114
      %p116 = scmp.eq.s32.totalorder %s15, 0
      %p117 = por %p115, %p116
      %s118 = ssub.s32 %s16, %s35
      %s119 = ssub.s32 %s17, %s31
      %s120 = sor.u32 %s118, %s119
      %p121 = scmp.eq.s32.totalorder %s120, 0
      %s123 = sadd.s32 %s122, 1
      %s124 = scalar_select %p121, %s122, %s123
      %p127 = pneg %p121
      %p128 = scmp.eq.s32.totalorder %s9, 5
      %p129 = por %p127, %p128
      %p130 = scmp.ne.s32.totalorder %s122, %s125
      %p131 = scmp.eq.s32.totalorder %s9, 0
      %p132 = por %p130, %p131
      %p133 = scmp.ne.s32.totalorder %s122, %s125
      %p134 = scmp.eq.s32.totalorder %s14, 5
      %p135 = por %p133, %p134
      %p136 = scmp.ne.s32.totalorder %s125, %s126
      %p137 = scmp.eq.s32.totalorder %s14, 0
      %p138 = por %p136, %p137
      %p139 = scmp.ne.s32.totalorder %s125, %s126
      %p140 = scmp.eq.s32.totalorder %s15, 5
      %p141 = por %p139, %p140
      %p143 = scmp.ne.s32.totalorder %s126, %s142
      %p144 = scmp.eq.s32.totalorder %s15, 0
      %p145 = por %p143, %p144
      %p146 = scmp.le.s32.totalorder 1, %s9
      %p147 = scmp.lt.s32.totalorder %s9, 7
      %p148 = pnand %p146, %p147
      %p149 = pneg %p148
      // Predicated region
      $region9: #{_linear_2d.1} parent=5 // pred_check
        _
      $region10: #{_linear_2d.1} parent=5 // pred_check_branch
        %151 = sbr.rel (%p148) target = $region12
      $region11: #{_linear_2d.1} parent=5 // pred_region
        %s152 = ssub.s32 %s9, 1
      $region12: #{_linear_2d.1} parent=5 // pred_fallthru
        _
      %p153 = scmp.lt.s32.totalorder %s9, 6
      // Predicated region
      $region13: #{_linear_2d.1} parent=5 // pred_check
        %p154 = pneg %p153
      $region14: #{_linear_2d.1} parent=5 // pred_check_branch
        %156 = sbr.rel (%p154) target = $region16
      $region15: #{_linear_2d.1} parent=5 // pred_region
        // Predicated region
        $region17: #{_linear_2d.1} parent=15 // pred_check
          %p157 = pneg %p50
        $region18: #{_linear_2d.1} parent=15 // pred_check_branch
          %159 = sbr.rel (%p157) target = $region20
        $region19: #{_linear_2d.1} parent=15 // pred_region
          %s160 = sand.u32 %s40, 1
          %s161 = sand.u32 %s40, 1
          %s162 = smul.addr %s161, 152
          %s163 = scalar_lea.vmem [#allocation2], %s162
          %s164 = smul.u32 38, %s16
          %s165 = smul.addr %s164, 3
          %s166 = sadd.s32 %s18, %s165
          %s167 = smul.addr %s166, 4
          %s168 = scalar_lea.vmem %s0, %s167
          // Predicated region
          $region21: #{_linear_2d.1} parent=19 // pred_check
            _
          $region22: #{_linear_2d.1} parent=19 // pred_check_branch
            %170 = sbr.rel (0) target = $region24
          $region23: #{_linear_2d.1} parent=19 // pred_region
            // Predicated region
            $region25: #{_linear_2d.1} parent=23 // pred_check
              _
            $region26: #{_linear_2d.1} parent=23 // pred_check_branch
              %172 = sbr.rel target = $region28
            $region27: #{_linear_2d.1} parent=23 // pred_region
              // Predicated region
              $region40: #{_linear_2d.1} parent=27 // pred_check
                _
              $region41: #{_linear_2d.1} parent=27 // pred_check_branch
                %261 = sbr.rel (0) target = $region43
              $region42: #{_linear_2d.1} parent=27 // pred_region
                loop: start=0, step=1, limit=1
                $region44: #{_linear_2d.1} parent=42 // loop_pre_header
                  _
                $region45: #{_linear_2d.1} parent=42 // loop_header
                  %s263 = sphi 0, %s267
                  %p264 = scmp.ge.s32.totalorder %s263, 1
                  %s268 = sphi %s168, %s168
                  %s269 = sphi %s163, %s163
                $region46: #{_linear_2d.1} parent=42 // loop_header_branch
                  %266 = sbr.rel (%p264) target = $region50
                $region47: #{_linear_2d.1} parent=42 // loop_body
                  _
                $region48: #{_linear_2d.1} parent=42 // loop_footer
                  %s267 = sadd.s32 1, %s263
                $region49: #{_linear_2d.1} parent=42 // loop_footer_branch
                  %262 = sbr.rel target = $region45
                $region50: #{_linear_2d.1} parent=42 // loop_exit
                  _
                loop: start=0, step=1, limit=1
                $region51: #{_linear_2d.1} parent=42 // loop_pre_header
                  _
                $region52: #{_linear_2d.1} parent=42 // loop_header
                  %s272 = sphi 0, %s276
                  %p273 = scmp.ge.s32.totalorder %s272, 1
                  %s277 = sphi %s168, %s168
                  %s278 = sphi %s163, %s163
                $region53: #{_linear_2d.1} parent=42 // loop_header_branch
                  %275 = sbr.rel (%p273) target = $region57
                $region54: #{_linear_2d.1} parent=42 // loop_body
                  %v279 = vld [vmem:[%s277] sm:$0xf]
                  %280 = vst [vmem:[%s278] sm:$0xf] %v279
                  %v281 = vld [vmem:[%s277 + $0xc] sm:$0xf]
                  %282 = vst [vmem:[%s278 + $0x4] sm:$0xf] %v281
                  %v283 = vld [vmem:[%s277 + $0x18] sm:$0xf]
                  %284 = vst [vmem:[%s278 + $0x8] sm:$0xf] %v283
                  %v285 = vld [vmem:[%s277 + $0x24] sm:$0xf]
                  %286 = vst [vmem:[%s278 + $0xc] sm:$0xf] %v285
                  %v287 = vld [vmem:[%s277 + $0x30] sm:$0xf]
                  %288 = vst [vmem:[%s278 + $0x10] sm:$0xf] %v287
                  %v289 = vld [vmem:[%s277 + $0x3c] sm:$0xf]
                  %290 = vst [vmem:[%s278 + $0x14] sm:$0xf] %v289
                  %v291 = vld [vmem:[%s277 + $0x48] sm:$0xf]
                  %292 = vst [vmem:[%s278 + $0x18] sm:$0xf] %v291
                  %v293 = vld [vmem:[%s277 + $0x54] sm:$0xf]
                  %294 = vst [vmem:[%s278 + $0x1c] sm:$0xf] %v293
                  %v295 = vld [vmem:[%s277 + $0x60] sm:$0xf]
                  %296 = vst [vmem:[%s278 + $0x20] sm:$0xf] %v295
                  %v297 = vld [vmem:[%s277 + $0x6c] sm:$0xf]
                  %298 = vst [vmem:[%s278 + $0x24] sm:$0xf] %v297
                  %v299 = vld [vmem:[%s277 + $0x78] sm:$0xf]
                  %300 = vst [vmem:[%s278 + $0x28] sm:$0xf] %v299
                  %v301 = vld [vmem:[%s277 + $0x84] sm:$0xf]
                  %302 = vst [vmem:[%s278 + $0x2c] sm:$0xf] %v301
                  %v303 = vld [vmem:[%s277 + $0x90] sm:$0xf]
                  %304 = vst [vmem:[%s278 + $0x30] sm:$0xf] %v303
                  %v305 = vld [vmem:[%s277 + $0x9c] sm:$0xf]
                  %306 = vst [vmem:[%s278 + $0x34] sm:$0xf] %v305
                  %v307 = vld [vmem:[%s277 + $0xa8] sm:$0xf]
                  %308 = vst [vmem:[%s278 + $0x38] sm:$0xf] %v307
                  %v309 = vld [vmem:[%s277 + $0xb4] sm:$0xf]
                  %310 = vst [vmem:[%s278 + $0x3c] sm:$0xf] %v309
                  %v311 = vld [vmem:[%s277 + $0xc0] sm:$0xf]
                  %312 = vst [vmem:[%s278 + $0x40] sm:$0xf] %v311
                  %v313 = vld [vmem:[%s277 + $0xcc] sm:$0xf]
                  %314 = vst [vmem:[%s278 + $0x44] sm:$0xf] %v313
                  %v315 = vld [vmem:[%s277 + $0xd8] sm:$0xf]
                  %316 = vst [vmem:[%s278 + $0x48] sm:$0xf] %v315
                  %v317 = vld [vmem:[%s277 + $0xe4] sm:$0xf]
                  %318 = vst [vmem:[%s278 + $0x4c] sm:$0xf] %v317
                  %v319 = vld [vmem:[%s277 + $0xf0] sm:$0xf]
                  %320 = vst [vmem:[%s278 + $0x50] sm:$0xf] %v319
                  %v321 = vld [vmem:[%s277 + $0xfc] sm:$0xf]
                  %322 = vst [vmem:[%s278 + $0x54] sm:$0xf] %v321
                  %v323 = vld [vmem:[%s277 + $0x108] sm:$0xf]
                  %324 = vst [vmem:[%s278 + $0x58] sm:$0xf] %v323
                  %v325 = vld [vmem:[%s277 + $0x114] sm:$0xf]
                  %326 = vst [vmem:[%s278 + $0x5c] sm:$0xf] %v325
                  %v327 = vld [vmem:[%s277 + $0x120] sm:$0xf]
                  %328 = vst [vmem:[%s278 + $0x60] sm:$0xf] %v327
                  %v329 = vld [vmem:[%s277 + $0x12c] sm:$0xf]
                  %330 = vst [vmem:[%s278 + $0x64] sm:$0xf] %v329
                  %v331 = vld [vmem:[%s277 + $0x138] sm:$0xf]
                  %332 = vst [vmem:[%s278 + $0x68] sm:$0xf] %v331
                  %v333 = vld [vmem:[%s277 + $0x144] sm:$0xf]
                  %334 = vst [vmem:[%s278 + $0x6c] sm:$0xf] %v333
                  %v335 = vld [vmem:[%s277 + $0x150] sm:$0xf]
                  %336 = vst [vmem:[%s278 + $0x70] sm:$0xf] %v335
                  %v337 = vld [vmem:[%s277 + $0x15c] sm:$0xf]
                  %338 = vst [vmem:[%s278 + $0x74] sm:$0xf] %v337
                  %v339 = vld [vmem:[%s277 + $0x168] sm:$0xf]
                  %340 = vst [vmem:[%s278 + $0x78] sm:$0xf] %v339
                  %v341 = vld [vmem:[%s277 + $0x174] sm:$0xf]
                  %342 = vst [vmem:[%s278 + $0x7c] sm:$0xf] %v341
                  %v343 = vld [vmem:[%s277 + $0x180] sm:$0xf]
                  %344 = vst [vmem:[%s278 + $0x80] sm:$0xf] %v343
                  %v345 = vld [vmem:[%s277 + $0x18c] sm:$0xf]
                  %346 = vst [vmem:[%s278 + $0x84] sm:$0xf] %v345
                  %v347 = vld [vmem:[%s277 + $0x198] sm:$0xf]
                  %348 = vst [vmem:[%s278 + $0x88] sm:$0xf] %v347
                  %v349 = vld [vmem:[%s277 + $0x1a4] sm:$0xf]
                  %350 = vst [vmem:[%s278 + $0x8c] sm:$0xf] %v349
                  %v351 = vld [vmem:[%s277 + $0x1b0] sm:$0xf]
                  %352 = vst [vmem:[%s278 + $0x90] sm:$0xf] %v351
                  %v353 = vld [vmem:[%s277 + $0x1bc] sm:$0xf]
                  %354 = vst [vmem:[%s278 + $0x94] sm:$0xf] %v353
                $region55: #{_linear_2d.1} parent=42 // loop_footer
                  %s276 = sadd.s32 1, %s272
                $region56: #{_linear_2d.1} parent=42 // loop_footer_branch
                  %271 = sbr.rel target = $region52
                $region57: #{_linear_2d.1} parent=42 // loop_exit
                  _
              $region43: #{_linear_2d.1} parent=27 // pred_fallthru
                _
            $region28: #{_linear_2d.1} parent=23 // pred_fallthru
              _
            // Predicated region
            $region29: #{_linear_2d.1} parent=23 // pred_check
              _
            $region30: #{_linear_2d.1} parent=23 // pred_check_branch
              %174 = sbr.rel (0) target = $region32
            $region31: #{_linear_2d.1} parent=23 // pred_region
              loop: start=0, step=1, limit=1
              $region33: #{_linear_2d.1} parent=31 // loop_pre_header
                _
              $region34: #{_linear_2d.1} parent=31 // loop_header
                %s177 = sphi 0, %s181
                %p178 = scmp.ge.s32.totalorder %s177, 1
                %s182 = sphi %s168, %s168
                %s183 = sphi %s163, %s163
              $region35: #{_linear_2d.1} parent=31 // loop_header_branch
                %180 = sbr.rel (%p178) target = $region39
              $region36: #{_linear_2d.1} parent=31 // loop_body
                %v184 = vld [vmem:[%s182] sm:$0xf]
                %185 = vst [vmem:[%s183] sm:$0xf] %v184
                %v186 = vld [vmem:[%s182 + $0xc] sm:$0xf]
                %187 = vst [vmem:[%s183 + $0x4] sm:$0xf] %v186
                %v188 = vld [vmem:[%s182 + $0x18] sm:$0xf]
                %189 = vst [vmem:[%s183 + $0x8] sm:$0xf] %v188
                %v190 = vld [vmem:[%s182 + $0x24] sm:$0xf]
                %191 = vst [vmem:[%s183 + $0xc] sm:$0xf] %v190
                %v192 = vld [vmem:[%s182 + $0x30] sm:$0xf]
                %193 = vst [vmem:[%s183 + $0x10] sm:$0xf] %v192
                %v194 = vld [vmem:[%s182 + $0x3c] sm:$0xf]
                %195 = vst [vmem:[%s183 + $0x14] sm:$0xf] %v194
                %v196 = vld [vmem:[%s182 + $0x48] sm:$0xf]
                %197 = vst [vmem:[%s183 + $0x18] sm:$0xf] %v196
                %v198 = vld [vmem:[%s182 + $0x54] sm:$0xf]
                %199 = vst [vmem:[%s183 + $0x1c] sm:$0xf] %v198
                %v200 = vld [vmem:[%s182 + $0x60] sm:$0xf]
                %201 = vst [vmem:[%s183 + $0x20] sm:$0xf] %v200
                %v202 = vld [vmem:[%s182 + $0x6c] sm:$0xf]
                %203 = vst [vmem:[%s183 + $0x24] sm:$0xf] %v202
                %v204 = vld [vmem:[%s182 + $0x78] sm:$0xf]
                %205 = vst [vmem:[%s183 + $0x28] sm:$0xf] %v204
                %v206 = vld [vmem:[%s182 + $0x84] sm:$0xf]
                %207 = vst [vmem:[%s183 + $0x2c] sm:$0xf] %v206
                %v208 = vld [vmem:[%s182 + $0x90] sm:$0xf]
                %209 = vst [vmem:[%s183 + $0x30] sm:$0xf] %v208
                %v210 = vld [vmem:[%s182 + $0x9c] sm:$0xf]
                %211 = vst [vmem:[%s183 + $0x34] sm:$0xf] %v210
                %v212 = vld [vmem:[%s182 + $0xa8] sm:$0xf]
                %213 = vst [vmem:[%s183 + $0x38] sm:$0xf] %v212
                %v214 = vld [vmem:[%s182 + $0xb4] sm:$0xf]
                %215 = vst [vmem:[%s183 + $0x3c] sm:$0xf] %v214
                %v216 = vld [vmem:[%s182 + $0xc0] sm:$0xf]
                %217 = vst [vmem:[%s183 + $0x40] sm:$0xf] %v216
                %v218 = vld [vmem:[%s182 + $0xcc] sm:$0xf]
                %219 = vst [vmem:[%s183 + $0x44] sm:$0xf] %v218
                %v220 = vld [vmem:[%s182 + $0xd8] sm:$0xf]
                %221 = vst [vmem:[%s183 + $0x48] sm:$0xf] %v220
                %v222 = vld [vmem:[%s182 + $0xe4] sm:$0xf]
                %223 = vst [vmem:[%s183 + $0x4c] sm:$0xf] %v222
                %v224 = vld [vmem:[%s182 + $0xf0] sm:$0xf]
                %225 = vst [vmem:[%s183 + $0x50] sm:$0xf] %v224
                %v226 = vld [vmem:[%s182 + $0xfc] sm:$0xf]
                %227 = vst [vmem:[%s183 + $0x54] sm:$0xf] %v226
                %v228 = vld [vmem:[%s182 + $0x108] sm:$0xf]
                %229 = vst [vmem:[%s183 + $0x58] sm:$0xf] %v228
                %v230 = vld [vmem:[%s182 + $0x114] sm:$0xf]
                %231 = vst [vmem:[%s183 + $0x5c] sm:$0xf] %v230
                %v232 = vld [vmem:[%s182 + $0x120] sm:$0xf]
                %233 = vst [vmem:[%s183 + $0x60] sm:$0xf] %v232
                %v234 = vld [vmem:[%s182 + $0x12c] sm:$0xf]
                %235 = vst [vmem:[%s183 + $0x64] sm:$0xf] %v234
                %v236 = vld [vmem:[%s182 + $0x138] sm:$0xf]
                %237 = vst [vmem:[%s183 + $0x68] sm:$0xf] %v236
                %v238 = vld [vmem:[%s182 + $0x144] sm:$0xf]
                %239 = vst [vmem:[%s183 + $0x6c] sm:$0xf] %v238
                %v240 = vld [vmem:[%s182 + $0x150] sm:$0xf]
                %241 = vst [vmem:[%s183 + $0x70] sm:$0xf] %v240
                %v242 = vld [vmem:[%s182 + $0x15c] sm:$0xf]
                %243 = vst [vmem:[%s183 + $0x74] sm:$0xf] %v242
                %v244 = vld [vmem:[%s182 + $0x168] sm:$0xf]
                %245 = vst [vmem:[%s183 + $0x78] sm:$0xf] %v244
                %v246 = vld [vmem:[%s182 + $0x174] sm:$0xf]
                %247 = vst [vmem:[%s183 + $0x7c] sm:$0xf] %v246
                %v248 = vld [vmem:[%s182 + $0x180] sm:$0xf]
                %249 = vst [vmem:[%s183 + $0x80] sm:$0xf] %v248
                %v250 = vld [vmem:[%s182 + $0x18c] sm:$0xf]
                %251 = vst [vmem:[%s183 + $0x84] sm:$0xf] %v250
                %v252 = vld [vmem:[%s182 + $0x198] sm:$0xf]
                %253 = vst [vmem:[%s183 + $0x88] sm:$0xf] %v252
                %v254 = vld [vmem:[%s182 + $0x1a4] sm:$0xf]
                %255 = vst [vmem:[%s183 + $0x8c] sm:$0xf] %v254
                %v256 = vld [vmem:[%s182 + $0x1b0] sm:$0xf]
                %257 = vst [vmem:[%s183 + $0x90] sm:$0xf] %v256
                %v258 = vld [vmem:[%s182 + $0x1bc] sm:$0xf]
                %259 = vst [vmem:[%s183 + $0x94] sm:$0xf] %v258
              $region37: #{_linear_2d.1} parent=31 // loop_footer
                %s181 = sadd.s32 1, %s177
              $region38: #{_linear_2d.1} parent=31 // loop_footer_branch
                %176 = sbr.rel target = $region34
              $region39: #{_linear_2d.1} parent=31 // loop_exit
                _
            $region32: #{_linear_2d.1} parent=23 // pred_fallthru
              _
          $region24: #{_linear_2d.1} parent=19 // pred_fallthru
            _
          %355 = vnop
        $region20: #{_linear_2d.1} parent=15 // pred_fallthru
          _
        // Predicated region
        $region58: #{_linear_2d.1} parent=15 // pred_check
          %p356 = pneg %p78
        $region59: #{_linear_2d.1} parent=15 // pred_check_branch
          %358 = sbr.rel (%p356) target = $region61
        $region60: #{_linear_2d.1} parent=15 // pred_region
          %s359 = sand.u32 %s68, 1
          %s360 = sand.u32 %s68, 1
          %s361 = smul.addr %s360, 128
          %s362 = scalar_lea.vmem [#allocation3], %s361
          %s363 = smul.u32 16, %s18
          %s364 = smul.u32 2, %s17
          %s365 = ssub.s32 3, %s364
          %p366 = scmp.lt.s32.totalorder %s365, 2
          %s367 = scalar_select %p366, %s365, 2
          %s368 = smul.u32 1024, %s367
          %p369 = scmp.ne.s32.totalorder 0, %s368
          %s370 = smul.addr %s363, 3
          %s371 = sadd.s32 %s364, %s370
          %s372 = smul.addr %s371, 4
          %s373 = scalar_lea.vmem %s1, %s372
          %s374 = smul.u32 %s367, 4
          // Predicated region
          $region62: #{_linear_2d.1} parent=60 // pred_check
            %p375 = pneg %p369
          $region63: #{_linear_2d.1} parent=60 // pred_check_branch
            %377 = sbr.rel (%p375) target = $region65
          $region64: #{_linear_2d.1} parent=60 // pred_region
            %p378 = scmp.lt.u32.totalorder %s374, 8
            %p379 = pneg %p378
            // Predicated region
            $region66: #{_linear_2d.1} parent=64 // pred_check
              _
            $region67: #{_linear_2d.1} parent=64 // pred_check_branch
              %381 = sbr.rel (%p378) target = $region69
            $region68: #{_linear_2d.1} parent=64 // pred_region
              %s426 = sand.u32 %s374, 7
              %p427 = scmp.eq.s32.totalorder %s426, 0
              // Predicated region
              $region81: #{_linear_2d.1} parent=68 // pred_check
                %p428 = pneg %p427
              $region82: #{_linear_2d.1} parent=68 // pred_check_branch
                %430 = sbr.rel (%p428) target = $region84
              $region83: #{_linear_2d.1} parent=68 // pred_region
                %s431 = sshrl.u32 %s374, 3
                %s432 = sshrl.u32 %s431, 2
                // While loop
                $region85: #{_linear_2d.1} parent=83 // loop_pre_header
                  _
                $region86: #{_linear_2d.1} parent=83 // loop_header
                  %s436 = sphi 0, %s438
                  %p437 = scmp.ge.s32.totalorder %s436, %s432
                  %s441 = sphi 0, %s574
                  %s442 = sphi %s373, %s577
                  %s443 = sphi %s362, %s578
                $region87: #{_linear_2d.1} parent=83 // loop_header_branch
                  %440 = sbr.rel (%p437) target = $region91
                $region88: #{_linear_2d.1} parent=83 // loop_body
                  %v444 = vld [vmem:[%s442] sm:$0xff]
                  %445 = vst [vmem:[%s443] sm:$0xff] %v444
                  %v446 = vld [vmem:[%s442 + $0x8] sm:$0xff]
                  %447 = vst [vmem:[%s443 + $0x8] sm:$0xff] %v446
                  %v448 = vld [vmem:[%s442 + $0x10] sm:$0xff]
                  %449 = vst [vmem:[%s443 + $0x10] sm:$0xff] %v448
                  %v450 = vld [vmem:[%s442 + $0x18] sm:$0xff]
                  %451 = vst [vmem:[%s443 + $0x18] sm:$0xff] %v450
                  %v452 = vld [vmem:[%s442 + $0xc] sm:$0xff]
                  %453 = vst [vmem:[%s443 + $0x8] sm:$0xff] %v452
                  %v454 = vld [vmem:[%s442 + $0x14] sm:$0xff]
                  %455 = vst [vmem:[%s443 + $0x10] sm:$0xff] %v454
                  %v456 = vld [vmem:[%s442 + $0x1c] sm:$0xff]
                  %457 = vst [vmem:[%s443 + $0x18] sm:$0xff] %v456
                  %v458 = vld [vmem:[%s442 + $0x24] sm:$0xff]
                  %459 = vst [vmem:[%s443 + $0x20] sm:$0xff] %v458
                  %v460 = vld [vmem:[%s442 + $0x18] sm:$0xff]
                  %461 = vst [vmem:[%s443 + $0x10] sm:$0xff] %v460
                  %v462 = vld [vmem:[%s442 + $0x20] sm:$0xff]
                  %463 = vst [vmem:[%s443 + $0x18] sm:$0xff] %v462
                  %v464 = vld [vmem:[%s442 + $0x28] sm:$0xff]
                  %465 = vst [vmem:[%s443 + $0x20] sm:$0xff] %v464
                  %v466 = vld [vmem:[%s442 + $0x30] sm:$0xff]
                  %467 = vst [vmem:[%s443 + $0x28] sm:$0xff] %v466
                  %v468 = vld [vmem:[%s442 + $0x24] sm:$0xff]
                  %469 = vst [vmem:[%s443 + $0x18] sm:$0xff] %v468
                  %v470 = vld [vmem:[%s442 + $0x2c] sm:$0xff]
                  %471 = vst [vmem:[%s443 + $0x20] sm:$0xff] %v470
                  %v472 = vld [vmem:[%s442 + $0x34] sm:$0xff]
                  %473 = vst [vmem:[%s443 + $0x28] sm:$0xff] %v472
                  %v474 = vld [vmem:[%s442 + $0x3c] sm:$0xff]
                  %475 = vst [vmem:[%s443 + $0x30] sm:$0xff] %v474
                  %v476 = vld [vmem:[%s442 + $0x30] sm:$0xff]
                  %477 = vst [vmem:[%s443 + $0x20] sm:$0xff] %v476
                  %v478 = vld [vmem:[%s442 + $0x38] sm:$0xff]
                  %479 = vst [vmem:[%s443 + $0x28] sm:$0xff] %v478
                  %v480 = vld [vmem:[%s442 + $0x40] sm:$0xff]
                  %481 = vst [vmem:[%s443 + $0x30] sm:$0xff] %v480
                  %v482 = vld [vmem:[%s442 + $0x48] sm:$0xff]
                  %483 = vst [vmem:[%s443 + $0x38] sm:$0xff] %v482
                  %v484 = vld [vmem:[%s442 + $0x3c] sm:$0xff]
                  %485 = vst [vmem:[%s443 + $0x28] sm:$0xff] %v484
                  %v486 = vld [vmem:[%s442 + $0x44] sm:$0xff]
                  %487 = vst [vmem:[%s443 + $0x30] sm:$0xff] %v486
                  %v488 = vld [vmem:[%s442 + $0x4c] sm:$0xff]
                  %489 = vst [vmem:[%s443 + $0x38] sm:$0xff] %v488
                  %v490 = vld [vmem:[%s442 + $0x54] sm:$0xff]
                  %491 = vst [vmem:[%s443 + $0x40] sm:$0xff] %v490
                  %v492 = vld [vmem:[%s442 + $0x48] sm:$0xff]
                  %493 = vst [vmem:[%s443 + $0x30] sm:$0xff] %v492
                  %v494 = vld [vmem:[%s442 + $0x50] sm:$0xff]
                  %495 = vst [vmem:[%s443 + $0x38] sm:$0xff] %v494
                  %v496 = vld [vmem:[%s442 + $0x58] sm:$0xff]
                  %497 = vst [vmem:[%s443 + $0x40] sm:$0xff] %v496
                  %v498 = vld [vmem:[%s442 + $0x60] sm:$0xff]
                  %499 = vst [vmem:[%s443 + $0x48] sm:$0xff] %v498
                  %v500 = vld [vmem:[%s442 + $0x54] sm:$0xff]
                  %501 = vst [vmem:[%s443 + $0x38] sm:$0xff] %v500
                  %v502 = vld [vmem:[%s442 + $0x5c] sm:$0xff]
                  %503 = vst [vmem:[%s443 + $0x40] sm:$0xff] %v502
                  %v504 = vld [vmem:[%s442 + $0x64] sm:$0xff]
                  %505 = vst [vmem:[%s443 + $0x48] sm:$0xff] %v504
                  %v506 = vld [vmem:[%s442 + $0x6c] sm:$0xff]
                  %507 = vst [vmem:[%s443 + $0x50] sm:$0xff] %v506
                  %v508 = vld [vmem:[%s442 + $0x60] sm:$0xff]
                  %509 = vst [vmem:[%s443 + $0x40] sm:$0xff] %v508
                  %v510 = vld [vmem:[%s442 + $0x68] sm:$0xff]
                  %511 = vst [vmem:[%s443 + $0x48] sm:$0xff] %v510
                  %v512 = vld [vmem:[%s442 + $0x70] sm:$0xff]
                  %513 = vst [vmem:[%s443 + $0x50] sm:$0xff] %v512
                  %v514 = vld [vmem:[%s442 + $0x78] sm:$0xff]
                  %515 = vst [vmem:[%s443 + $0x58] sm:$0xff] %v514
                  %v516 = vld [vmem:[%s442 + $0x6c] sm:$0xff]
                  %517 = vst [vmem:[%s443 + $0x48] sm:$0xff] %v516
                  %v518 = vld [vmem:[%s442 + $0x74] sm:$0xff]
                  %519 = vst [vmem:[%s443 + $0x50] sm:$0xff] %v518
                  %v520 = vld [vmem:[%s442 + $0x7c] sm:$0xff]
                  %521 = vst [vmem:[%s443 + $0x58] sm:$0xff] %v520
                  %v522 = vld [vmem:[%s442 + $0x84] sm:$0xff]
                  %523 = vst [vmem:[%s443 + $0x60] sm:$0xff] %v522
                  %v524 = vld [vmem:[%s442 + $0x78] sm:$0xff]
                  %525 = vst [vmem:[%s443 + $0x50] sm:$0xff] %v524
                  %v526 = vld [vmem:[%s442 + $0x80] sm:$0xff]
                  %527 = vst [vmem:[%s443 + $0x58] sm:$0xff] %v526
                  %v528 = vld [vmem:[%s442 + $0x88] sm:$0xff]
                  %529 = vst [vmem:[%s443 + $0x60] sm:$0xff] %v528
                  %v530 = vld [vmem:[%s442 + $0x90] sm:$0xff]
                  %531 = vst [vmem:[%s443 + $0x68] sm:$0xff] %v530
                  %v532 = vld [vmem:[%s442 + $0x84] sm:$0xff]
                  %533 = vst [vmem:[%s443 + $0x58] sm:$0xff] %v532
                  %v534 = vld [vmem:[%s442 + $0x8c] sm:$0xff]
                  %535 = vst [vmem:[%s443 + $0x60] sm:$0xff] %v534
                  %v536 = vld [vmem:[%s442 + $0x94] sm:$0xff]
                  %537 = vst [vmem:[%s443 + $0x68] sm:$0xff] %v536
                  %v538 = vld [vmem:[%s442 + $0x9c] sm:$0xff]
                  %539 = vst [vmem:[%s443 + $0x70] sm:$0xff] %v538
                  %v540 = vld [vmem:[%s442 + $0x90] sm:$0xff]
                  %541 = vst [vmem:[%s443 + $0x60] sm:$0xff] %v540
                  %v542 = vld [vmem:[%s442 + $0x98] sm:$0xff]
                  %543 = vst [vmem:[%s443 + $0x68] sm:$0xff] %v542
                  %v544 = vld [vmem:[%s442 + $0xa0] sm:$0xff]
                  %545 = vst [vmem:[%s443 + $0x70] sm:$0xff] %v544
                  %v546 = vld [vmem:[%s442 + $0xa8] sm:$0xff]
                  %547 = vst [vmem:[%s443 + $0x78] sm:$0xff] %v546
                  %v548 = vld [vmem:[%s442 + $0x9c] sm:$0xff]
                  %549 = vst [vmem:[%s443 + $0x68] sm:$0xff] %v548
                  %v550 = vld [vmem:[%s442 + $0xa4] sm:$0xff]
                  %551 = vst [vmem:[%s443 + $0x70] sm:$0xff] %v550
                  %v552 = vld [vmem:[%s442 + $0xac] sm:$0xff]
                  %553 = vst [vmem:[%s443 + $0x78] sm:$0xff] %v552
                  %v554 = vld [vmem:[%s442 + $0xb4] sm:$0xff]
                  %555 = vst [vmem:[%s443 + $0x80] sm:$0xff] %v554
                  %v556 = vld [vmem:[%s442 + $0xa8] sm:$0xff]
                  %557 = vst [vmem:[%s443 + $0x70] sm:$0xff] %v556
                  %v558 = vld [vmem:[%s442 + $0xb0] sm:$0xff]
                  %559 = vst [vmem:[%s443 + $0x78] sm:$0xff] %v558
                  %v560 = vld [vmem:[%s442 + $0xb8] sm:$0xff]
                  %561 = vst [vmem:[%s443 + $0x80] sm:$0xff] %v560
                  %v562 = vld [vmem:[%s442 + $0xc0] sm:$0xff]
                  %563 = vst [vmem:[%s443 + $0x88] sm:$0xff] %v562
                  %v564 = vld [vmem:[%s442 + $0xb4] sm:$0xff]
                  %565 = vst [vmem:[%s443 + $0x78] sm:$0xff] %v564
                  %v566 = vld [vmem:[%s442 + $0xbc] sm:$0xff]
                  %567 = vst [vmem:[%s443 + $0x80] sm:$0xff] %v566
                  %v568 = vld [vmem:[%s442 + $0xc4] sm:$0xff]
                  %569 = vst [vmem:[%s443 + $0x88] sm:$0xff] %v568
                  %v570 = vld [vmem:[%s442 + $0xcc] sm:$0xff]
                  %571 = vst [vmem:[%s443 + $0x90] sm:$0xff] %v570
                  %s572 = sadd.s32 1, %s441
                  %p573 = scmp.ge.s32.totalorder %s572, %s432
                  %s574 = scalar_select %p573, 0, %s572
                  %s575 = smul.u32 %s574, 32
                  %s576 = smul.u32 %s574, 32
                  %s577 = scalar_lea.vmem %s373, %s575
                  %s578 = scalar_lea.vmem %s362, %s576 [#allocation3]
                $region89: #{_linear_2d.1} parent=83 // loop_footer
                  %s438 = sadd.s32 %s436, 1
                $region90: #{_linear_2d.1} parent=83 // loop_footer_branch
                  %435 = sbr.rel target = $region86
                $region91: #{_linear_2d.1} parent=83 // loop_exit
                  _
                %s579 = sshrl.u32 %s431, 2
                %s580 = sand.u32 %s431, 3
                %s581 = smul.u32 %s579, 4
                %s582 = smul.u32 128, %s581
                %s583 = sshra.s32 %s582, 4
                %s584 = scalar_lea.vmem %s373, %s583
                %s585 = smul.u32 128, %s581
                %s586 = sshra.s32 %s585, 4
                %s587 = scalar_lea.vmem %s362, %s586 [#allocation3]
                // While loop
                $region92: #{_linear_2d.1} parent=83 // loop_pre_header
                  _
                $region93: #{_linear_2d.1} parent=83 // loop_header
                  %s591 = sphi 0, %s593
                  %p592 = scmp.ge.s32.totalorder %s591, %s580
                  %s596 = sphi 0, %s633
                  %s597 = sphi %s584, %s636
                  %s598 = sphi %s587, %s637
                $region94: #{_linear_2d.1} parent=83 // loop_header_branch
                  %595 = sbr.rel (%p592) target = $region98
                $region95: #{_linear_2d.1} parent=83 // loop_body
                  %v599 = vld [vmem:[%s597] sm:$0xff]
                  %600 = vst [vmem:[%s598] sm:$0xff] %v599
                  %v601 = vld [vmem:[%s597 + $0xc] sm:$0xff]
                  %602 = vst [vmem:[%s598 + $0x8] sm:$0xff] %v601
                  %v603 = vld [vmem:[%s597 + $0x18] sm:$0xff]
                  %604 = vst [vmem:[%s598 + $0x10] sm:$0xff] %v603
                  %v605 = vld [vmem:[%s597 + $0x24] sm:$0xff]
                  %606 = vst [vmem:[%s598 + $0x18] sm:$0xff] %v605
                  %v607 = vld [vmem:[%s597 + $0x30] sm:$0xff]
                  %608 = vst [vmem:[%s598 + $0x20] sm:$0xff] %v607
                  %v609 = vld [vmem:[%s597 + $0x3c] sm:$0xff]
                  %610 = vst [vmem:[%s598 + $0x28] sm:$0xff] %v609
                  %v611 = vld [vmem:[%s597 + $0x48] sm:$0xff]
                  %612 = vst [vmem:[%s598 + $0x30] sm:$0xff] %v611
                  %v613 = vld [vmem:[%s597 + $0x54] sm:$0xff]
                  %614 = vst [vmem:[%s598 + $0x38] sm:$0xff] %v613
                  %v615 = vld [vmem:[%s597 + $0x60] sm:$0xff]
                  %616 = vst [vmem:[%s598 + $0x40] sm:$0xff] %v615
                  %v617 = vld [vmem:[%s597 + $0x6c] sm:$0xff]
                  %618 = vst [vmem:[%s598 + $0x48] sm:$0xff] %v617
                  %v619 = vld [vmem:[%s597 + $0x78] sm:$0xff]
                  %620 = vst [vmem:[%s598 + $0x50] sm:$0xff] %v619
                  %v621 = vld [vmem:[%s597 + $0x84] sm:$0xff]
                  %622 = vst [vmem:[%s598 + $0x58] sm:$0xff] %v621
                  %v623 = vld [vmem:[%s597 + $0x90] sm:$0xff]
                  %624 = vst [vmem:[%s598 + $0x60] sm:$0xff] %v623
                  %v625 = vld [vmem:[%s597 + $0x9c] sm:$0xff]
                  %626 = vst [vmem:[%s598 + $0x68] sm:$0xff] %v625
                  %v627 = vld [vmem:[%s597 + $0xa8] sm:$0xff]
                  %628 = vst [vmem:[%s598 + $0x70] sm:$0xff] %v627
                  %v629 = vld [vmem:[%s597 + $0xb4] sm:$0xff]
                  %630 = vst [vmem:[%s598 + $0x78] sm:$0xff] %v629
                  %s631 = sadd.s32 1, %s596
                  %p632 = scmp.ge.s32.totalorder %s631, %s580
                  %s633 = scalar_select %p632, 0, %s631
                  %s634 = smul.u32 %s633, 8
                  %s635 = smul.u32 %s633, 8
                  %s636 = scalar_lea.vmem %s584, %s634
                  %s637 = scalar_lea.vmem %s587, %s635 [#allocation3]
                $region96: #{_linear_2d.1} parent=83 // loop_footer
                  %s593 = sadd.s32 %s591, 1
                $region97: #{_linear_2d.1} parent=83 // loop_footer_branch
                  %590 = sbr.rel target = $region93
                $region98: #{_linear_2d.1} parent=83 // loop_exit
                  _
              $region84: #{_linear_2d.1} parent=68 // pred_fallthru
                _
              %p638 = pneg %p427
              // Predicated region
              $region99: #{_linear_2d.1} parent=68 // pred_check
                _
              $region100: #{_linear_2d.1} parent=68 // pred_check_branch
                %640 = sbr.rel (%p427) target = $region102
              $region101: #{_linear_2d.1} parent=68 // pred_region
                %s641 = sand.u32 %s374, 7
                %s642 = ssub.s32 %s374, %s641
                %s643 = scalar_lea.vmem %s373, %s642
                %s644 = ssub.s32 %s374, %s641
                %s645 = scalar_lea.vmem %s362, %s644 [#allocation3]
                %s646 = sshrl.u32 %s374, 3
                %s647 = sshrl.u32 %s646, 2
                // While loop
                $region103: #{_linear_2d.1} parent=101 // loop_pre_header
                  _
                $region104: #{_linear_2d.1} parent=101 // loop_header
                  %s651 = sphi 0, %s653
                  %p652 = scmp.ge.s32.totalorder %s651, %s647
                  %s656 = sphi 0, %s789
                  %s657 = sphi %s373, %s792
                  %s658 = sphi %s362, %s793
                $region105: #{_linear_2d.1} parent=101 // loop_header_branch
                  %655 = sbr.rel (%p652) target = $region109
                $region106: #{_linear_2d.1} parent=101 // loop_body
                  %v659 = vld [vmem:[%s657] sm:$0xff]
                  %660 = vst [vmem:[%s658] sm:$0xff] %v659
                  %v661 = vld [vmem:[%s657 + $0x8] sm:$0xff]
                  %662 = vst [vmem:[%s658 + $0x8] sm:$0xff] %v661
                  %v663 = vld [vmem:[%s657 + $0x10] sm:$0xff]
                  %664 = vst [vmem:[%s658 + $0x10] sm:$0xff] %v663
                  %v665 = vld [vmem:[%s657 + $0x18] sm:$0xff]
                  %666 = vst [vmem:[%s658 + $0x18] sm:$0xff] %v665
                  %v667 = vld [vmem:[%s657 + $0xc] sm:$0xff]
                  %668 = vst [vmem:[%s658 + $0x8] sm:$0xff] %v667
                  %v669 = vld [vmem:[%s657 + $0x14] sm:$0xff]
                  %670 = vst [vmem:[%s658 + $0x10] sm:$0xff] %v669
                  %v671 = vld [vmem:[%s657 + $0x1c] sm:$0xff]
                  %672 = vst [vmem:[%s658 + $0x18] sm:$0xff] %v671
                  %v673 = vld [vmem:[%s657 + $0x24] sm:$0xff]
                  %674 = vst [vmem:[%s658 + $0x20] sm:$0xff] %v673
                  %v675 = vld [vmem:[%s657 + $0x18] sm:$0xff]
                  %676 = vst [vmem:[%s658 + $0x10] sm:$0xff] %v675
                  %v677 = vld [vmem:[%s657 + $0x20] sm:$0xff]
                  %678 = vst [vmem:[%s658 + $0x18] sm:$0xff] %v677
                  %v679 = vld [vmem:[%s657 + $0x28] sm:$0xff]
                  %680 = vst [vmem:[%s658 + $0x20] sm:$0xff] %v679
                  %v681 = vld [vmem:[%s657 + $0x30] sm:$0xff]
                  %682 = vst [vmem:[%s658 + $0x28] sm:$0xff] %v681
                  %v683 = vld [vmem:[%s657 + $0x24] sm:$0xff]
                  %684 = vst [vmem:[%s658 + $0x18] sm:$0xff] %v683
                  %v685 = vld [vmem:[%s657 + $0x2c] sm:$0xff]
                  %686 = vst [vmem:[%s658 + $0x20] sm:$0xff] %v685
                  %v687 = vld [vmem:[%s657 + $0x34] sm:$0xff]
                  %688 = vst [vmem:[%s658 + $0x28] sm:$0xff] %v687
                  %v689 = vld [vmem:[%s657 + $0x3c] sm:$0xff]
                  %690 = vst [vmem:[%s658 + $0x30] sm:$0xff] %v689
                  %v691 = vld [vmem:[%s657 + $0x30] sm:$0xff]
                  %692 = vst [vmem:[%s658 + $0x20] sm:$0xff] %v691
                  %v693 = vld [vmem:[%s657 + $0x38] sm:$0xff]
                  %694 = vst [vmem:[%s658 + $0x28] sm:$0xff] %v693
                  %v695 = vld [vmem:[%s657 + $0x40] sm:$0xff]
                  %696 = vst [vmem:[%s658 + $0x30] sm:$0xff] %v695
                  %v697 = vld [vmem:[%s657 + $0x48] sm:$0xff]
                  %698 = vst [vmem:[%s658 + $0x38] sm:$0xff] %v697
                  %v699 = vld [vmem:[%s657 + $0x3c] sm:$0xff]
                  %700 = vst [vmem:[%s658 + $0x28] sm:$0xff] %v699
                  %v701 = vld [vmem:[%s657 + $0x44] sm:$0xff]
                  %702 = vst [vmem:[%s658 + $0x30] sm:$0xff] %v701
                  %v703 = vld [vmem:[%s657 + $0x4c] sm:$0xff]
                  %704 = vst [vmem:[%s658 + $0x38] sm:$0xff] %v703
                  %v705 = vld [vmem:[%s657 + $0x54] sm:$0xff]
                  %706 = vst [vmem:[%s658 + $0x40] sm:$0xff] %v705
                  %v707 = vld [vmem:[%s657 + $0x48] sm:$0xff]
                  %708 = vst [vmem:[%s658 + $0x30] sm:$0xff] %v707
                  %v709 = vld [vmem:[%s657 + $0x50] sm:$0xff]
                  %710 = vst [vmem:[%s658 + $0x38] sm:$0xff] %v709
                  %v711 = vld [vmem:[%s657 + $0x58] sm:$0xff]
                  %712 = vst [vmem:[%s658 + $0x40] sm:$0xff] %v711
                  %v713 = vld [vmem:[%s657 + $0x60] sm:$0xff]
                  %714 = vst [vmem:[%s658 + $0x48] sm:$0xff] %v713
                  %v715 = vld [vmem:[%s657 + $0x54] sm:$0xff]
                  %716 = vst [vmem:[%s658 + $0x38] sm:$0xff] %v715
                  %v717 = vld [vmem:[%s657 + $0x5c] sm:$0xff]
                  %718 = vst [vmem:[%s658 + $0x40] sm:$0xff] %v717
                  %v719 = vld [vmem:[%s657 + $0x64] sm:$0xff]
                  %720 = vst [vmem:[%s658 + $0x48] sm:$0xff] %v719
                  %v721 = vld [vmem:[%s657 + $0x6c] sm:$0xff]
                  %722 = vst [vmem:[%s658 + $0x50] sm:$0xff] %v721
                  %v723 = vld [vmem:[%s657 + $0x60] sm:$0xff]
                  %724 = vst [vmem:[%s658 + $0x40] sm:$0xff] %v723
                  %v725 = vld [vmem:[%s657 + $0x68] sm:$0xff]
                  %726 = vst [vmem:[%s658 + $0x48] sm:$0xff] %v725
                  %v727 = vld [vmem:[%s657 + $0x70] sm:$0xff]
                  %728 = vst [vmem:[%s658 + $0x50] sm:$0xff] %v727
                  %v729 = vld [vmem:[%s657 + $0x78] sm:$0xff]
                  %730 = vst [vmem:[%s658 + $0x58] sm:$0xff] %v729
                  %v731 = vld [vmem:[%s657 + $0x6c] sm:$0xff]
                  %732 = vst [vmem:[%s658 + $0x48] sm:$0xff] %v731
                  %v733 = vld [vmem:[%s657 + $0x74] sm:$0xff]
                  %734 = vst [vmem:[%s658 + $0x50] sm:$0xff] %v733
                  %v735 = vld [vmem:[%s657 + $0x7c] sm:$0xff]
                  %736 = vst [vmem:[%s658 + $0x58] sm:$0xff] %v735
                  %v737 = vld [vmem:[%s657 + $0x84] sm:$0xff]
                  %738 = vst [vmem:[%s658 + $0x60] sm:$0xff] %v737
                  %v739 = vld [vmem:[%s657 + $0x78] sm:$0xff]
                  %740 = vst [vmem:[%s658 + $0x50] sm:$0xff] %v739
                  %v741 = vld [vmem:[%s657 + $0x80] sm:$0xff]
                  %742 = vst [vmem:[%s658 + $0x58] sm:$0xff] %v741
                  %v743 = vld [vmem:[%s657 + $0x88] sm:$0xff]
                  %744 = vst [vmem:[%s658 + $0x60] sm:$0xff] %v743
                  %v745 = vld [vmem:[%s657 + $0x90] sm:$0xff]
                  %746 = vst [vmem:[%s658 + $0x68] sm:$0xff] %v745
                  %v747 = vld [vmem:[%s657 + $0x84] sm:$0xff]
                  %748 = vst [vmem:[%s658 + $0x58] sm:$0xff] %v747
                  %v749 = vld [vmem:[%s657 + $0x8c] sm:$0xff]
                  %750 = vst [vmem:[%s658 + $0x60] sm:$0xff] %v749
                  %v751 = vld [vmem:[%s657 + $0x94] sm:$0xff]
                  %752 = vst [vmem:[%s658 + $0x68] sm:$0xff] %v751
                  %v753 = vld [vmem:[%s657 + $0x9c] sm:$0xff]
                  %754 = vst [vmem:[%s658 + $0x70] sm:$0xff] %v753
                  %v755 = vld [vmem:[%s657 + $0x90] sm:$0xff]
                  %756 = vst [vmem:[%s658 + $0x60] sm:$0xff] %v755
                  %v757 = vld [vmem:[%s657 + $0x98] sm:$0xff]
                  %758 = vst [vmem:[%s658 + $0x68] sm:$0xff] %v757
                  %v759 = vld [vmem:[%s657 + $0xa0] sm:$0xff]
                  %760 = vst [vmem:[%s658 + $0x70] sm:$0xff] %v759
                  %v761 = vld [vmem:[%s657 + $0xa8] sm:$0xff]
                  %762 = vst [vmem:[%s658 + $0x78] sm:$0xff] %v761
                  %v763 = vld [vmem:[%s657 + $0x9c] sm:$0xff]
                  %764 = vst [vmem:[%s658 + $0x68] sm:$0xff] %v763
                  %v765 = vld [vmem:[%s657 + $0xa4] sm:$0xff]
                  %766 = vst [vmem:[%s658 + $0x70] sm:$0xff] %v765
                  %v767 = vld [vmem:[%s657 + $0xac] sm:$0xff]
                  %768 = vst [vmem:[%s658 + $0x78] sm:$0xff] %v767
                  %v769 = vld [vmem:[%s657 + $0xb4] sm:$0xff]
                  %770 = vst [vmem:[%s658 + $0x80] sm:$0xff] %v769
                  %v771 = vld [vmem:[%s657 + $0xa8] sm:$0xff]
                  %772 = vst [vmem:[%s658 + $0x70] sm:$0xff] %v771
                  %v773 = vld [vmem:[%s657 + $0xb0] sm:$0xff]
                  %774 = vst [vmem:[%s658 + $0x78] sm:$0xff] %v773
                  %v775 = vld [vmem:[%s657 + $0xb8] sm:$0xff]
                  %776 = vst [vmem:[%s658 + $0x80] sm:$0xff] %v775
                  %v777 = vld [vmem:[%s657 + $0xc0] sm:$0xff]
                  %778 = vst [vmem:[%s658 + $0x88] sm:$0xff] %v777
                  %v779 = vld [vmem:[%s657 + $0xb4] sm:$0xff]
                  %780 = vst [vmem:[%s658 + $0x78] sm:$0xff] %v779
                  %v781 = vld [vmem:[%s657 + $0xbc] sm:$0xff]
                  %782 = vst [vmem:[%s658 + $0x80] sm:$0xff] %v781
                  %v783 = vld [vmem:[%s657 + $0xc4] sm:$0xff]
                  %784 = vst [vmem:[%s658 + $0x88] sm:$0xff] %v783
                  %v785 = vld [vmem:[%s657 + $0xcc] sm:$0xff]
                  %786 = vst [vmem:[%s658 + $0x90] sm:$0xff] %v785
                  %s787 = sadd.s32 1, %s656
                  %p788 = scmp.ge.s32.totalorder %s787, %s647
                  %s789 = scalar_select %p788, 0, %s787
                  %s790 = smul.u32 %s789, 32
                  %s791 = smul.u32 %s789, 32
                  %s792 = scalar_lea.vmem %s373, %s790
                  %s793 = scalar_lea.vmem %s362, %s791 [#allocation3]
                $region107: #{_linear_2d.1} parent=101 // loop_footer
                  %s653 = sadd.s32 %s651, 1
                $region108: #{_linear_2d.1} parent=101 // loop_footer_branch
                  %650 = sbr.rel target = $region104
                $region109: #{_linear_2d.1} parent=101 // loop_exit
                  _
                %s794 = sshrl.u32 %s646, 2
                %s795 = sand.u32 %s646, 3
                %s796 = smul.u32 %s794, 4
                %s797 = smul.u32 128, %s796
                %s798 = sshra.s32 %s797, 4
                %s799 = scalar_lea.vmem %s373, %s798
                %s800 = smul.u32 128, %s796
                %s801 = sshra.s32 %s800, 4
                %s802 = scalar_lea.vmem %s362, %s801 [#allocation3]
                // While loop
                $region110: #{_linear_2d.1} parent=101 // loop_pre_header
                  _
                $region111: #{_linear_2d.1} parent=101 // loop_header
                  %s806 = sphi 0, %s808
                  %p807 = scmp.ge.s32.totalorder %s806, %s795
                  %s811 = sphi 0, %s848
                  %s812 = sphi %s799, %s851
                  %s813 = sphi %s802, %s852
                $region112: #{_linear_2d.1} parent=101 // loop_header_branch
                  %810 = sbr.rel (%p807) target = $region116
                $region113: #{_linear_2d.1} parent=101 // loop_body
                  %v814 = vld [vmem:[%s812] sm:$0xff]
                  %815 = vst [vmem:[%s813] sm:$0xff] %v814
                  %v816 = vld [vmem:[%s812 + $0xc] sm:$0xff]
                  %817 = vst [vmem:[%s813 + $0x8] sm:$0xff] %v816
                  %v818 = vld [vmem:[%s812 + $0x18] sm:$0xff]
                  %819 = vst [vmem:[%s813 + $0x10] sm:$0xff] %v818
                  %v820 = vld [vmem:[%s812 + $0x24] sm:$0xff]
                  %821 = vst [vmem:[%s813 + $0x18] sm:$0xff] %v820
                  %v822 = vld [vmem:[%s812 + $0x30] sm:$0xff]
                  %823 = vst [vmem:[%s813 + $0x20] sm:$0xff] %v822
                  %v824 = vld [vmem:[%s812 + $0x3c] sm:$0xff]
                  %825 = vst [vmem:[%s813 + $0x28] sm:$0xff] %v824
                  %v826 = vld [vmem:[%s812 + $0x48] sm:$0xff]
                  %827 = vst [vmem:[%s813 + $0x30] sm:$0xff] %v826
                  %v828 = vld [vmem:[%s812 + $0x54] sm:$0xff]
                  %829 = vst [vmem:[%s813 + $0x38] sm:$0xff] %v828
                  %v830 = vld [vmem:[%s812 + $0x60] sm:$0xff]
                  %831 = vst [vmem:[%s813 + $0x40] sm:$0xff] %v830
                  %v832 = vld [vmem:[%s812 + $0x6c] sm:$0xff]
                  %833 = vst [vmem:[%s813 + $0x48] sm:$0xff] %v832
                  %v834 = vld [vmem:[%s812 + $0x78] sm:$0xff]
                  %835 = vst [vmem:[%s813 + $0x50] sm:$0xff] %v834
                  %v836 = vld [vmem:[%s812 + $0x84] sm:$0xff]
                  %837 = vst [vmem:[%s813 + $0x58] sm:$0xff] %v836
                  %v838 = vld [vmem:[%s812 + $0x90] sm:$0xff]
                  %839 = vst [vmem:[%s813 + $0x60] sm:$0xff] %v838
                  %v840 = vld [vmem:[%s812 + $0x9c] sm:$0xff]
                  %841 = vst [vmem:[%s813 + $0x68] sm:$0xff] %v840
                  %v842 = vld [vmem:[%s812 + $0xa8] sm:$0xff]
                  %843 = vst [vmem:[%s813 + $0x70] sm:$0xff] %v842
                  %v844 = vld [vmem:[%s812 + $0xb4] sm:$0xff]
                  %845 = vst [vmem:[%s813 + $0x78] sm:$0xff] %v844
                  %s846 = sadd.s32 1, %s811
                  %p847 = scmp.ge.s32.totalorder %s846, %s795
                  %s848 = scalar_select %p847, 0, %s846
                  %s849 = smul.u32 %s848, 8
                  %s850 = smul.u32 %s848, 8
                  %s851 = scalar_lea.vmem %s799, %s849
                  %s852 = scalar_lea.vmem %s802, %s850 [#allocation3]
                $region114: #{_linear_2d.1} parent=101 // loop_footer
                  %s808 = sadd.s32 %s806, 1
                $region115: #{_linear_2d.1} parent=101 // loop_footer_branch
                  %805 = sbr.rel target = $region111
                $region116: #{_linear_2d.1} parent=101 // loop_exit
                  _
                %s853 = sshllo.u32 0, %s641
                loop: start=0, step=1, limit=1
                $region117: #{_linear_2d.1} parent=101 // loop_pre_header
                  _
                $region118: #{_linear_2d.1} parent=101 // loop_header
                  %s855 = sphi 0, %s859
                  %p856 = scmp.ge.s32.totalorder %s855, 1
                  %s860 = sphi %s643, %s643
                  %s861 = sphi %s645, %s645
                $region119: #{_linear_2d.1} parent=101 // loop_header_branch
                  %858 = sbr.rel (%p856) target = $region123
                $region120: #{_linear_2d.1} parent=101 // loop_body
                  %v862 = vld [vmem:[%s860] sm:%s853]
                  %863 = vst [vmem:[%s861] sm:%s853] %v862
                  %v864 = vld [vmem:[%s860 + $0xc] sm:%s853]
                  %865 = vst [vmem:[%s861 + $0x8] sm:%s853] %v864
                  %v866 = vld [vmem:[%s860 + $0x18] sm:%s853]
                  %867 = vst [vmem:[%s861 + $0x10] sm:%s853] %v866
                  %v868 = vld [vmem:[%s860 + $0x24] sm:%s853]
                  %869 = vst [vmem:[%s861 + $0x18] sm:%s853] %v868
                  %v870 = vld [vmem:[%s860 + $0x30] sm:%s853]
                  %871 = vst [vmem:[%s861 + $0x20] sm:%s853] %v870
                  %v872 = vld [vmem:[%s860 + $0x3c] sm:%s853]
                  %873 = vst [vmem:[%s861 + $0x28] sm:%s853] %v872
                  %v874 = vld [vmem:[%s860 + $0x48] sm:%s853]
                  %875 = vst [vmem:[%s861 + $0x30] sm:%s853] %v874
                  %v876 = vld [vmem:[%s860 + $0x54] sm:%s853]
                  %877 = vst [vmem:[%s861 + $0x38] sm:%s853] %v876
                  %v878 = vld [vmem:[%s860 + $0x60] sm:%s853]
                  %879 = vst [vmem:[%s861 + $0x40] sm:%s853] %v878
                  %v880 = vld [vmem:[%s860 + $0x6c] sm:%s853]
                  %881 = vst [vmem:[%s861 + $0x48] sm:%s853] %v880
                  %v882 = vld [vmem:[%s860 + $0x78] sm:%s853]
                  %883 = vst [vmem:[%s861 + $0x50] sm:%s853] %v882
                  %v884 = vld [vmem:[%s860 + $0x84] sm:%s853]
                  %885 = vst [vmem:[%s861 + $0x58] sm:%s853] %v884
                  %v886 = vld [vmem:[%s860 + $0x90] sm:%s853]
                  %887 = vst [vmem:[%s861 + $0x60] sm:%s853] %v886
                  %v888 = vld [vmem:[%s860 + $0x9c] sm:%s853]
                  %889 = vst [vmem:[%s861 + $0x68] sm:%s853] %v888
                  %v890 = vld [vmem:[%s860 + $0xa8] sm:%s853]
                  %891 = vst [vmem:[%s861 + $0x70] sm:%s853] %v890
                  %v892 = vld [vmem:[%s860 + $0xb4] sm:%s853]
                  %893 = vst [vmem:[%s861 + $0x78] sm:%s853] %v892
                $region121: #{_linear_2d.1} parent=101 // loop_footer
                  %s859 = sadd.s32 1, %s855
                $region122: #{_linear_2d.1} parent=101 // loop_footer_branch
                  %854 = sbr.rel target = $region118
                $region123: #{_linear_2d.1} parent=101 // loop_exit
                  _
              $region102: #{_linear_2d.1} parent=68 // pred_fallthru
                _
            $region69: #{_linear_2d.1} parent=64 // pred_fallthru
              _
            // Predicated region
            $region70: #{_linear_2d.1} parent=64 // pred_check
              %p382 = pneg %p378
            $region71: #{_linear_2d.1} parent=64 // pred_check_branch
              %384 = sbr.rel (%p382) target = $region73
            $region72: #{_linear_2d.1} parent=64 // pred_region
              %s385 = sshllo.u32 0, %s374
              loop: start=0, step=1, limit=1
              $region74: #{_linear_2d.1} parent=72 // loop_pre_header
                _
              $region75: #{_linear_2d.1} parent=72 // loop_header
                %s387 = sphi 0, %s391
                %p388 = scmp.ge.s32.totalorder %s387, 1
                %s392 = sphi %s373, %s373
                %s393 = sphi %s362, %s362
              $region76: #{_linear_2d.1} parent=72 // loop_header_branch
                %390 = sbr.rel (%p388) target = $region80
              $region77: #{_linear_2d.1} parent=72 // loop_body
                %v394 = vld [vmem:[%s392] sm:%s385]
                %395 = vst [vmem:[%s393] sm:%s385] %v394
                %v396 = vld [vmem:[%s392 + $0xc] sm:%s385]
                %397 = vst [vmem:[%s393 + $0x8] sm:%s385] %v396
                %v398 = vld [vmem:[%s392 + $0x18] sm:%s385]
                %399 = vst [vmem:[%s393 + $0x10] sm:%s385] %v398
                %v400 = vld [vmem:[%s392 + $0x24] sm:%s385]
                %401 = vst [vmem:[%s393 + $0x18] sm:%s385] %v400
                %v402 = vld [vmem:[%s392 + $0x30] sm:%s385]
                %403 = vst [vmem:[%s393 + $0x20] sm:%s385] %v402
                %v404 = vld [vmem:[%s392 + $0x3c] sm:%s385]
                %405 = vst [vmem:[%s393 + $0x28] sm:%s385] %v404
                %v406 = vld [vmem:[%s392 + $0x48] sm:%s385]
                %407 = vst [vmem:[%s393 + $0x30] sm:%s385] %v406
                %v408 = vld [vmem:[%s392 + $0x54] sm:%s385]
                %409 = vst [vmem:[%s393 + $0x38] sm:%s385] %v408
                %v410 = vld [vmem:[%s392 + $0x60] sm:%s385]
                %411 = vst [vmem:[%s393 + $0x40] sm:%s385] %v410
                %v412 = vld [vmem:[%s392 + $0x6c] sm:%s385]
                %413 = vst [vmem:[%s393 + $0x48] sm:%s385] %v412
                %v414 = vld [vmem:[%s392 + $0x78] sm:%s385]
                %415 = vst [vmem:[%s393 + $0x50] sm:%s385] %v414
                %v416 = vld [vmem:[%s392 + $0x84] sm:%s385]
                %417 = vst [vmem:[%s393 + $0x58] sm:%s385] %v416
                %v418 = vld [vmem:[%s392 + $0x90] sm:%s385]
                %419 = vst [vmem:[%s393 + $0x60] sm:%s385] %v418
                %v420 = vld [vmem:[%s392 + $0x9c] sm:%s385]
                %421 = vst [vmem:[%s393 + $0x68] sm:%s385] %v420
                %v422 = vld [vmem:[%s392 + $0xa8] sm:%s385]
                %423 = vst [vmem:[%s393 + $0x70] sm:%s385] %v422
                %v424 = vld [vmem:[%s392 + $0xb4] sm:%s385]
                %425 = vst [vmem:[%s393 + $0x78] sm:%s385] %v424
              $region78: #{_linear_2d.1} parent=72 // loop_footer
                %s391 = sadd.s32 1, %s387
              $region79: #{_linear_2d.1} parent=72 // loop_footer_branch
                %386 = sbr.rel target = $region75
              $region80: #{_linear_2d.1} parent=72 // loop_exit
                _
            $region73: #{_linear_2d.1} parent=64 // pred_fallthru
              _
          $region65: #{_linear_2d.1} parent=60 // pred_fallthru
            _
          %894 = vnop
        $region61: #{_linear_2d.1} parent=15 // pred_fallthru
          _
        // Predicated region
        $region124: #{_linear_2d.1} parent=15 // pred_check
          %p895 = pneg %p104
        $region125: #{_linear_2d.1} parent=15 // pred_check_branch
          %897 = sbr.rel (%p895) target = $region127
        $region126: #{_linear_2d.1} parent=15 // pred_region
          %s898 = smul.u32 2, %s17
          %s899 = ssub.s32 3, %s898
          %p900 = scmp.lt.s32.totalorder %s899, 2
          %s901 = scalar_select %p900, %s899, 2
          %s902 = smul.u32 16, %s901
          %p903 = scmp.lt.s32.totalorder %s898, 2
          %s904 = scalar_select %p903, %s898, 2
          %s905 = scalar_lea.vmem %s2, %s904
          %s906 = smul.u32 2, %s17
          %s907 = ssub.s32 3, %s906
          %p908 = scmp.lt.s32.totalorder %s907, 2
          %s909 = scalar_select %p908, %s907, 2
          %s910 = smul.u32 16, %s909
        $region127: #{_linear_2d.1} parent=15 // pred_fallthru
          _
      $region16: #{_linear_2d.1} parent=5 // pred_fallthru
        _
      %p911 = scmp.le.s32.totalorder 1, %s9
      %p912 = scmp.lt.s32.totalorder %s9, 7
      %p913 = pnand %p911, %p912
      %p914 = pneg %p913
      // Predicated region
      $region128: #{_linear_2d.1} parent=5 // pred_check
        _
      $region129: #{_linear_2d.1} parent=5 // pred_check_branch
        %916 = sbr.rel (%p913) target = $region131
      $region130: #{_linear_2d.1} parent=5 // pred_region
        %s917 = ssub.s32 %s9, 1
        %s918 = sand.u32 %s43, 1
        %s919 = sand.u32 %s43, 1
        %s920 = smul.addr %s919, 152
        %s921 = scalar_lea.vmem [#allocation2], %s920
        // Predicated region
        $region132: #{_linear_2d.1} parent=130 // pred_check
          %p922 = pneg %p56
        $region133: #{_linear_2d.1} parent=130 // pred_check_branch
          %924 = sbr.rel (%p922) target = $region135
        $region134: #{_linear_2d.1} parent=130 // pred_region
          _
        $region135: #{_linear_2d.1} parent=130 // pred_fallthru
          _
        %s925 = sand.u32 %s71, 1
        %s926 = sand.u32 %s71, 1
        %s927 = smul.addr %s926, 128
        %s928 = scalar_lea.vmem [#allocation3], %s927
        // Predicated region
        $region136: #{_linear_2d.1} parent=130 // pred_check
          %p929 = pneg %p84
        $region137: #{_linear_2d.1} parent=130 // pred_check_branch
          %931 = sbr.rel (%p929) target = $region139
        $region138: #{_linear_2d.1} parent=130 // pred_region
          _
        $region139: #{_linear_2d.1} parent=130 // pred_fallthru
          _
        %s932 = sand.u32 %s43, 1
        %s933 = sand.u32 %s43, 1
        %s934 = smul.addr %s933, 152
        %s935 = scalar_lea.vmem [#allocation2], %s934
        %p936 = pneg %p56
        %p937 = pneg %p53
        %s938 = sand.u32 %s71, 1
        %s939 = sand.u32 %s71, 1
        %s940 = smul.addr %s939, 128
        %s941 = scalar_lea.vmem [#allocation3], %s940
        %p942 = pneg %p84
        %p943 = pneg %p81
        %s944 = smul.u32 2, %s20
        %s945 = ssub.s32 3, %s944
        %p946 = scmp.lt.s32.totalorder %s945, 2
        %s947 = scalar_select %p946, %s945, 2
        %s948 = smul.u32 16, %s947
        %p949 = scmp.lt.s32.totalorder %s944, 2
        %s950 = scalar_select %p949, %s944, 2
        %s951 = scalar_lea.vmem %s2, %s950
        %p952 = pneg %p110
        %p953 = pneg %p107
        %p954 = pneg %p138
        %p955 = pneg %p135
        %s956 = sand.u32 %s125, 1
        %s957 = sand.u32 %s125, 1
        %s958 = smul.addr %s957, 608
        %s959 = scalar_lea.vmem [#allocation4], %s958
        %s960 = smul.u32 38, %s19
        %s961 = smul.u32 16, %s21
        %s962 = smul.u32 2, %s20
        %s963 = ssub.s32 3, %s962
        %p964 = scmp.lt.s32.totalorder %s963, 2
        %s965 = scalar_select %p964, %s963, 2
        %s966 = smul.u32 1024, %s965
        %s967 = smul.u32 2, %s20
        %s968 = ssub.s32 3, %s967
        %p969 = scmp.lt.s32.totalorder %s968, 2
        %s970 = scalar_select %p969, %s968, 2
        %s971 = smul.u32 16, %s970
        %p972 = scmp.lt.s32.totalorder %s967, 2
        %s973 = scalar_select %p972, %s967, 2
        %s974 = scalar_lea.vmem %s2, %s973
        %s975 = smul.u32 2, %s20
        %s976 = ssub.s32 3, %s975
        %p977 = scmp.lt.s32.totalorder %s976, 2
        %s978 = scalar_select %p977, %s976, 2
        %s979 = smul.u32 16, %s978
        %s980 = smul.u32 38, %s19
        %s981 = smul.u32 2, %s20
        %s982 = ssub.s32 3, %s981
        %p983 = scmp.lt.s32.totalorder %s982, 2
        %s984 = scalar_select %p983, %s982, 2
        %s985 = smul.u32 4864, %s984
        %p987 = scmp.eq.s32.totalorder %s21, 0
        // Predicated region
        $region140: #{_linear_2d.1} parent=130 // pred_check
          %p988 = pneg %p987
        $region141: #{_linear_2d.1} parent=130 // pred_check_branch
          %990 = sbr.rel (%p988) target = $region143
        $region142: #{_linear_2d.1} parent=130 // pred_region
          %v991 = vld [vmem:[%s974] sm:$0x3]
          %v993 = vlaneseq
          %v994 = vshrl.u32 %v993, 7
          %v995 = vsub.s32 0, %v994
          %v996 = vrot.slane %v991, %v995
          %v997 = vlaneseq
          %v998 = vshrl.u32 %v997, 7
          %v999 = vsub.s32 1, %v998
          %v1000 = vrot.slane %v991, %v999
          %1003 = vst [vmem:[%s959] sm:$0xff] %v996
          %1004 = vst [vmem:[%s959 + $0x8] sm:$0xff] %v1000
          %1005 = vst [vmem:[%s959 + $0x10] sm:$0xff] %v996
          %1006 = vst [vmem:[%s959 + $0x18] sm:$0xff] %v1000
          %1007 = vst [vmem:[%s959 + $0x20] sm:$0xff] %v996
          %1008 = vst [vmem:[%s959 + $0x28] sm:$0xff] %v1000
          %1009 = vst [vmem:[%s959 + $0x30] sm:$0xff] %v996
          %1010 = vst [vmem:[%s959 + $0x38] sm:$0xff] %v1000
          %1011 = vst [vmem:[%s959 + $0x40] sm:$0xff] %v996
          %1012 = vst [vmem:[%s959 + $0x48] sm:$0xff] %v1000
          %1013 = vst [vmem:[%s959 + $0x50] sm:$0xff] %v996
          %1014 = vst [vmem:[%s959 + $0x58] sm:$0xff] %v1000
          %1015 = vst [vmem:[%s959 + $0x60] sm:$0xff] %v996
          %1016 = vst [vmem:[%s959 + $0x68] sm:$0xff] %v1000
          %1017 = vst [vmem:[%s959 + $0x70] sm:$0xff] %v996
          %1018 = vst [vmem:[%s959 + $0x78] sm:$0xff] %v1000
          %1019 = vst [vmem:[%s959 + $0x80] sm:$0xff] %v996
          %1020 = vst [vmem:[%s959 + $0x88] sm:$0xff] %v1000
          %1021 = vst [vmem:[%s959 + $0x90] sm:$0xff] %v996
          %1022 = vst [vmem:[%s959 + $0x98] sm:$0xff] %v1000
          %1023 = vst [vmem:[%s959 + $0xa0] sm:$0xff] %v996
          %1024 = vst [vmem:[%s959 + $0xa8] sm:$0xff] %v1000
          %1025 = vst [vmem:[%s959 + $0xb0] sm:$0xff] %v996
          %1026 = vst [vmem:[%s959 + $0xb8] sm:$0xff] %v1000
          %1027 = vst [vmem:[%s959 + $0xc0] sm:$0xff] %v996
          %1028 = vst [vmem:[%s959 + $0xc8] sm:$0xff] %v1000
          %1029 = vst [vmem:[%s959 + $0xd0] sm:$0xff] %v996
          %1030 = vst [vmem:[%s959 + $0xd8] sm:$0xff] %v1000
          %1031 = vst [vmem:[%s959 + $0xe0] sm:$0xff] %v996
          %1032 = vst [vmem:[%s959 + $0xe8] sm:$0xff] %v1000
          %1033 = vst [vmem:[%s959 + $0xf0] sm:$0xff] %v996
          %1034 = vst [vmem:[%s959 + $0xf8] sm:$0xff] %v1000
          %1035 = vst [vmem:[%s959 + $0x100] sm:$0xff] %v996
          %1036 = vst [vmem:[%s959 + $0x108] sm:$0xff] %v1000
          %1037 = vst [vmem:[%s959 + $0x110] sm:$0xff] %v996
          %1038 = vst [vmem:[%s959 + $0x118] sm:$0xff] %v1000
          %1039 = vst [vmem:[%s959 + $0x120] sm:$0xff] %v996
          %1040 = vst [vmem:[%s959 + $0x128] sm:$0xff] %v1000
          %1041 = vst [vmem:[%s959 + $0x130] sm:$0xff] %v996
          %1042 = vst [vmem:[%s959 + $0x138] sm:$0xff] %v1000
          %1043 = vst [vmem:[%s959 + $0x140] sm:$0xff] %v996
          %1044 = vst [vmem:[%s959 + $0x148] sm:$0xff] %v1000
          %1045 = vst [vmem:[%s959 + $0x150] sm:$0xff] %v996
          %1046 = vst [vmem:[%s959 + $0x158] sm:$0xff] %v1000
          %1047 = vst [vmem:[%s959 + $0x160] sm:$0xff] %v996
          %1048 = vst [vmem:[%s959 + $0x168] sm:$0xff] %v1000
          %1049 = vst [vmem:[%s959 + $0x170] sm:$0xff] %v996
          %1050 = vst [vmem:[%s959 + $0x178] sm:$0xff] %v1000
          %1051 = vst [vmem:[%s959 + $0x180] sm:$0xff] %v996
          %1052 = vst [vmem:[%s959 + $0x188] sm:$0xff] %v1000
          %1053 = vst [vmem:[%s959 + $0x190] sm:$0xff] %v996
          %1054 = vst [vmem:[%s959 + $0x198] sm:$0xff] %v1000
          %1055 = vst [vmem:[%s959 + $0x1a0] sm:$0xff] %v996
          %1056 = vst [vmem:[%s959 + $0x1a8] sm:$0xff] %v1000
          %1057 = vst [vmem:[%s959 + $0x1b0] sm:$0xff] %v996
          %1058 = vst [vmem:[%s959 + $0x1b8] sm:$0xff] %v1000
          %1059 = vst [vmem:[%s959 + $0x1c0] sm:$0xff] %v996
          %1060 = vst [vmem:[%s959 + $0x1c8] sm:$0xff] %v1000
          %1061 = vst [vmem:[%s959 + $0x1d0] sm:$0xff] %v996
          %1062 = vst [vmem:[%s959 + $0x1d8] sm:$0xff] %v1000
          %1063 = vst [vmem:[%s959 + $0x1e0] sm:$0xff] %v996
          %1064 = vst [vmem:[%s959 + $0x1e8] sm:$0xff] %v1000
          %1065 = vst [vmem:[%s959 + $0x1f0] sm:$0xff] %v996
          %1066 = vst [vmem:[%s959 + $0x1f8] sm:$0xff] %v1000
          %1067 = vst [vmem:[%s959 + $0x200] sm:$0xff] %v996
          %1068 = vst [vmem:[%s959 + $0x208] sm:$0xff] %v1000
          %1069 = vst [vmem:[%s959 + $0x210] sm:$0xff] %v996
          %1070 = vst [vmem:[%s959 + $0x218] sm:$0xff] %v1000
          %1071 = vst [vmem:[%s959 + $0x220] sm:$0xff] %v996
          %1072 = vst [vmem:[%s959 + $0x228] sm:$0xff] %v1000
          %1073 = vst [vmem:[%s959 + $0x230] sm:$0xff] %v996
          %1074 = vst [vmem:[%s959 + $0x238] sm:$0xff] %v1000
          %1075 = vst [vmem:[%s959 + $0x240] sm:$0xff] %v996
          %1076 = vst [vmem:[%s959 + $0x248] sm:$0xff] %v1000
          %1077 = vst [vmem:[%s959 + $0x250] sm:$0xff] %v996
          %1078 = vst [vmem:[%s959 + $0x258] sm:$0xff] %v1000
        $region143: #{_linear_2d.1} parent=130 // pred_fallthru
          _
        %v1079 = vld [vmem:[%s959] sm:$0xff]
        %v1080 = vld [vmem:[%s959 + $0x8] sm:$0xff]
        %v1081 = vld [vmem:[%s959 + $0x10] sm:$0xff]
        %v1082 = vld [vmem:[%s959 + $0x18] sm:$0xff]
        %v1083 = vld [vmem:[%s959 + $0x20] sm:$0xff]
        %v1084 = vld [vmem:[%s959 + $0x28] sm:$0xff]
        %v1085 = vld [vmem:[%s959 + $0x30] sm:$0xff]
        %v1086 = vld [vmem:[%s959 + $0x38] sm:$0xff]
        %v1087 = vld [vmem:[%s959 + $0x40] sm:$0xff]
        %v1088 = vld [vmem:[%s959 + $0x48] sm:$0xff]
        %v1089 = vld [vmem:[%s959 + $0x50] sm:$0xff]
        %v1090 = vld [vmem:[%s959 + $0x58] sm:$0xff]
        %v1091 = vld [vmem:[%s959 + $0x60] sm:$0xff]
        %v1092 = vld [vmem:[%s959 + $0x68] sm:$0xff]
        %v1093 = vld [vmem:[%s959 + $0x70] sm:$0xff]
        %v1094 = vld [vmem:[%s959 + $0x78] sm:$0xff]
        %v1095 = vld [vmem:[%s959 + $0x80] sm:$0xff]
        %v1096 = vld [vmem:[%s959 + $0x88] sm:$0xff]
        %v1097 = vld [vmem:[%s959 + $0x90] sm:$0xff]
        %v1098 = vld [vmem:[%s959 + $0x98] sm:$0xff]
        %v1099 = vld [vmem:[%s959 + $0xa0] sm:$0xff]
        %v1100 = vld [vmem:[%s959 + $0xa8] sm:$0xff]
        %v1101 = vld [vmem:[%s959 + $0xb0] sm:$0xff]
        %v1102 = vld [vmem:[%s959 + $0xb8] sm:$0xff]
        %v1103 = vld [vmem:[%s959 + $0xc0] sm:$0xff]
        %v1104 = vld [vmem:[%s959 + $0xc8] sm:$0xff]
        %v1105 = vld [vmem:[%s959 + $0xd0] sm:$0xff]
        %v1106 = vld [vmem:[%s959 + $0xd8] sm:$0xff]
        %v1107 = vld [vmem:[%s959 + $0xe0] sm:$0xff]
        %v1108 = vld [vmem:[%s959 + $0xe8] sm:$0xff]
        %v1109 = vld [vmem:[%s959 + $0xf0] sm:$0xff]
        %v1110 = vld [vmem:[%s959 + $0xf8] sm:$0xff]
        %v1111 = vld [vmem:[%s959 + $0x100] sm:$0xff]
        %v1112 = vld [vmem:[%s959 + $0x108] sm:$0xff]
        %v1113 = vld [vmem:[%s959 + $0x110] sm:$0xff]
        %v1114 = vld [vmem:[%s959 + $0x118] sm:$0xff]
        %v1115 = vld [vmem:[%s959 + $0x120] sm:$0xff]
        %v1116 = vld [vmem:[%s959 + $0x128] sm:$0xff]
        %v1117 = vld [vmem:[%s959 + $0x130] sm:$0xff]
        %v1118 = vld [vmem:[%s959 + $0x138] sm:$0xff]
        %v1119 = vld [vmem:[%s959 + $0x140] sm:$0xff]
        %v1120 = vld [vmem:[%s959 + $0x148] sm:$0xff]
        %v1121 = vld [vmem:[%s959 + $0x150] sm:$0xff]
        %v1122 = vld [vmem:[%s959 + $0x158] sm:$0xff]
        %v1123 = vld [vmem:[%s959 + $0x160] sm:$0xff]
        %v1124 = vld [vmem:[%s959 + $0x168] sm:$0xff]
        %v1125 = vld [vmem:[%s959 + $0x170] sm:$0xff]
        %v1126 = vld [vmem:[%s959 + $0x178] sm:$0xff]
        %v1127 = vld [vmem:[%s959 + $0x180] sm:$0xff]
        %v1128 = vld [vmem:[%s959 + $0x188] sm:$0xff]
        %v1129 = vld [vmem:[%s959 + $0x190] sm:$0xff]
        %v1130 = vld [vmem:[%s959 + $0x198] sm:$0xff]
        %v1131 = vld [vmem:[%s959 + $0x1a0] sm:$0xff]
        %v1132 = vld [vmem:[%s959 + $0x1a8] sm:$0xff]
        %v1133 = vld [vmem:[%s959 + $0x1b0] sm:$0xff]
        %v1134 = vld [vmem:[%s959 + $0x1b8] sm:$0xff]
        %v1135 = vld [vmem:[%s959 + $0x1c0] sm:$0xff]
        %v1136 = vld [vmem:[%s959 + $0x1c8] sm:$0xff]
        %v1137 = vld [vmem:[%s959 + $0x1d0] sm:$0xff]
        %v1138 = vld [vmem:[%s959 + $0x1d8] sm:$0xff]
        %v1139 = vld [vmem:[%s959 + $0x1e0] sm:$0xff]
        %v1140 = vld [vmem:[%s959 + $0x1e8] sm:$0xff]
        %v1141 = vld [vmem:[%s959 + $0x1f0] sm:$0xff]
        %v1142 = vld [vmem:[%s959 + $0x1f8] sm:$0xff]
        %v1143 = vld [vmem:[%s959 + $0x200] sm:$0xff]
        %v1144 = vld [vmem:[%s959 + $0x208] sm:$0xff]
        %v1145 = vld [vmem:[%s959 + $0x210] sm:$0xff]
        %v1146 = vld [vmem:[%s959 + $0x218] sm:$0xff]
        %v1147 = vld [vmem:[%s959 + $0x220] sm:$0xff]
        %v1148 = vld [vmem:[%s959 + $0x228] sm:$0xff]
        %v1149 = vld [vmem:[%s959 + $0x230] sm:$0xff]
        %v1150 = vld [vmem:[%s959 + $0x238] sm:$0xff]
        %v1151 = vld [vmem:[%s959 + $0x240] sm:$0xff]
        %v1152 = vld [vmem:[%s959 + $0x248] sm:$0xff]
        %v1153 = vld [vmem:[%s959 + $0x250] sm:$0xff]
        %v1154 = vld [vmem:[%s959 + $0x258] sm:$0xff]
        %v1155 = vld [vmem:[%s921] sm:$0xf]
        %v1156 = vld [vmem:[%s921 + $0x4] sm:$0xf]
        %v1157 = vld [vmem:[%s921 + $0x8] sm:$0xf]
        %v1158 = vld [vmem:[%s921 + $0xc] sm:$0xf]
        %v1159 = vld [vmem:[%s921 + $0x10] sm:$0xf]
        %v1160 = vld [vmem:[%s921 + $0x14] sm:$0xf]
        %v1161 = vld [vmem:[%s921 + $0x18] sm:$0xf]
        %v1162 = vld [vmem:[%s921 + $0x1c] sm:$0xf]
        %v1163 = vld [vmem:[%s921 + $0x20] sm:$0xf]
        %v1164 = vld [vmem:[%s921 + $0x24] sm:$0xf]
        %v1165 = vld [vmem:[%s921 + $0x28] sm:$0xf]
        %v1166 = vld [vmem:[%s921 + $0x2c] sm:$0xf]
        %v1167 = vld [vmem:[%s921 + $0x30] sm:$0xf]
        %v1168 = vld [vmem:[%s921 + $0x34] sm:$0xf]
        %v1169 = vld [vmem:[%s921 + $0x38] sm:$0xf]
        %v1170 = vld [vmem:[%s921 + $0x3c] sm:$0xf]
        %v1171 = vld [vmem:[%s921 + $0x40] sm:$0xf]
        %v1172 = vld [vmem:[%s921 + $0x44] sm:$0xf]
        %v1173 = vld [vmem:[%s921 + $0x48] sm:$0xf]
        %v1174 = vld [vmem:[%s921 + $0x4c] sm:$0xf]
        %v1175 = vld [vmem:[%s921 + $0x50] sm:$0xf]
        %v1176 = vld [vmem:[%s921 + $0x54] sm:$0xf]
        %v1177 = vld [vmem:[%s921 + $0x58] sm:$0xf]
        %v1178 = vld [vmem:[%s921 + $0x5c] sm:$0xf]
        %v1179 = vld [vmem:[%s921 + $0x60] sm:$0xf]
        %v1180 = vld [vmem:[%s921 + $0x64] sm:$0xf]
        %v1181 = vld [vmem:[%s921 + $0x68] sm:$0xf]
        %v1182 = vld [vmem:[%s921 + $0x6c] sm:$0xf]
        %v1183 = vld [vmem:[%s921 + $0x70] sm:$0xf]
        %v1184 = vld [vmem:[%s921 + $0x74] sm:$0xf]
        %v1185 = vld [vmem:[%s921 + $0x78] sm:$0xf]
        %v1186 = vld [vmem:[%s921 + $0x7c] sm:$0xf]
        %v1187 = vld [vmem:[%s921 + $0x80] sm:$0xf]
        %v1188 = vld [vmem:[%s921 + $0x84] sm:$0xf]
        %v1189 = vld [vmem:[%s921 + $0x88] sm:$0xf]
        %v1190 = vld [vmem:[%s921 + $0x8c] sm:$0xf]
        %v1191 = vld [vmem:[%s921 + $0x90] sm:$0xf]
        %v1192 = vld [vmem:[%s921 + $0x94] sm:$0xf]
        %v1193 = vld [vmem:[%s928] sm:$0xff]
        %v1194 = vld [vmem:[%s928 + $0x8] sm:$0xff]
        %v1195 = vld [vmem:[%s928 + $0x10] sm:$0xff]
        %v1196 = vld [vmem:[%s928 + $0x18] sm:$0xff]
        %v1197 = vld [vmem:[%s928 + $0x20] sm:$0xff]
        %v1198 = vld [vmem:[%s928 + $0x28] sm:$0xff]
        %v1199 = vld [vmem:[%s928 + $0x30] sm:$0xff]
        %v1200 = vld [vmem:[%s928 + $0x38] sm:$0xff]
        %v1201 = vld [vmem:[%s928 + $0x40] sm:$0xff]
        %v1202 = vld [vmem:[%s928 + $0x48] sm:$0xff]
        %v1203 = vld [vmem:[%s928 + $0x50] sm:$0xff]
        %v1204 = vld [vmem:[%s928 + $0x58] sm:$0xff]
        %v1205 = vld [vmem:[%s928 + $0x60] sm:$0xff]
        %v1206 = vld [vmem:[%s928 + $0x68] sm:$0xff]
        %v1207 = vld [vmem:[%s928 + $0x70] sm:$0xff]
        %v1208 = vld [vmem:[%s928 + $0x78] sm:$0xff]
        %v1247 = vunpack.c.l.b16 %v1155
        %v1248 = vunpack.c.l.b16 %v1156
        %v1249 = vunpack.c.l.b16 %v1157
        %v1250 = vunpack.c.l.b16 %v1158
        %v1251 = vunpack.c.l.b16 %v1159
        %v1252 = vunpack.c.l.b16 %v1160
        %v1253 = vunpack.c.l.b16 %v1161
        %v1254 = vunpack.c.l.b16 %v1162
        %v1255 = vunpack.c.l.b16 %v1163
        %v1256 = vunpack.c.l.b16 %v1164
        %v1257 = vunpack.c.l.b16 %v1165
        %v1258 = vunpack.c.l.b16 %v1166
        %v1259 = vunpack.c.l.b16 %v1167
        %v1260 = vunpack.c.l.b16 %v1168
        %v1261 = vunpack.c.l.b16 %v1169
        %v1262 = vunpack.c.l.b16 %v1170
        %v1263 = vunpack.c.l.b16 %v1171
        %v1264 = vunpack.c.l.b16 %v1172
        %v1265 = vunpack.c.l.b16 %v1173
        %v1266 = vunpack.c.l.b16 %v1174
        %v1267 = vunpack.c.l.b16 %v1175
        %v1268 = vunpack.c.l.b16 %v1176
        %v1269 = vunpack.c.l.b16 %v1177
        %v1270 = vunpack.c.l.b16 %v1178
        %v1271 = vunpack.c.l.b16 %v1179
        %v1272 = vunpack.c.l.b16 %v1180
        %v1273 = vunpack.c.l.b16 %v1181
        %v1274 = vunpack.c.l.b16 %v1182
        %v1275 = vunpack.c.l.b16 %v1183
        %v1276 = vunpack.c.l.b16 %v1184
        %v1277 = vunpack.c.l.b16 %v1185
        %v1278 = vunpack.c.l.b16 %v1186
        %v1279 = vunpack.c.l.b16 %v1187
        %v1280 = vunpack.c.l.b16 %v1188
        %v1281 = vunpack.c.l.b16 %v1189
        %v1282 = vunpack.c.l.b16 %v1190
        %v1283 = vunpack.c.l.b16 %v1191
        %v1284 = vunpack.c.l.b16 %v1192
        %v1285 = vpack.c.b16 %v1248, %v1247
        %v1286 = vpack.c.b16 %v1250, %v1249
        %v1287 = vpack.c.b16 %v1252, %v1251
        %v1288 = vpack.c.b16 %v1254, %v1253
        %v1289 = vpack.c.b16 %v1256, %v1255
        %v1290 = vpack.c.b16 %v1258, %v1257
        %v1291 = vpack.c.b16 %v1260, %v1259
        %v1292 = vpack.c.b16 %v1262, %v1261
        %v1293 = vpack.c.b16 %v1264, %v1263
        %v1294 = vpack.c.b16 %v1266, %v1265
        %v1295 = vpack.c.b16 %v1268, %v1267
        %v1296 = vpack.c.b16 %v1270, %v1269
        %v1297 = vpack.c.b16 %v1272, %v1271
        %v1298 = vpack.c.b16 %v1274, %v1273
        %v1299 = vpack.c.b16 %v1276, %v1275
        %v1300 = vpack.c.b16 %v1278, %v1277
        %v1301 = vpack.c.b16 %v1280, %v1279
        %v1302 = vpack.c.b16 %v1282, %v1281
        %v1303 = vpack.c.b16 %v1284, %v1283
        %v1339 = vunpack.c.l.b16 %v1193
        %v1340 = vunpack.c.h.b16 %v1193
        %v1341 = vunpack.c.l.b16 %v1194
        %v1342 = vunpack.c.h.b16 %v1194
        %v1343 = vunpack.c.l.b16 %v1195
        %v1344 = vunpack.c.h.b16 %v1195
        %v1345 = vunpack.c.l.b16 %v1196
        %v1346 = vunpack.c.h.b16 %v1196
        %v1347 = vunpack.c.l.b16 %v1197
        %v1348 = vunpack.c.h.b16 %v1197
        %v1349 = vunpack.c.l.b16 %v1198
        %v1350 = vunpack.c.h.b16 %v1198
        %v1351 = vunpack.c.l.b16 %v1199
        %v1352 = vunpack.c.h.b16 %v1199
        %v1353 = vunpack.c.l.b16 %v1200
        %v1354 = vunpack.c.h.b16 %v1200
        %v1355 = vunpack.c.l.b16 %v1201
        %v1356 = vunpack.c.h.b16 %v1201
        %v1357 = vunpack.c.l.b16 %v1202
        %v1358 = vunpack.c.h.b16 %v1202
        %v1359 = vunpack.c.l.b16 %v1203
        %v1360 = vunpack.c.h.b16 %v1203
        %v1361 = vunpack.c.l.b16 %v1204
        %v1362 = vunpack.c.h.b16 %v1204
        %v1363 = vunpack.c.l.b16 %v1205
        %v1364 = vunpack.c.h.b16 %v1205
        %v1365 = vunpack.c.l.b16 %v1206
        %v1366 = vunpack.c.h.b16 %v1206
        %v1367 = vunpack.c.l.b16 %v1207
        %v1368 = vunpack.c.h.b16 %v1207
        %v1369 = vunpack.c.l.b16 %v1208
        %v1370 = vunpack.c.h.b16 %v1208
        %v1371 = vpack.c.b16 %v1341, %v1339
        %v1372 = vpack.c.b16 %v1342, %v1340
        %v1373 = vpack.c.b16 %v1345, %v1343
        %v1374 = vpack.c.b16 %v1346, %v1344
        %v1375 = vpack.c.b16 %v1349, %v1347
        %v1376 = vpack.c.b16 %v1350, %v1348
        %v1377 = vpack.c.b16 %v1353, %v1351
        %v1378 = vpack.c.b16 %v1354, %v1352
        %v1379 = vpack.c.b16 %v1357, %v1355
        %v1380 = vpack.c.b16 %v1358, %v1356
        %v1381 = vpack.c.b16 %v1361, %v1359
        %v1382 = vpack.c.b16 %v1362, %v1360
        %v1383 = vpack.c.b16 %v1365, %v1363
        %v1384 = vpack.c.b16 %v1366, %v1364
        %v1385 = vpack.c.b16 %v1369, %v1367
        %v1386 = vpack.c.b16 %v1370, %v1368
        %1403 = vmatprep.subr.bf16.mxu0 %v1372
        %1404 = vmatpush1.bf16.msra.mxu0 %v1371
        %1405 = vmatprep.subr.bf16.mxu0 %v1374
        %1406 = vmatpush1.bf16.msra.mxu0 %v1373
        %1407 = vmatprep.subr.bf16.mxu0 %v1376
        %1408 = vmatpush1.bf16.msra.mxu0 %v1375
        %1409 = vmatprep.subr.bf16.mxu0 %v1378
        %1410 = vmatpush1.bf16.msra.mxu0 %v1377
        %1411 = vmatprep.subr.bf16.mxu0 %v1380
        %1412 = vmatpush1.bf16.msra.mxu0 %v1379
        %1413 = vmatprep.subr.bf16.mxu0 %v1382
        %1414 = vmatpush1.bf16.msra.mxu0 %v1381
        %1415 = vmatprep.subr.bf16.mxu0 %v1384
        %1416 = vmatpush1.bf16.msra.mxu0 %v1383
        %1417 = vmatprep.subr.bf16.mxu0 %v1386
        %1418 = vmatpush1.bf16.msra.mxu0 %v1385
        %1419 = vmatprep.subr.bf16.mxu0 0
        %1420 = vmatpush1.bf16.msra.mxu0 0
        %1421 = vmatprep.subr.bf16.mxu0 0
        %1422 = vmatpush1.bf16.msra.mxu0 0
        %1423 = vmatprep.subr.bf16.mxu0 0
        %1424 = vmatpush1.bf16.msra.mxu0 0
        %1425 = vmatprep.subr.bf16.mxu0 0
        %1426 = vmatpush1.bf16.msra.mxu0 0
        %1427 = vmatprep.subr.bf16.mxu0 0
        %1428 = vmatpush1.bf16.msra.mxu0 0
        %1429 = vmatprep.subr.bf16.mxu0 0
        %1430 = vmatpush1.bf16.msra.mxu0 0
        %1431 = vmatprep.subr.bf16.mxu0 0
        %1432 = vmatpush1.bf16.msra.mxu0 0
        %1433 = vmatprep.subr.bf16.mxu0 0
        %1434 = vmatpush1.bf16.msra.mxu0 0
        %1435 = vmatprep.mubr.bf16.mxu0 0
        %1436 = vmatmul.mubr.bf16.gmra.mrb[0].mxu0 %v1285
        %v1437 = vpop.f32.mrb[0].mxu0
        %v1438 = vadd.f32 0.0, %v1437
        %v1439 = vpop.f32.mrb[0].mxu0
        %v1440 = vadd.f32 0.0, %v1439
        %v1441 = vpop.f32.mrb[0].mxu0
        %v1442 = vadd.f32 0.0, %v1441
        %v1443 = vpop.f32.mrb[0].mxu0
        %v1444 = vadd.f32 0.0, %v1443
        %1445 = vmatprep.mubr.bf16.mxu0 0
        %1446 = vmatmul.mubr.bf16.gmra.mrb[0].mxu0 %v1286
        %v1447 = vpop.f32.mrb[0].mxu0
        %v1448 = vadd.f32 0.0, %v1447
        %v1449 = vpop.f32.mrb[0].mxu0
        %v1450 = vadd.f32 0.0, %v1449
        %v1451 = vpop.f32.mrb[0].mxu0
        %v1452 = vadd.f32 0.0, %v1451
        %v1453 = vpop.f32.mrb[0].mxu0
        %v1454 = vadd.f32 0.0, %v1453
        %1455 = vmatprep.mubr.bf16.mxu0 0
        %1456 = vmatmul.mubr.bf16.gmra.mrb[0].mxu0 %v1287
        %v1457 = vpop.f32.mrb[0].mxu0
        %v1458 = vadd.f32 0.0, %v1457
        %v1459 = vpop.f32.mrb[0].mxu0
        %v1460 = vadd.f32 0.0, %v1459
        %v1461 = vpop.f32.mrb[0].mxu0
        %v1462 = vadd.f32 0.0, %v1461
        %v1463 = vpop.f32.mrb[0].mxu0
        %v1464 = vadd.f32 0.0, %v1463
        %1465 = vmatprep.mubr.bf16.mxu0 0
        %1466 = vmatmul.mubr.bf16.gmra.mrb[0].mxu0 %v1288
        %v1467 = vpop.f32.mrb[0].mxu0
        %v1468 = vadd.f32 0.0, %v1467
        %v1469 = vpop.f32.mrb[0].mxu0
        %v1470 = vadd.f32 0.0, %v1469
        %v1471 = vpop.f32.mrb[0].mxu0
        %v1472 = vadd.f32 0.0, %v1471
        %v1473 = vpop.f32.mrb[0].mxu0
        %v1474 = vadd.f32 0.0, %v1473
        %1475 = vmatprep.mubr.bf16.mxu0 0
        %1476 = vmatmul.mubr.bf16.gmra.mrb[0].mxu0 %v1289
        %v1477 = vpop.f32.mrb[0].mxu0
        %v1478 = vadd.f32 0.0, %v1477
        %v1479 = vpop.f32.mrb[0].mxu0
        %v1480 = vadd.f32 0.0, %v1479
        %v1481 = vpop.f32.mrb[0].mxu0
        %v1482 = vadd.f32 0.0, %v1481
        %v1483 = vpop.f32.mrb[0].mxu0
        %v1484 = vadd.f32 0.0, %v1483
        %1485 = vmatprep.mubr.bf16.mxu0 0
        %1486 = vmatmul.mubr.bf16.gmra.mrb[0].mxu0 %v1290
        %v1487 = vpop.f32.mrb[0].mxu0
        %v1488 = vadd.f32 0.0, %v1487
        %v1489 = vpop.f32.mrb[0].mxu0
        %v1490 = vadd.f32 0.0, %v1489
        %v1491 = vpop.f32.mrb[0].mxu0
        %v1492 = vadd.f32 0.0, %v1491
        %v1493 = vpop.f32.mrb[0].mxu0
        %v1494 = vadd.f32 0.0, %v1493
        %1495 = vmatprep.mubr.bf16.mxu0 0
        %1496 = vmatmul.mubr.bf16.gmra.mrb[0].mxu0 %v1291
        %v1497 = vpop.f32.mrb[0].mxu0
        %v1498 = vadd.f32 0.0, %v1497
        %v1499 = vpop.f32.mrb[0].mxu0
        %v1500 = vadd.f32 0.0, %v1499
        %v1501 = vpop.f32.mrb[0].mxu0
        %v1502 = vadd.f32 0.0, %v1501
        %v1503 = vpop.f32.mrb[0].mxu0
        %v1504 = vadd.f32 0.0, %v1503
        %1505 = vmatprep.mubr.bf16.mxu0 0
        %1506 = vmatmul.mubr.bf16.gmra.mrb[0].mxu0 %v1292
        %v1507 = vpop.f32.mrb[0].mxu0
        %v1508 = vadd.f32 0.0, %v1507
        %v1509 = vpop.f32.mrb[0].mxu0
        %v1510 = vadd.f32 0.0, %v1509
        %v1511 = vpop.f32.mrb[0].mxu0
        %v1512 = vadd.f32 0.0, %v1511
        %v1513 = vpop.f32.mrb[0].mxu0
        %v1514 = vadd.f32 0.0, %v1513
        %1515 = vmatprep.mubr.bf16.mxu0 0
        %1516 = vmatmul.mubr.bf16.gmra.mrb[0].mxu0 %v1293
        %v1517 = vpop.f32.mrb[0].mxu0
        %v1518 = vadd.f32 0.0, %v1517
        %v1519 = vpop.f32.mrb[0].mxu0
        %v1520 = vadd.f32 0.0, %v1519
        %v1521 = vpop.f32.mrb[0].mxu0
        %v1522 = vadd.f32 0.0, %v1521
        %v1523 = vpop.f32.mrb[0].mxu0
        %v1524 = vadd.f32 0.0, %v1523
        %1525 = vmatprep.mubr.bf16.mxu0 0
        %1526 = vmatmul.mubr.bf16.gmra.mrb[0].mxu0 %v1294
        %v1527 = vpop.f32.mrb[0].mxu0
        %v1528 = vadd.f32 0.0, %v1527
        %v1529 = vpop.f32.mrb[0].mxu0
        %v1530 = vadd.f32 0.0, %v1529
        %v1531 = vpop.f32.mrb[0].mxu0
        %v1532 = vadd.f32 0.0, %v1531
        %v1533 = vpop.f32.mrb[0].mxu0
        %v1534 = vadd.f32 0.0, %v1533
        %1535 = vmatprep.mubr.bf16.mxu0 0
        %1536 = vmatmul.mubr.bf16.gmra.mrb[0].mxu0 %v1295
        %v1537 = vpop.f32.mrb[0].mxu0
        %v1538 = vadd.f32 0.0, %v1537
        %v1539 = vpop.f32.mrb[0].mxu0
        %v1540 = vadd.f32 0.0, %v1539
        %v1541 = vpop.f32.mrb[0].mxu0
        %v1542 = vadd.f32 0.0, %v1541
        %v1543 = vpop.f32.mrb[0].mxu0
        %v1544 = vadd.f32 0.0, %v1543
        %1545 = vmatprep.mubr.bf16.mxu0 0
        %1546 = vmatmul.mubr.bf16.gmra.mrb[0].mxu0 %v1296
        %v1547 = vpop.f32.mrb[0].mxu0
        %v1548 = vadd.f32 0.0, %v1547
        %v1549 = vpop.f32.mrb[0].mxu0
        %v1550 = vadd.f32 0.0, %v1549
        %v1551 = vpop.f32.mrb[0].mxu0
        %v1552 = vadd.f32 0.0, %v1551
        %v1553 = vpop.f32.mrb[0].mxu0
        %v1554 = vadd.f32 0.0, %v1553
        %1555 = vmatprep.mubr.bf16.mxu0 0
        %1556 = vmatmul.mubr.bf16.gmra.mrb[0].mxu0 %v1297
        %v1557 = vpop.f32.mrb[0].mxu0
        %v1558 = vadd.f32 0.0, %v1557
        %v1559 = vpop.f32.mrb[0].mxu0
        %v1560 = vadd.f32 0.0, %v1559
        %v1561 = vpop.f32.mrb[0].mxu0
        %v1562 = vadd.f32 0.0, %v1561
        %v1563 = vpop.f32.mrb[0].mxu0
        %v1564 = vadd.f32 0.0, %v1563
        %1565 = vmatprep.mubr.bf16.mxu0 0
        %1566 = vmatmul.mubr.bf16.gmra.mrb[0].mxu0 %v1298
        %v1567 = vpop.f32.mrb[0].mxu0
        %v1568 = vadd.f32 0.0, %v1567
        %v1569 = vpop.f32.mrb[0].mxu0
        %v1570 = vadd.f32 0.0, %v1569
        %v1571 = vpop.f32.mrb[0].mxu0
        %v1572 = vadd.f32 0.0, %v1571
        %v1573 = vpop.f32.mrb[0].mxu0
        %v1574 = vadd.f32 0.0, %v1573
        %1575 = vmatprep.mubr.bf16.mxu0 0
        %1576 = vmatmul.mubr.bf16.gmra.mrb[0].mxu0 %v1299
        %v1577 = vpop.f32.mrb[0].mxu0
        %v1578 = vadd.f32 0.0, %v1577
        %v1579 = vpop.f32.mrb[0].mxu0
        %v1580 = vadd.f32 0.0, %v1579
        %v1581 = vpop.f32.mrb[0].mxu0
        %v1582 = vadd.f32 0.0, %v1581
        %v1583 = vpop.f32.mrb[0].mxu0
        %v1584 = vadd.f32 0.0, %v1583
        %1585 = vmatprep.mubr.bf16.mxu0 0
        %1586 = vmatmul.mubr.bf16.gmra.mrb[0].mxu0 %v1300
        %v1587 = vpop.f32.mrb[0].mxu0
        %v1588 = vadd.f32 0.0, %v1587
        %v1589 = vpop.f32.mrb[0].mxu0
        %v1590 = vadd.f32 0.0, %v1589
        %v1591 = vpop.f32.mrb[0].mxu0
        %v1592 = vadd.f32 0.0, %v1591
        %v1593 = vpop.f32.mrb[0].mxu0
        %v1594 = vadd.f32 0.0, %v1593
        %1595 = vmatprep.mubr.bf16.mxu0 0
        %1596 = vmatmul.mubr.bf16.gmra.mrb[0].mxu0 %v1301
        %v1597 = vpop.f32.mrb[0].mxu0
        %v1598 = vadd.f32 0.0, %v1597
        %v1599 = vpop.f32.mrb[0].mxu0
        %v1600 = vadd.f32 0.0, %v1599
        %v1601 = vpop.f32.mrb[0].mxu0
        %v1602 = vadd.f32 0.0, %v1601
        %v1603 = vpop.f32.mrb[0].mxu0
        %v1604 = vadd.f32 0.0, %v1603
        %1605 = vmatprep.mubr.bf16.mxu0 0
        %1606 = vmatmul.mubr.bf16.gmra.mrb[0].mxu0 %v1302
        %v1607 = vpop.f32.mrb[0].mxu0
        %v1608 = vadd.f32 0.0, %v1607
        %v1609 = vpop.f32.mrb[0].mxu0
        %v1610 = vadd.f32 0.0, %v1609
        %v1611 = vpop.f32.mrb[0].mxu0
        %v1612 = vadd.f32 0.0, %v1611
        %v1613 = vpop.f32.mrb[0].mxu0
        %v1614 = vadd.f32 0.0, %v1613
        %1615 = vmatprep.mubr.bf16.mxu0 0
        %1616 = vmatmul.mubr.bf16.gmra.mrb[0].mxu0 %v1303
        %v1617 = vpop.f32.mrb[0].mxu0
        %v1618 = vadd.f32 0.0, %v1617
        %v1619 = vpop.f32.mrb[0].mxu0
        %v1620 = vadd.f32 0.0, %v1619
        %v1621 = vpop.f32.mrb[0].mxu0
        %v1622 = vadd.f32 0.0, %v1621
        %v1623 = vpop.f32.mrb[0].mxu0
        %v1624 = vadd.f32 0.0, %v1623
        %1625 = vdwg.mxu0
        %v1626 = vadd.f32 %v1079, %v1438
        %v1627 = vadd.f32 %v1080, %v1440
        %v1628 = vadd.f32 %v1081, %v1442
        %v1629 = vadd.f32 %v1082, %v1444
        %v1630 = vadd.f32 %v1083, %v1448
        %v1631 = vadd.f32 %v1084, %v1450
        %v1632 = vadd.f32 %v1085, %v1452
        %v1633 = vadd.f32 %v1086, %v1454
        %v1634 = vadd.f32 %v1087, %v1458
        %v1635 = vadd.f32 %v1088, %v1460
        %v1636 = vadd.f32 %v1089, %v1462
        %v1637 = vadd.f32 %v1090, %v1464
        %v1638 = vadd.f32 %v1091, %v1468
        %v1639 = vadd.f32 %v1092, %v1470
        %v1640 = vadd.f32 %v1093, %v1472
        %v1641 = vadd.f32 %v1094, %v1474
        %v1642 = vadd.f32 %v1095, %v1478
        %v1643 = vadd.f32 %v1096, %v1480
        %v1644 = vadd.f32 %v1097, %v1482
        %v1645 = vadd.f32 %v1098, %v1484
        %v1646 = vadd.f32 %v1099, %v1488
        %v1647 = vadd.f32 %v1100, %v1490
        %v1648 = vadd.f32 %v1101, %v1492
        %v1649 = vadd.f32 %v1102, %v1494
        %v1650 = vadd.f32 %v1103, %v1498
        %v1651 = vadd.f32 %v1104, %v1500
        %v1652 = vadd.f32 %v1105, %v1502
        %v1653 = vadd.f32 %v1106, %v1504
        %v1654 = vadd.f32 %v1107, %v1508
        %v1655 = vadd.f32 %v1108, %v1510
        %v1656 = vadd.f32 %v1109, %v1512
        %v1657 = vadd.f32 %v1110, %v1514
        %v1658 = vadd.f32 %v1111, %v1518
        %v1659 = vadd.f32 %v1112, %v1520
        %v1660 = vadd.f32 %v1113, %v1522
        %v1661 = vadd.f32 %v1114, %v1524
        %v1662 = vadd.f32 %v1115, %v1528
        %v1663 = vadd.f32 %v1116, %v1530
        %v1664 = vadd.f32 %v1117, %v1532
        %v1665 = vadd.f32 %v1118, %v1534
        %v1666 = vadd.f32 %v1119, %v1538
        %v1667 = vadd.f32 %v1120, %v1540
        %v1668 = vadd.f32 %v1121, %v1542
        %v1669 = vadd.f32 %v1122, %v1544
        %v1670 = vadd.f32 %v1123, %v1548
        %v1671 = vadd.f32 %v1124, %v1550
        %v1672 = vadd.f32 %v1125, %v1552
        %v1673 = vadd.f32 %v1126, %v1554
        %v1674 = vadd.f32 %v1127, %v1558
        %v1675 = vadd.f32 %v1128, %v1560
        %v1676 = vadd.f32 %v1129, %v1562
        %v1677 = vadd.f32 %v1130, %v1564
        %v1678 = vadd.f32 %v1131, %v1568
        %v1679 = vadd.f32 %v1132, %v1570
        %v1680 = vadd.f32 %v1133, %v1572
        %v1681 = vadd.f32 %v1134, %v1574
        %v1682 = vadd.f32 %v1135, %v1578
        %v1683 = vadd.f32 %v1136, %v1580
        %v1684 = vadd.f32 %v1137, %v1582
        %v1685 = vadd.f32 %v1138, %v1584
        %v1686 = vadd.f32 %v1139, %v1588
        %v1687 = vadd.f32 %v1140, %v1590
        %v1688 = vadd.f32 %v1141, %v1592
        %v1689 = vadd.f32 %v1142, %v1594
        %v1690 = vadd.f32 %v1143, %v1598
        %v1691 = vadd.f32 %v1144, %v1600
        %v1692 = vadd.f32 %v1145, %v1602
        %v1693 = vadd.f32 %v1146, %v1604
        %v1694 = vadd.f32 %v1147, %v1608
        %v1695 = vadd.f32 %v1148, %v1610
        %v1696 = vadd.f32 %v1149, %v1612
        %v1697 = vadd.f32 %v1150, %v1614
        %v1698 = vadd.f32 %v1151, %v1618
        %v1699 = vadd.f32 %v1152, %v1620
        %v1700 = vadd.f32 %v1153, %v1622
        %v1701 = vadd.f32 %v1154, %v1624
        %1702 = vst [vmem:[%s959] sm:$0xff] %v1626
        %1703 = vst [vmem:[%s959 + $0x8] sm:$0xff] %v1627
        %1704 = vst [vmem:[%s959 + $0x10] sm:$0xff] %v1628
        %1705 = vst [vmem:[%s959 + $0x18] sm:$0xff] %v1629
        %1706 = vst [vmem:[%s959 + $0x20] sm:$0xff] %v1630
        %1707 = vst [vmem:[%s959 + $0x28] sm:$0xff] %v1631
        %1708 = vst [vmem:[%s959 + $0x30] sm:$0xff] %v1632
        %1709 = vst [vmem:[%s959 + $0x38] sm:$0xff] %v1633
        %1710 = vst [vmem:[%s959 + $0x40] sm:$0xff] %v1634
        %1711 = vst [vmem:[%s959 + $0x48] sm:$0xff] %v1635
        %1712 = vst [vmem:[%s959 + $0x50] sm:$0xff] %v1636
        %1713 = vst [vmem:[%s959 + $0x58] sm:$0xff] %v1637
        %1714 = vst [vmem:[%s959 + $0x60] sm:$0xff] %v1638
        %1715 = vst [vmem:[%s959 + $0x68] sm:$0xff] %v1639
        %1716 = vst [vmem:[%s959 + $0x70] sm:$0xff] %v1640
        %1717 = vst [vmem:[%s959 + $0x78] sm:$0xff] %v1641
        %1718 = vst [vmem:[%s959 + $0x80] sm:$0xff] %v1642
        %1719 = vst [vmem:[%s959 + $0x88] sm:$0xff] %v1643
        %1720 = vst [vmem:[%s959 + $0x90] sm:$0xff] %v1644
        %1721 = vst [vmem:[%s959 + $0x98] sm:$0xff] %v1645
        %1722 = vst [vmem:[%s959 + $0xa0] sm:$0xff] %v1646
        %1723 = vst [vmem:[%s959 + $0xa8] sm:$0xff] %v1647
        %1724 = vst [vmem:[%s959 + $0xb0] sm:$0xff] %v1648
        %1725 = vst [vmem:[%s959 + $0xb8] sm:$0xff] %v1649
        %1726 = vst [vmem:[%s959 + $0xc0] sm:$0xff] %v1650
        %1727 = vst [vmem:[%s959 + $0xc8] sm:$0xff] %v1651
        %1728 = vst [vmem:[%s959 + $0xd0] sm:$0xff] %v1652
        %1729 = vst [vmem:[%s959 + $0xd8] sm:$0xff] %v1653
        %1730 = vst [vmem:[%s959 + $0xe0] sm:$0xff] %v1654
        %1731 = vst [vmem:[%s959 + $0xe8] sm:$0xff] %v1655
        %1732 = vst [vmem:[%s959 + $0xf0] sm:$0xff] %v1656
        %1733 = vst [vmem:[%s959 + $0xf8] sm:$0xff] %v1657
        %1734 = vst [vmem:[%s959 + $0x100] sm:$0xff] %v1658
        %1735 = vst [vmem:[%s959 + $0x108] sm:$0xff] %v1659
        %1736 = vst [vmem:[%s959 + $0x110] sm:$0xff] %v1660
        %1737 = vst [vmem:[%s959 + $0x118] sm:$0xff] %v1661
        %1738 = vst [vmem:[%s959 + $0x120] sm:$0xff] %v1662
        %1739 = vst [vmem:[%s959 + $0x128] sm:$0xff] %v1663
        %1740 = vst [vmem:[%s959 + $0x130] sm:$0xff] %v1664
        %1741 = vst [vmem:[%s959 + $0x138] sm:$0xff] %v1665
        %1742 = vst [vmem:[%s959 + $0x140] sm:$0xff] %v1666
        %1743 = vst [vmem:[%s959 + $0x148] sm:$0xff] %v1667
        %1744 = vst [vmem:[%s959 + $0x150] sm:$0xff] %v1668
        %1745 = vst [vmem:[%s959 + $0x158] sm:$0xff] %v1669
        %1746 = vst [vmem:[%s959 + $0x160] sm:$0xff] %v1670
        %1747 = vst [vmem:[%s959 + $0x168] sm:$0xff] %v1671
        %1748 = vst [vmem:[%s959 + $0x170] sm:$0xff] %v1672
        %1749 = vst [vmem:[%s959 + $0x178] sm:$0xff] %v1673
        %1750 = vst [vmem:[%s959 + $0x180] sm:$0xff] %v1674
        %1751 = vst [vmem:[%s959 + $0x188] sm:$0xff] %v1675
        %1752 = vst [vmem:[%s959 + $0x190] sm:$0xff] %v1676
        %1753 = vst [vmem:[%s959 + $0x198] sm:$0xff] %v1677
        %1754 = vst [vmem:[%s959 + $0x1a0] sm:$0xff] %v1678
        %1755 = vst [vmem:[%s959 + $0x1a8] sm:$0xff] %v1679
        %1756 = vst [vmem:[%s959 + $0x1b0] sm:$0xff] %v1680
        %1757 = vst [vmem:[%s959 + $0x1b8] sm:$0xff] %v1681
        %1758 = vst [vmem:[%s959 + $0x1c0] sm:$0xff] %v1682
        %1759 = vst [vmem:[%s959 + $0x1c8] sm:$0xff] %v1683
        %1760 = vst [vmem:[%s959 + $0x1d0] sm:$0xff] %v1684
        %1761 = vst [vmem:[%s959 + $0x1d8] sm:$0xff] %v1685
        %1762 = vst [vmem:[%s959 + $0x1e0] sm:$0xff] %v1686
        %1763 = vst [vmem:[%s959 + $0x1e8] sm:$0xff] %v1687
        %1764 = vst [vmem:[%s959 + $0x1f0] sm:$0xff] %v1688
        %1765 = vst [vmem:[%s959 + $0x1f8] sm:$0xff] %v1689
        %1766 = vst [vmem:[%s959 + $0x200] sm:$0xff] %v1690
        %1767 = vst [vmem:[%s959 + $0x208] sm:$0xff] %v1691
        %1768 = vst [vmem:[%s959 + $0x210] sm:$0xff] %v1692
        %1769 = vst [vmem:[%s959 + $0x218] sm:$0xff] %v1693
        %1770 = vst [vmem:[%s959 + $0x220] sm:$0xff] %v1694
        %1771 = vst [vmem:[%s959 + $0x228] sm:$0xff] %v1695
        %1772 = vst [vmem:[%s959 + $0x230] sm:$0xff] %v1696
        %1773 = vst [vmem:[%s959 + $0x238] sm:$0xff] %v1697
        %1774 = vst [vmem:[%s959 + $0x240] sm:$0xff] %v1698
        %1775 = vst [vmem:[%s959 + $0x248] sm:$0xff] %v1699
        %1776 = vst [vmem:[%s959 + $0x250] sm:$0xff] %v1700
        %1777 = vst [vmem:[%s959 + $0x258] sm:$0xff] %v1701
        %s1778 = sand.u32 %s125, 1
        %s1779 = sand.u32 %s125, 1
        %s1780 = smul.addr %s1779, 608
        %s1781 = scalar_lea.vmem [#allocation4], %s1780
        // Predicated region
        $region144: #{_linear_2d.1} parent=130 // pred_check
          %p1782 = pneg %p135
        $region145: #{_linear_2d.1} parent=130 // pred_check_branch
          %1784 = sbr.rel (%p1782) target = $region147
        $region146: #{_linear_2d.1} parent=130 // pred_region
          %s1785 = smul.u32 38, %s19
          %s1786 = smul.u32 2, %s20
          %s1787 = ssub.s32 3, %s1786
          %p1788 = scmp.lt.s32.totalorder %s1787, 2
          %s1789 = scalar_select %p1788, %s1787, 2
          %s1790 = smul.u32 4864, %s1789
          %p1791 = scmp.ne.s32.totalorder 0, %s1790
          %s1792 = smul.addr %s1785, 3
          %s1793 = sadd.s32 %s1786, %s1792
          %s1794 = smul.addr %s1793, 8
          %s1795 = scalar_lea.vmem %s3, %s1794
          %s1796 = smul.u32 %s1789, 8
          // Predicated region
          $region148: #{_linear_2d.1} parent=146 // pred_check
            %p1797 = pneg %p1791
          $region149: #{_linear_2d.1} parent=146 // pred_check_branch
            %1799 = sbr.rel (%p1797) target = $region151
          $region150: #{_linear_2d.1} parent=146 // pred_region
            %p1800 = scmp.lt.u32.totalorder %s1796, 8
            %p1801 = pneg %p1800
            // Predicated region
            $region152: #{_linear_2d.1} parent=150 // pred_check
              _
            $region153: #{_linear_2d.1} parent=150 // pred_check_branch
              %1803 = sbr.rel (%p1800) target = $region155
            $region154: #{_linear_2d.1} parent=150 // pred_region
              %s1892 = sand.u32 %s1796, 7
              %p1893 = scmp.eq.s32.totalorder %s1892, 0
              // Predicated region
              $region167: #{_linear_2d.1} parent=154 // pred_check
                %p1894 = pneg %p1893
              $region168: #{_linear_2d.1} parent=154 // pred_check_branch
                %1896 = sbr.rel (%p1894) target = $region170
              $region169: #{_linear_2d.1} parent=154 // pred_region
                %s1897 = sshrl.u32 %s1796, 3
                %s1898 = sshrl.u32 %s1897, 1
                // While loop
                $region171: #{_linear_2d.1} parent=169 // loop_pre_header
                  _
                $region172: #{_linear_2d.1} parent=169 // loop_header
                  %s1902 = sphi 0, %s1904
                  %p1903 = scmp.ge.s32.totalorder %s1902, %s1898
                  %s1907 = sphi 0, %s2064
                  %s1908 = sphi %s1781, %s2067
                  %s1909 = sphi %s1795, %s2068
                $region173: #{_linear_2d.1} parent=169 // loop_header_branch
                  %1906 = sbr.rel (%p1903) target = $region177
                $region174: #{_linear_2d.1} parent=169 // loop_body
                  %v1910 = vld [vmem:[%s1908] sm:$0xff]
                  %1911 = vst [vmem:[%s1909] sm:$0xff] %v1910
                  %v1912 = vld [vmem:[%s1908 + $0x8] sm:$0xff]
                  %1913 = vst [vmem:[%s1909 + $0x8] sm:$0xff] %v1912
                  %v1914 = vld [vmem:[%s1908 + $0x10] sm:$0xff]
                  %1915 = vst [vmem:[%s1909 + $0x18] sm:$0xff] %v1914
                  %v1916 = vld [vmem:[%s1908 + $0x18] sm:$0xff]
                  %1917 = vst [vmem:[%s1909 + $0x20] sm:$0xff] %v1916
                  %v1918 = vld [vmem:[%s1908 + $0x20] sm:$0xff]
                  %1919 = vst [vmem:[%s1909 + $0x30] sm:$0xff] %v1918
                  %v1920 = vld [vmem:[%s1908 + $0x28] sm:$0xff]
                  %1921 = vst [vmem:[%s1909 + $0x38] sm:$0xff] %v1920
                  %v1922 = vld [vmem:[%s1908 + $0x30] sm:$0xff]
                  %1923 = vst [vmem:[%s1909 + $0x48] sm:$0xff] %v1922
                  %v1924 = vld [vmem:[%s1908 + $0x38] sm:$0xff]
                  %1925 = vst [vmem:[%s1909 + $0x50] sm:$0xff] %v1924
                  %v1926 = vld [vmem:[%s1908 + $0x40] sm:$0xff]
                  %1927 = vst [vmem:[%s1909 + $0x60] sm:$0xff] %v1926
                  %v1928 = vld [vmem:[%s1908 + $0x48] sm:$0xff]
                  %1929 = vst [vmem:[%s1909 + $0x68] sm:$0xff] %v1928
                  %v1930 = vld [vmem:[%s1908 + $0x50] sm:$0xff]
                  %1931 = vst [vmem:[%s1909 + $0x78] sm:$0xff] %v1930
                  %v1932 = vld [vmem:[%s1908 + $0x58] sm:$0xff]
                  %1933 = vst [vmem:[%s1909 + $0x80] sm:$0xff] %v1932
                  %v1934 = vld [vmem:[%s1908 + $0x60] sm:$0xff]
                  %1935 = vst [vmem:[%s1909 + $0x90] sm:$0xff] %v1934
                  %v1936 = vld [vmem:[%s1908 + $0x68] sm:$0xff]
                  %1937 = vst [vmem:[%s1909 + $0x98] sm:$0xff] %v1936
                  %v1938 = vld [vmem:[%s1908 + $0x70] sm:$0xff]
                  %1939 = vst [vmem:[%s1909 + $0xa8] sm:$0xff] %v1938
                  %v1940 = vld [vmem:[%s1908 + $0x78] sm:$0xff]
                  %1941 = vst [vmem:[%s1909 + $0xb0] sm:$0xff] %v1940
                  %v1942 = vld [vmem:[%s1908 + $0x80] sm:$0xff]
                  %1943 = vst [vmem:[%s1909 + $0xc0] sm:$0xff] %v1942
                  %v1944 = vld [vmem:[%s1908 + $0x88] sm:$0xff]
                  %1945 = vst [vmem:[%s1909 + $0xc8] sm:$0xff] %v1944
                  %v1946 = vld [vmem:[%s1908 + $0x90] sm:$0xff]
                  %1947 = vst [vmem:[%s1909 + $0xd8] sm:$0xff] %v1946
                  %v1948 = vld [vmem:[%s1908 + $0x98] sm:$0xff]
                  %1949 = vst [vmem:[%s1909 + $0xe0] sm:$0xff] %v1948
                  %v1950 = vld [vmem:[%s1908 + $0xa0] sm:$0xff]
                  %1951 = vst [vmem:[%s1909 + $0xf0] sm:$0xff] %v1950
                  %v1952 = vld [vmem:[%s1908 + $0xa8] sm:$0xff]
                  %1953 = vst [vmem:[%s1909 + $0xf8] sm:$0xff] %v1952
                  %v1954 = vld [vmem:[%s1908 + $0xb0] sm:$0xff]
                  %1955 = vst [vmem:[%s1909 + $0x108] sm:$0xff] %v1954
                  %v1956 = vld [vmem:[%s1908 + $0xb8] sm:$0xff]
                  %1957 = vst [vmem:[%s1909 + $0x110] sm:$0xff] %v1956
                  %v1958 = vld [vmem:[%s1908 + $0xc0] sm:$0xff]
                  %1959 = vst [vmem:[%s1909 + $0x120] sm:$0xff] %v1958
                  %v1960 = vld [vmem:[%s1908 + $0xc8] sm:$0xff]
                  %1961 = vst [vmem:[%s1909 + $0x128] sm:$0xff] %v1960
                  %v1962 = vld [vmem:[%s1908 + $0xd0] sm:$0xff]
                  %1963 = vst [vmem:[%s1909 + $0x138] sm:$0xff] %v1962
                  %v1964 = vld [vmem:[%s1908 + $0xd8] sm:$0xff]
                  %1965 = vst [vmem:[%s1909 + $0x140] sm:$0xff] %v1964
                  %v1966 = vld [vmem:[%s1908 + $0xe0] sm:$0xff]
                  %1967 = vst [vmem:[%s1909 + $0x150] sm:$0xff] %v1966
                  %v1968 = vld [vmem:[%s1908 + $0xe8] sm:$0xff]
                  %1969 = vst [vmem:[%s1909 + $0x158] sm:$0xff] %v1968
                  %v1970 = vld [vmem:[%s1908 + $0xf0] sm:$0xff]
                  %1971 = vst [vmem:[%s1909 + $0x168] sm:$0xff] %v1970
                  %v1972 = vld [vmem:[%s1908 + $0xf8] sm:$0xff]
                  %1973 = vst [vmem:[%s1909 + $0x170] sm:$0xff] %v1972
                  %v1974 = vld [vmem:[%s1908 + $0x100] sm:$0xff]
                  %1975 = vst [vmem:[%s1909 + $0x180] sm:$0xff] %v1974
                  %v1976 = vld [vmem:[%s1908 + $0x108] sm:$0xff]
                  %1977 = vst [vmem:[%s1909 + $0x188] sm:$0xff] %v1976
                  %v1978 = vld [vmem:[%s1908 + $0x110] sm:$0xff]
                  %1979 = vst [vmem:[%s1909 + $0x198] sm:$0xff] %v1978
                  %v1980 = vld [vmem:[%s1908 + $0x118] sm:$0xff]
                  %1981 = vst [vmem:[%s1909 + $0x1a0] sm:$0xff] %v1980
                  %v1982 = vld [vmem:[%s1908 + $0x120] sm:$0xff]
                  %1983 = vst [vmem:[%s1909 + $0x1b0] sm:$0xff] %v1982
                  %v1984 = vld [vmem:[%s1908 + $0x128] sm:$0xff]
                  %1985 = vst [vmem:[%s1909 + $0x1b8] sm:$0xff] %v1984
                  %v1986 = vld [vmem:[%s1908 + $0x130] sm:$0xff]
                  %1987 = vst [vmem:[%s1909 + $0x1c8] sm:$0xff] %v1986
                  %v1988 = vld [vmem:[%s1908 + $0x138] sm:$0xff]
                  %1989 = vst [vmem:[%s1909 + $0x1d0] sm:$0xff] %v1988
                  %v1990 = vld [vmem:[%s1908 + $0x140] sm:$0xff]
                  %1991 = vst [vmem:[%s1909 + $0x1e0] sm:$0xff] %v1990
                  %v1992 = vld [vmem:[%s1908 + $0x148] sm:$0xff]
                  %1993 = vst [vmem:[%s1909 + $0x1e8] sm:$0xff] %v1992
                  %v1994 = vld [vmem:[%s1908 + $0x150] sm:$0xff]
                  %1995 = vst [vmem:[%s1909 + $0x1f8] sm:$0xff] %v1994
                  %v1996 = vld [vmem:[%s1908 + $0x158] sm:$0xff]
                  %1997 = vst [vmem:[%s1909 + $0x200] sm:$0xff] %v1996
                  %v1998 = vld [vmem:[%s1908 + $0x160] sm:$0xff]
                  %1999 = vst [vmem:[%s1909 + $0x210] sm:$0xff] %v1998
                  %v2000 = vld [vmem:[%s1908 + $0x168] sm:$0xff]
                  %2001 = vst [vmem:[%s1909 + $0x218] sm:$0xff] %v2000
                  %v2002 = vld [vmem:[%s1908 + $0x170] sm:$0xff]
                  %2003 = vst [vmem:[%s1909 + $0x228] sm:$0xff] %v2002
                  %v2004 = vld [vmem:[%s1908 + $0x178] sm:$0xff]
                  %2005 = vst [vmem:[%s1909 + $0x230] sm:$0xff] %v2004
                  %v2006 = vld [vmem:[%s1908 + $0x180] sm:$0xff]
                  %2007 = vst [vmem:[%s1909 + $0x240] sm:$0xff] %v2006
                  %v2008 = vld [vmem:[%s1908 + $0x188] sm:$0xff]
                  %2009 = vst [vmem:[%s1909 + $0x248] sm:$0xff] %v2008
                  %v2010 = vld [vmem:[%s1908 + $0x190] sm:$0xff]
                  %2011 = vst [vmem:[%s1909 + $0x258] sm:$0xff] %v2010
                  %v2012 = vld [vmem:[%s1908 + $0x198] sm:$0xff]
                  %2013 = vst [vmem:[%s1909 + $0x260] sm:$0xff] %v2012
                  %v2014 = vld [vmem:[%s1908 + $0x1a0] sm:$0xff]
                  %2015 = vst [vmem:[%s1909 + $0x270] sm:$0xff] %v2014
                  %v2016 = vld [vmem:[%s1908 + $0x1a8] sm:$0xff]
                  %2017 = vst [vmem:[%s1909 + $0x278] sm:$0xff] %v2016
                  %v2018 = vld [vmem:[%s1908 + $0x1b0] sm:$0xff]
                  %2019 = vst [vmem:[%s1909 + $0x288] sm:$0xff] %v2018
                  %v2020 = vld [vmem:[%s1908 + $0x1b8] sm:$0xff]
                  %2021 = vst [vmem:[%s1909 + $0x290] sm:$0xff] %v2020
                  %v2022 = vld [vmem:[%s1908 + $0x1c0] sm:$0xff]
                  %2023 = vst [vmem:[%s1909 + $0x2a0] sm:$0xff] %v2022
                  %v2024 = vld [vmem:[%s1908 + $0x1c8] sm:$0xff]
                  %2025 = vst [vmem:[%s1909 + $0x2a8] sm:$0xff] %v2024
                  %v2026 = vld [vmem:[%s1908 + $0x1d0] sm:$0xff]
                  %2027 = vst [vmem:[%s1909 + $0x2b8] sm:$0xff] %v2026
                  %v2028 = vld [vmem:[%s1908 + $0x1d8] sm:$0xff]
                  %2029 = vst [vmem:[%s1909 + $0x2c0] sm:$0xff] %v2028
                  %v2030 = vld [vmem:[%s1908 + $0x1e0] sm:$0xff]
                  %2031 = vst [vmem:[%s1909 + $0x2d0] sm:$0xff] %v2030
                  %v2032 = vld [vmem:[%s1908 + $0x1e8] sm:$0xff]
                  %2033 = vst [vmem:[%s1909 + $0x2d8] sm:$0xff] %v2032
                  %v2034 = vld [vmem:[%s1908 + $0x1f0] sm:$0xff]
                  %2035 = vst [vmem:[%s1909 + $0x2e8] sm:$0xff] %v2034
                  %v2036 = vld [vmem:[%s1908 + $0x1f8] sm:$0xff]
                  %2037 = vst [vmem:[%s1909 + $0x2f0] sm:$0xff] %v2036
                  %v2038 = vld [vmem:[%s1908 + $0x200] sm:$0xff]
                  %2039 = vst [vmem:[%s1909 + $0x300] sm:$0xff] %v2038
                  %v2040 = vld [vmem:[%s1908 + $0x208] sm:$0xff]
                  %2041 = vst [vmem:[%s1909 + $0x308] sm:$0xff] %v2040
                  %v2042 = vld [vmem:[%s1908 + $0x210] sm:$0xff]
                  %2043 = vst [vmem:[%s1909 + $0x318] sm:$0xff] %v2042
                  %v2044 = vld [vmem:[%s1908 + $0x218] sm:$0xff]
                  %2045 = vst [vmem:[%s1909 + $0x320] sm:$0xff] %v2044
                  %v2046 = vld [vmem:[%s1908 + $0x220] sm:$0xff]
                  %2047 = vst [vmem:[%s1909 + $0x330] sm:$0xff] %v2046
                  %v2048 = vld [vmem:[%s1908 + $0x228] sm:$0xff]
                  %2049 = vst [vmem:[%s1909 + $0x338] sm:$0xff] %v2048
                  %v2050 = vld [vmem:[%s1908 + $0x230] sm:$0xff]
                  %2051 = vst [vmem:[%s1909 + $0x348] sm:$0xff] %v2050
                  %v2052 = vld [vmem:[%s1908 + $0x238] sm:$0xff]
                  %2053 = vst [vmem:[%s1909 + $0x350] sm:$0xff] %v2052
                  %v2054 = vld [vmem:[%s1908 + $0x240] sm:$0xff]
                  %2055 = vst [vmem:[%s1909 + $0x360] sm:$0xff] %v2054
                  %v2056 = vld [vmem:[%s1908 + $0x248] sm:$0xff]
                  %2057 = vst [vmem:[%s1909 + $0x368] sm:$0xff] %v2056
                  %v2058 = vld [vmem:[%s1908 + $0x250] sm:$0xff]
                  %2059 = vst [vmem:[%s1909 + $0x378] sm:$0xff] %v2058
                  %v2060 = vld [vmem:[%s1908 + $0x258] sm:$0xff]
                  %2061 = vst [vmem:[%s1909 + $0x380] sm:$0xff] %v2060
                  %s2062 = sadd.s32 1, %s1907
                  %p2063 = scmp.ge.s32.totalorder %s2062, %s1898
                  %s2064 = scalar_select %p2063, 0, %s2062
                  %s2065 = smul.u32 %s2064, 16
                  %s2066 = smul.u32 %s2064, 16
                  %s2067 = scalar_lea.vmem %s1781, %s2065 [#allocation4]
                  %s2068 = scalar_lea.vmem %s1795, %s2066
                $region175: #{_linear_2d.1} parent=169 // loop_footer
                  %s1904 = sadd.s32 %s1902, 1
                $region176: #{_linear_2d.1} parent=169 // loop_footer_branch
                  %1901 = sbr.rel target = $region172
                $region177: #{_linear_2d.1} parent=169 // loop_exit
                  _
                %s2069 = sshrl.u32 %s1897, 1
                %s2070 = sand.u32 %s1897, 1
                %s2071 = smul.u32 %s2069, 2
                %s2072 = smul.u32 128, %s2071
                %s2073 = sshra.s32 %s2072, 4
                %s2074 = scalar_lea.vmem %s1781, %s2073 [#allocation4]
                %s2075 = smul.u32 128, %s2071
                %s2076 = sshra.s32 %s2075, 4
                %s2077 = scalar_lea.vmem %s1795, %s2076
                // While loop
                $region178: #{_linear_2d.1} parent=169 // loop_pre_header
                  _
                $region179: #{_linear_2d.1} parent=169 // loop_header
                  %s2081 = sphi 0, %s2083
                  %p2082 = scmp.ge.s32.totalorder %s2081, %s2070
                  %s2086 = sphi 0, %s2167
                  %s2087 = sphi %s2074, %s2170
                  %s2088 = sphi %s2077, %s2171
                $region180: #{_linear_2d.1} parent=169 // loop_header_branch
                  %2085 = sbr.rel (%p2082) target = $region184
                $region181: #{_linear_2d.1} parent=169 // loop_body
                  %v2089 = vld [vmem:[%s2087] sm:$0xff]
                  %2090 = vst [vmem:[%s2088] sm:$0xff] %v2089
                  %v2091 = vld [vmem:[%s2087 + $0x10] sm:$0xff]
                  %2092 = vst [vmem:[%s2088 + $0x18] sm:$0xff] %v2091
                  %v2093 = vld [vmem:[%s2087 + $0x20] sm:$0xff]
                  %2094 = vst [vmem:[%s2088 + $0x30] sm:$0xff] %v2093
                  %v2095 = vld [vmem:[%s2087 + $0x30] sm:$0xff]
                  %2096 = vst [vmem:[%s2088 + $0x48] sm:$0xff] %v2095
                  %v2097 = vld [vmem:[%s2087 + $0x40] sm:$0xff]
                  %2098 = vst [vmem:[%s2088 + $0x60] sm:$0xff] %v2097
                  %v2099 = vld [vmem:[%s2087 + $0x50] sm:$0xff]
                  %2100 = vst [vmem:[%s2088 + $0x78] sm:$0xff] %v2099
                  %v2101 = vld [vmem:[%s2087 + $0x60] sm:$0xff]
                  %2102 = vst [vmem:[%s2088 + $0x90] sm:$0xff] %v2101
                  %v2103 = vld [vmem:[%s2087 + $0x70] sm:$0xff]
                  %2104 = vst [vmem:[%s2088 + $0xa8] sm:$0xff] %v2103
                  %v2105 = vld [vmem:[%s2087 + $0x80] sm:$0xff]
                  %2106 = vst [vmem:[%s2088 + $0xc0] sm:$0xff] %v2105
                  %v2107 = vld [vmem:[%s2087 + $0x90] sm:$0xff]
                  %2108 = vst [vmem:[%s2088 + $0xd8] sm:$0xff] %v2107
                  %v2109 = vld [vmem:[%s2087 + $0xa0] sm:$0xff]
                  %2110 = vst [vmem:[%s2088 + $0xf0] sm:$0xff] %v2109
                  %v2111 = vld [vmem:[%s2087 + $0xb0] sm:$0xff]
                  %2112 = vst [vmem:[%s2088 + $0x108] sm:$0xff] %v2111
                  %v2113 = vld [vmem:[%s2087 + $0xc0] sm:$0xff]
                  %2114 = vst [vmem:[%s2088 + $0x120] sm:$0xff] %v2113
                  %v2115 = vld [vmem:[%s2087 + $0xd0] sm:$0xff]
                  %2116 = vst [vmem:[%s2088 + $0x138] sm:$0xff] %v2115
                  %v2117 = vld [vmem:[%s2087 + $0xe0] sm:$0xff]
                  %2118 = vst [vmem:[%s2088 + $0x150] sm:$0xff] %v2117
                  %v2119 = vld [vmem:[%s2087 + $0xf0] sm:$0xff]
                  %2120 = vst [vmem:[%s2088 + $0x168] sm:$0xff] %v2119
                  %v2121 = vld [vmem:[%s2087 + $0x100] sm:$0xff]
                  %2122 = vst [vmem:[%s2088 + $0x180] sm:$0xff] %v2121
                  %v2123 = vld [vmem:[%s2087 + $0x110] sm:$0xff]
                  %2124 = vst [vmem:[%s2088 + $0x198] sm:$0xff] %v2123
                  %v2125 = vld [vmem:[%s2087 + $0x120] sm:$0xff]
                  %2126 = vst [vmem:[%s2088 + $0x1b0] sm:$0xff] %v2125
                  %v2127 = vld [vmem:[%s2087 + $0x130] sm:$0xff]
                  %2128 = vst [vmem:[%s2088 + $0x1c8] sm:$0xff] %v2127
                  %v2129 = vld [vmem:[%s2087 + $0x140] sm:$0xff]
                  %2130 = vst [vmem:[%s2088 + $0x1e0] sm:$0xff] %v2129
                  %v2131 = vld [vmem:[%s2087 + $0x150] sm:$0xff]
                  %2132 = vst [vmem:[%s2088 + $0x1f8] sm:$0xff] %v2131
                  %v2133 = vld [vmem:[%s2087 + $0x160] sm:$0xff]
                  %2134 = vst [vmem:[%s2088 + $0x210] sm:$0xff] %v2133
                  %v2135 = vld [vmem:[%s2087 + $0x170] sm:$0xff]
                  %2136 = vst [vmem:[%s2088 + $0x228] sm:$0xff] %v2135
                  %v2137 = vld [vmem:[%s2087 + $0x180] sm:$0xff]
                  %2138 = vst [vmem:[%s2088 + $0x240] sm:$0xff] %v2137
                  %v2139 = vld [vmem:[%s2087 + $0x190] sm:$0xff]
                  %2140 = vst [vmem:[%s2088 + $0x258] sm:$0xff] %v2139
                  %v2141 = vld [vmem:[%s2087 + $0x1a0] sm:$0xff]
                  %2142 = vst [vmem:[%s2088 + $0x270] sm:$0xff] %v2141
                  %v2143 = vld [vmem:[%s2087 + $0x1b0] sm:$0xff]
                  %2144 = vst [vmem:[%s2088 + $0x288] sm:$0xff] %v2143
                  %v2145 = vld [vmem:[%s2087 + $0x1c0] sm:$0xff]
                  %2146 = vst [vmem:[%s2088 + $0x2a0] sm:$0xff] %v2145
                  %v2147 = vld [vmem:[%s2087 + $0x1d0] sm:$0xff]
                  %2148 = vst [vmem:[%s2088 + $0x2b8] sm:$0xff] %v2147
                  %v2149 = vld [vmem:[%s2087 + $0x1e0] sm:$0xff]
                  %2150 = vst [vmem:[%s2088 + $0x2d0] sm:$0xff] %v2149
                  %v2151 = vld [vmem:[%s2087 + $0x1f0] sm:$0xff]
                  %2152 = vst [vmem:[%s2088 + $0x2e8] sm:$0xff] %v2151
                  %v2153 = vld [vmem:[%s2087 + $0x200] sm:$0xff]
                  %2154 = vst [vmem:[%s2088 + $0x300] sm:$0xff] %v2153
                  %v2155 = vld [vmem:[%s2087 + $0x210] sm:$0xff]
                  %2156 = vst [vmem:[%s2088 + $0x318] sm:$0xff] %v2155
                  %v2157 = vld [vmem:[%s2087 + $0x220] sm:$0xff]
                  %2158 = vst [vmem:[%s2088 + $0x330] sm:$0xff] %v2157
                  %v2159 = vld [vmem:[%s2087 + $0x230] sm:$0xff]
                  %2160 = vst [vmem:[%s2088 + $0x348] sm:$0xff] %v2159
                  %v2161 = vld [vmem:[%s2087 + $0x240] sm:$0xff]
                  %2162 = vst [vmem:[%s2088 + $0x360] sm:$0xff] %v2161
                  %v2163 = vld [vmem:[%s2087 + $0x250] sm:$0xff]
                  %2164 = vst [vmem:[%s2088 + $0x378] sm:$0xff] %v2163
                  %s2165 = sadd.s32 1, %s2086
                  %p2166 = scmp.ge.s32.totalorder %s2165, %s2070
                  %s2167 = scalar_select %p2166, 0, %s2165
                  %s2168 = smul.u32 %s2167, 8
                  %s2169 = smul.u32 %s2167, 8
                  %s2170 = scalar_lea.vmem %s2074, %s2168 [#allocation4]
                  %s2171 = scalar_lea.vmem %s2077, %s2169
                $region182: #{_linear_2d.1} parent=169 // loop_footer
                  %s2083 = sadd.s32 %s2081, 1
                $region183: #{_linear_2d.1} parent=169 // loop_footer_branch
                  %2080 = sbr.rel target = $region179
                $region184: #{_linear_2d.1} parent=169 // loop_exit
                  _
              $region170: #{_linear_2d.1} parent=154 // pred_fallthru
                _
              %p2172 = pneg %p1893
              // Predicated region
              $region185: #{_linear_2d.1} parent=154 // pred_check
                _
              $region186: #{_linear_2d.1} parent=154 // pred_check_branch
                %2174 = sbr.rel (%p1893) target = $region188
              $region187: #{_linear_2d.1} parent=154 // pred_region
                %s2175 = sand.u32 %s1796, 7
                %s2176 = ssub.s32 %s1796, %s2175
                %s2177 = scalar_lea.vmem %s1781, %s2176 [#allocation4]
                %s2178 = ssub.s32 %s1796, %s2175
                %s2179 = scalar_lea.vmem %s1795, %s2178
                %s2180 = sshrl.u32 %s1796, 3
                %s2181 = sshrl.u32 %s2180, 1
                // While loop
                $region189: #{_linear_2d.1} parent=187 // loop_pre_header
                  _
                $region190: #{_linear_2d.1} parent=187 // loop_header
                  %s2185 = sphi 0, %s2187
                  %p2186 = scmp.ge.s32.totalorder %s2185, %s2181
                  %s2190 = sphi 0, %s2347
                  %s2191 = sphi %s1781, %s2350
                  %s2192 = sphi %s1795, %s2351
                $region191: #{_linear_2d.1} parent=187 // loop_header_branch
                  %2189 = sbr.rel (%p2186) target = $region195
                $region192: #{_linear_2d.1} parent=187 // loop_body
                  %v2193 = vld [vmem:[%s2191] sm:$0xff]
                  %2194 = vst [vmem:[%s2192] sm:$0xff] %v2193
                  %v2195 = vld [vmem:[%s2191 + $0x8] sm:$0xff]
                  %2196 = vst [vmem:[%s2192 + $0x8] sm:$0xff] %v2195
                  %v2197 = vld [vmem:[%s2191 + $0x10] sm:$0xff]
                  %2198 = vst [vmem:[%s2192 + $0x18] sm:$0xff] %v2197
                  %v2199 = vld [vmem:[%s2191 + $0x18] sm:$0xff]
                  %2200 = vst [vmem:[%s2192 + $0x20] sm:$0xff] %v2199
                  %v2201 = vld [vmem:[%s2191 + $0x20] sm:$0xff]
                  %2202 = vst [vmem:[%s2192 + $0x30] sm:$0xff] %v2201
                  %v2203 = vld [vmem:[%s2191 + $0x28] sm:$0xff]
                  %2204 = vst [vmem:[%s2192 + $0x38] sm:$0xff] %v2203
                  %v2205 = vld [vmem:[%s2191 + $0x30] sm:$0xff]
                  %2206 = vst [vmem:[%s2192 + $0x48] sm:$0xff] %v2205
                  %v2207 = vld [vmem:[%s2191 + $0x38] sm:$0xff]
                  %2208 = vst [vmem:[%s2192 + $0x50] sm:$0xff] %v2207
                  %v2209 = vld [vmem:[%s2191 + $0x40] sm:$0xff]
                  %2210 = vst [vmem:[%s2192 + $0x60] sm:$0xff] %v2209
                  %v2211 = vld [vmem:[%s2191 + $0x48] sm:$0xff]
                  %2212 = vst [vmem:[%s2192 + $0x68] sm:$0xff] %v2211
                  %v2213 = vld [vmem:[%s2191 + $0x50] sm:$0xff]
                  %2214 = vst [vmem:[%s2192 + $0x78] sm:$0xff] %v2213
                  %v2215 = vld [vmem:[%s2191 + $0x58] sm:$0xff]
                  %2216 = vst [vmem:[%s2192 + $0x80] sm:$0xff] %v2215
                  %v2217 = vld [vmem:[%s2191 + $0x60] sm:$0xff]
                  %2218 = vst [vmem:[%s2192 + $0x90] sm:$0xff] %v2217
                  %v2219 = vld [vmem:[%s2191 + $0x68] sm:$0xff]
                  %2220 = vst [vmem:[%s2192 + $0x98] sm:$0xff] %v2219
                  %v2221 = vld [vmem:[%s2191 + $0x70] sm:$0xff]
                  %2222 = vst [vmem:[%s2192 + $0xa8] sm:$0xff] %v2221
                  %v2223 = vld [vmem:[%s2191 + $0x78] sm:$0xff]
                  %2224 = vst [vmem:[%s2192 + $0xb0] sm:$0xff] %v2223
                  %v2225 = vld [vmem:[%s2191 + $0x80] sm:$0xff]
                  %2226 = vst [vmem:[%s2192 + $0xc0] sm:$0xff] %v2225
                  %v2227 = vld [vmem:[%s2191 + $0x88] sm:$0xff]
                  %2228 = vst [vmem:[%s2192 + $0xc8] sm:$0xff] %v2227
                  %v2229 = vld [vmem:[%s2191 + $0x90] sm:$0xff]
                  %2230 = vst [vmem:[%s2192 + $0xd8] sm:$0xff] %v2229
                  %v2231 = vld [vmem:[%s2191 + $0x98] sm:$0xff]
                  %2232 = vst [vmem:[%s2192 + $0xe0] sm:$0xff] %v2231
                  %v2233 = vld [vmem:[%s2191 + $0xa0] sm:$0xff]
                  %2234 = vst [vmem:[%s2192 + $0xf0] sm:$0xff] %v2233
                  %v2235 = vld [vmem:[%s2191 + $0xa8] sm:$0xff]
                  %2236 = vst [vmem:[%s2192 + $0xf8] sm:$0xff] %v2235
                  %v2237 = vld [vmem:[%s2191 + $0xb0] sm:$0xff]
                  %2238 = vst [vmem:[%s2192 + $0x108] sm:$0xff] %v2237
                  %v2239 = vld [vmem:[%s2191 + $0xb8] sm:$0xff]
                  %2240 = vst [vmem:[%s2192 + $0x110] sm:$0xff] %v2239
                  %v2241 = vld [vmem:[%s2191 + $0xc0] sm:$0xff]
                  %2242 = vst [vmem:[%s2192 + $0x120] sm:$0xff] %v2241
                  %v2243 = vld [vmem:[%s2191 + $0xc8] sm:$0xff]
                  %2244 = vst [vmem:[%s2192 + $0x128] sm:$0xff] %v2243
                  %v2245 = vld [vmem:[%s2191 + $0xd0] sm:$0xff]
                  %2246 = vst [vmem:[%s2192 + $0x138] sm:$0xff] %v2245
                  %v2247 = vld [vmem:[%s2191 + $0xd8] sm:$0xff]
                  %2248 = vst [vmem:[%s2192 + $0x140] sm:$0xff] %v2247
                  %v2249 = vld [vmem:[%s2191 + $0xe0] sm:$0xff]
                  %2250 = vst [vmem:[%s2192 + $0x150] sm:$0xff] %v2249
                  %v2251 = vld [vmem:[%s2191 + $0xe8] sm:$0xff]
                  %2252 = vst [vmem:[%s2192 + $0x158] sm:$0xff] %v2251
                  %v2253 = vld [vmem:[%s2191 + $0xf0] sm:$0xff]
                  %2254 = vst [vmem:[%s2192 + $0x168] sm:$0xff] %v2253
                  %v2255 = vld [vmem:[%s2191 + $0xf8] sm:$0xff]
                  %2256 = vst [vmem:[%s2192 + $0x170] sm:$0xff] %v2255
                  %v2257 = vld [vmem:[%s2191 + $0x100] sm:$0xff]
                  %2258 = vst [vmem:[%s2192 + $0x180] sm:$0xff] %v2257
                  %v2259 = vld [vmem:[%s2191 + $0x108] sm:$0xff]
                  %2260 = vst [vmem:[%s2192 + $0x188] sm:$0xff] %v2259
                  %v2261 = vld [vmem:[%s2191 + $0x110] sm:$0xff]
                  %2262 = vst [vmem:[%s2192 + $0x198] sm:$0xff] %v2261
                  %v2263 = vld [vmem:[%s2191 + $0x118] sm:$0xff]
                  %2264 = vst [vmem:[%s2192 + $0x1a0] sm:$0xff] %v2263
                  %v2265 = vld [vmem:[%s2191 + $0x120] sm:$0xff]
                  %2266 = vst [vmem:[%s2192 + $0x1b0] sm:$0xff] %v2265
                  %v2267 = vld [vmem:[%s2191 + $0x128] sm:$0xff]
                  %2268 = vst [vmem:[%s2192 + $0x1b8] sm:$0xff] %v2267
                  %v2269 = vld [vmem:[%s2191 + $0x130] sm:$0xff]
                  %2270 = vst [vmem:[%s2192 + $0x1c8] sm:$0xff] %v2269
                  %v2271 = vld [vmem:[%s2191 + $0x138] sm:$0xff]
                  %2272 = vst [vmem:[%s2192 + $0x1d0] sm:$0xff] %v2271
                  %v2273 = vld [vmem:[%s2191 + $0x140] sm:$0xff]
                  %2274 = vst [vmem:[%s2192 + $0x1e0] sm:$0xff] %v2273
                  %v2275 = vld [vmem:[%s2191 + $0x148] sm:$0xff]
                  %2276 = vst [vmem:[%s2192 + $0x1e8] sm:$0xff] %v2275
                  %v2277 = vld [vmem:[%s2191 + $0x150] sm:$0xff]
                  %2278 = vst [vmem:[%s2192 + $0x1f8] sm:$0xff] %v2277
                  %v2279 = vld [vmem:[%s2191 + $0x158] sm:$0xff]
                  %2280 = vst [vmem:[%s2192 + $0x200] sm:$0xff] %v2279
                  %v2281 = vld [vmem:[%s2191 + $0x160] sm:$0xff]
                  %2282 = vst [vmem:[%s2192 + $0x210] sm:$0xff] %v2281
                  %v2283 = vld [vmem:[%s2191 + $0x168] sm:$0xff]
                  %2284 = vst [vmem:[%s2192 + $0x218] sm:$0xff] %v2283
                  %v2285 = vld [vmem:[%s2191 + $0x170] sm:$0xff]
                  %2286 = vst [vmem:[%s2192 + $0x228] sm:$0xff] %v2285
                  %v2287 = vld [vmem:[%s2191 + $0x178] sm:$0xff]
                  %2288 = vst [vmem:[%s2192 + $0x230] sm:$0xff] %v2287
                  %v2289 = vld [vmem:[%s2191 + $0x180] sm:$0xff]
                  %2290 = vst [vmem:[%s2192 + $0x240] sm:$0xff] %v2289
                  %v2291 = vld [vmem:[%s2191 + $0x188] sm:$0xff]
                  %2292 = vst [vmem:[%s2192 + $0x248] sm:$0xff] %v2291
                  %v2293 = vld [vmem:[%s2191 + $0x190] sm:$0xff]
                  %2294 = vst [vmem:[%s2192 + $0x258] sm:$0xff] %v2293
                  %v2295 = vld [vmem:[%s2191 + $0x198] sm:$0xff]
                  %2296 = vst [vmem:[%s2192 + $0x260] sm:$0xff] %v2295
                  %v2297 = vld [vmem:[%s2191 + $0x1a0] sm:$0xff]
                  %2298 = vst [vmem:[%s2192 + $0x270] sm:$0xff] %v2297
                  %v2299 = vld [vmem:[%s2191 + $0x1a8] sm:$0xff]
                  %2300 = vst [vmem:[%s2192 + $0x278] sm:$0xff] %v2299
                  %v2301 = vld [vmem:[%s2191 + $0x1b0] sm:$0xff]
                  %2302 = vst [vmem:[%s2192 + $0x288] sm:$0xff] %v2301
                  %v2303 = vld [vmem:[%s2191 + $0x1b8] sm:$0xff]
                  %2304 = vst [vmem:[%s2192 + $0x290] sm:$0xff] %v2303
                  %v2305 = vld [vmem:[%s2191 + $0x1c0] sm:$0xff]
                  %2306 = vst [vmem:[%s2192 + $0x2a0] sm:$0xff] %v2305
                  %v2307 = vld [vmem:[%s2191 + $0x1c8] sm:$0xff]
                  %2308 = vst [vmem:[%s2192 + $0x2a8] sm:$0xff] %v2307
                  %v2309 = vld [vmem:[%s2191 + $0x1d0] sm:$0xff]
                  %2310 = vst [vmem:[%s2192 + $0x2b8] sm:$0xff] %v2309
                  %v2311 = vld [vmem:[%s2191 + $0x1d8] sm:$0xff]
                  %2312 = vst [vmem:[%s2192 + $0x2c0] sm:$0xff] %v2311
                  %v2313 = vld [vmem:[%s2191 + $0x1e0] sm:$0xff]
                  %2314 = vst [vmem:[%s2192 + $0x2d0] sm:$0xff] %v2313
                  %v2315 = vld [vmem:[%s2191 + $0x1e8] sm:$0xff]
                  %2316 = vst [vmem:[%s2192 + $0x2d8] sm:$0xff] %v2315
                  %v2317 = vld [vmem:[%s2191 + $0x1f0] sm:$0xff]
                  %2318 = vst [vmem:[%s2192 + $0x2e8] sm:$0xff] %v2317
                  %v2319 = vld [vmem:[%s2191 + $0x1f8] sm:$0xff]
                  %2320 = vst [vmem:[%s2192 + $0x2f0] sm:$0xff] %v2319
                  %v2321 = vld [vmem:[%s2191 + $0x200] sm:$0xff]
                  %2322 = vst [vmem:[%s2192 + $0x300] sm:$0xff] %v2321
                  %v2323 = vld [vmem:[%s2191 + $0x208] sm:$0xff]
                  %2324 = vst [vmem:[%s2192 + $0x308] sm:$0xff] %v2323
                  %v2325 = vld [vmem:[%s2191 + $0x210] sm:$0xff]
                  %2326 = vst [vmem:[%s2192 + $0x318] sm:$0xff] %v2325
                  %v2327 = vld [vmem:[%s2191 + $0x218] sm:$0xff]
                  %2328 = vst [vmem:[%s2192 + $0x320] sm:$0xff] %v2327
                  %v2329 = vld [vmem:[%s2191 + $0x220] sm:$0xff]
                  %2330 = vst [vmem:[%s2192 + $0x330] sm:$0xff] %v2329
                  %v2331 = vld [vmem:[%s2191 + $0x228] sm:$0xff]
                  %2332 = vst [vmem:[%s2192 + $0x338] sm:$0xff] %v2331
                  %v2333 = vld [vmem:[%s2191 + $0x230] sm:$0xff]
                  %2334 = vst [vmem:[%s2192 + $0x348] sm:$0xff] %v2333
                  %v2335 = vld [vmem:[%s2191 + $0x238] sm:$0xff]
                  %2336 = vst [vmem:[%s2192 + $0x350] sm:$0xff] %v2335
                  %v2337 = vld [vmem:[%s2191 + $0x240] sm:$0xff]
                  %2338 = vst [vmem:[%s2192 + $0x360] sm:$0xff] %v2337
                  %v2339 = vld [vmem:[%s2191 + $0x248] sm:$0xff]
                  %2340 = vst [vmem:[%s2192 + $0x368] sm:$0xff] %v2339
                  %v2341 = vld [vmem:[%s2191 + $0x250] sm:$0xff]
                  %2342 = vst [vmem:[%s2192 + $0x378] sm:$0xff] %v2341
                  %v2343 = vld [vmem:[%s2191 + $0x258] sm:$0xff]
                  %2344 = vst [vmem:[%s2192 + $0x380] sm:$0xff] %v2343
                  %s2345 = sadd.s32 1, %s2190
                  %p2346 = scmp.ge.s32.totalorder %s2345, %s2181
                  %s2347 = scalar_select %p2346, 0, %s2345
                  %s2348 = smul.u32 %s2347, 16
                  %s2349 = smul.u32 %s2347, 16
                  %s2350 = scalar_lea.vmem %s1781, %s2348 [#allocation4]
                  %s2351 = scalar_lea.vmem %s1795, %s2349
                $region193: #{_linear_2d.1} parent=187 // loop_footer
                  %s2187 = sadd.s32 %s2185, 1
                $region194: #{_linear_2d.1} parent=187 // loop_footer_branch
                  %2184 = sbr.rel target = $region190
                $region195: #{_linear_2d.1} parent=187 // loop_exit
                  _
                %s2352 = sshrl.u32 %s2180, 1
                %s2353 = sand.u32 %s2180, 1
                %s2354 = smul.u32 %s2352, 2
                %s2355 = smul.u32 128, %s2354
                %s2356 = sshra.s32 %s2355, 4
                %s2357 = scalar_lea.vmem %s1781, %s2356 [#allocation4]
                %s2358 = smul.u32 128, %s2354
                %s2359 = sshra.s32 %s2358, 4
                %s2360 = scalar_lea.vmem %s1795, %s2359
                // While loop
                $region196: #{_linear_2d.1} parent=187 // loop_pre_header
                  _
                $region197: #{_linear_2d.1} parent=187 // loop_header
                  %s2364 = sphi 0, %s2366
                  %p2365 = scmp.ge.s32.totalorder %s2364, %s2353
                  %s2369 = sphi 0, %s2450
                  %s2370 = sphi %s2357, %s2453
                  %s2371 = sphi %s2360, %s2454
                $region198: #{_linear_2d.1} parent=187 // loop_header_branch
                  %2368 = sbr.rel (%p2365) target = $region202
                $region199: #{_linear_2d.1} parent=187 // loop_body
                  %v2372 = vld [vmem:[%s2370] sm:$0xff]
                  %2373 = vst [vmem:[%s2371] sm:$0xff] %v2372
                  %v2374 = vld [vmem:[%s2370 + $0x10] sm:$0xff]
                  %2375 = vst [vmem:[%s2371 + $0x18] sm:$0xff] %v2374
                  %v2376 = vld [vmem:[%s2370 + $0x20] sm:$0xff]
                  %2377 = vst [vmem:[%s2371 + $0x30] sm:$0xff] %v2376
                  %v2378 = vld [vmem:[%s2370 + $0x30] sm:$0xff]
                  %2379 = vst [vmem:[%s2371 + $0x48] sm:$0xff] %v2378
                  %v2380 = vld [vmem:[%s2370 + $0x40] sm:$0xff]
                  %2381 = vst [vmem:[%s2371 + $0x60] sm:$0xff] %v2380
                  %v2382 = vld [vmem:[%s2370 + $0x50] sm:$0xff]
                  %2383 = vst [vmem:[%s2371 + $0x78] sm:$0xff] %v2382
                  %v2384 = vld [vmem:[%s2370 + $0x60] sm:$0xff]
                  %2385 = vst [vmem:[%s2371 + $0x90] sm:$0xff] %v2384
                  %v2386 = vld [vmem:[%s2370 + $0x70] sm:$0xff]
                  %2387 = vst [vmem:[%s2371 + $0xa8] sm:$0xff] %v2386
                  %v2388 = vld [vmem:[%s2370 + $0x80] sm:$0xff]
                  %2389 = vst [vmem:[%s2371 + $0xc0] sm:$0xff] %v2388
                  %v2390 = vld [vmem:[%s2370 + $0x90] sm:$0xff]
                  %2391 = vst [vmem:[%s2371 + $0xd8] sm:$0xff] %v2390
                  %v2392 = vld [vmem:[%s2370 + $0xa0] sm:$0xff]
                  %2393 = vst [vmem:[%s2371 + $0xf0] sm:$0xff] %v2392
                  %v2394 = vld [vmem:[%s2370 + $0xb0] sm:$0xff]
                  %2395 = vst [vmem:[%s2371 + $0x108] sm:$0xff] %v2394
                  %v2396 = vld [vmem:[%s2370 + $0xc0] sm:$0xff]
                  %2397 = vst [vmem:[%s2371 + $0x120] sm:$0xff] %v2396
                  %v2398 = vld [vmem:[%s2370 + $0xd0] sm:$0xff]
                  %2399 = vst [vmem:[%s2371 + $0x138] sm:$0xff] %v2398
                  %v2400 = vld [vmem:[%s2370 + $0xe0] sm:$0xff]
                  %2401 = vst [vmem:[%s2371 + $0x150] sm:$0xff] %v2400
                  %v2402 = vld [vmem:[%s2370 + $0xf0] sm:$0xff]
                  %2403 = vst [vmem:[%s2371 + $0x168] sm:$0xff] %v2402
                  %v2404 = vld [vmem:[%s2370 + $0x100] sm:$0xff]
                  %2405 = vst [vmem:[%s2371 + $0x180] sm:$0xff] %v2404
                  %v2406 = vld [vmem:[%s2370 + $0x110] sm:$0xff]
                  %2407 = vst [vmem:[%s2371 + $0x198] sm:$0xff] %v2406
                  %v2408 = vld [vmem:[%s2370 + $0x120] sm:$0xff]
                  %2409 = vst [vmem:[%s2371 + $0x1b0] sm:$0xff] %v2408
                  %v2410 = vld [vmem:[%s2370 + $0x130] sm:$0xff]
                  %2411 = vst [vmem:[%s2371 + $0x1c8] sm:$0xff] %v2410
                  %v2412 = vld [vmem:[%s2370 + $0x140] sm:$0xff]
                  %2413 = vst [vmem:[%s2371 + $0x1e0] sm:$0xff] %v2412
                  %v2414 = vld [vmem:[%s2370 + $0x150] sm:$0xff]
                  %2415 = vst [vmem:[%s2371 + $0x1f8] sm:$0xff] %v2414
                  %v2416 = vld [vmem:[%s2370 + $0x160] sm:$0xff]
                  %2417 = vst [vmem:[%s2371 + $0x210] sm:$0xff] %v2416
                  %v2418 = vld [vmem:[%s2370 + $0x170] sm:$0xff]
                  %2419 = vst [vmem:[%s2371 + $0x228] sm:$0xff] %v2418
                  %v2420 = vld [vmem:[%s2370 + $0x180] sm:$0xff]
                  %2421 = vst [vmem:[%s2371 + $0x240] sm:$0xff] %v2420
                  %v2422 = vld [vmem:[%s2370 + $0x190] sm:$0xff]
                  %2423 = vst [vmem:[%s2371 + $0x258] sm:$0xff] %v2422
                  %v2424 = vld [vmem:[%s2370 + $0x1a0] sm:$0xff]
                  %2425 = vst [vmem:[%s2371 + $0x270] sm:$0xff] %v2424
                  %v2426 = vld [vmem:[%s2370 + $0x1b0] sm:$0xff]
                  %2427 = vst [vmem:[%s2371 + $0x288] sm:$0xff] %v2426
                  %v2428 = vld [vmem:[%s2370 + $0x1c0] sm:$0xff]
                  %2429 = vst [vmem:[%s2371 + $0x2a0] sm:$0xff] %v2428
                  %v2430 = vld [vmem:[%s2370 + $0x1d0] sm:$0xff]
                  %2431 = vst [vmem:[%s2371 + $0x2b8] sm:$0xff] %v2430
                  %v2432 = vld [vmem:[%s2370 + $0x1e0] sm:$0xff]
                  %2433 = vst [vmem:[%s2371 + $0x2d0] sm:$0xff] %v2432
                  %v2434 = vld [vmem:[%s2370 + $0x1f0] sm:$0xff]
                  %2435 = vst [vmem:[%s2371 + $0x2e8] sm:$0xff] %v2434
                  %v2436 = vld [vmem:[%s2370 + $0x200] sm:$0xff]
                  %2437 = vst [vmem:[%s2371 + $0x300] sm:$0xff] %v2436
                  %v2438 = vld [vmem:[%s2370 + $0x210] sm:$0xff]
                  %2439 = vst [vmem:[%s2371 + $0x318] sm:$0xff] %v2438
                  %v2440 = vld [vmem:[%s2370 + $0x220] sm:$0xff]
                  %2441 = vst [vmem:[%s2371 + $0x330] sm:$0xff] %v2440
                  %v2442 = vld [vmem:[%s2370 + $0x230] sm:$0xff]
                  %2443 = vst [vmem:[%s2371 + $0x348] sm:$0xff] %v2442
                  %v2444 = vld [vmem:[%s2370 + $0x240] sm:$0xff]
                  %2445 = vst [vmem:[%s2371 + $0x360] sm:$0xff] %v2444
                  %v2446 = vld [vmem:[%s2370 + $0x250] sm:$0xff]
                  %2447 = vst [vmem:[%s2371 + $0x378] sm:$0xff] %v2446
                  %s2448 = sadd.s32 1, %s2369
                  %p2449 = scmp.ge.s32.totalorder %s2448, %s2353
                  %s2450 = scalar_select %p2449, 0, %s2448
                  %s2451 = smul.u32 %s2450, 8
                  %s2452 = smul.u32 %s2450, 8
                  %s2453 = scalar_lea.vmem %s2357, %s2451 [#allocation4]
                  %s2454 = scalar_lea.vmem %s2360, %s2452
                $region200: #{_linear_2d.1} parent=187 // loop_footer
                  %s2366 = sadd.s32 %s2364, 1
                $region201: #{_linear_2d.1} parent=187 // loop_footer_branch
                  %2363 = sbr.rel target = $region197
                $region202: #{_linear_2d.1} parent=187 // loop_exit
                  _
                %s2455 = sshllo.u32 0, %s2175
                loop: start=0, step=1, limit=1
                $region203: #{_linear_2d.1} parent=187 // loop_pre_header
                  _
                $region204: #{_linear_2d.1} parent=187 // loop_header
                  %s2457 = sphi 0, %s2461
                  %p2458 = scmp.ge.s32.totalorder %s2457, 1
                  %s2462 = sphi %s2177, %s2177
                  %s2463 = sphi %s2179, %s2179
                $region205: #{_linear_2d.1} parent=187 // loop_header_branch
                  %2460 = sbr.rel (%p2458) target = $region209
                $region206: #{_linear_2d.1} parent=187 // loop_body
                  %v2464 = vld [vmem:[%s2462] sm:%s2455]
                  %2465 = vst [vmem:[%s2463] sm:%s2455] %v2464
                  %v2466 = vld [vmem:[%s2462 + $0x10] sm:%s2455]
                  %2467 = vst [vmem:[%s2463 + $0x18] sm:%s2455] %v2466
                  %v2468 = vld [vmem:[%s2462 + $0x20] sm:%s2455]
                  %2469 = vst [vmem:[%s2463 + $0x30] sm:%s2455] %v2468
                  %v2470 = vld [vmem:[%s2462 + $0x30] sm:%s2455]
                  %2471 = vst [vmem:[%s2463 + $0x48] sm:%s2455] %v2470
                  %v2472 = vld [vmem:[%s2462 + $0x40] sm:%s2455]
                  %2473 = vst [vmem:[%s2463 + $0x60] sm:%s2455] %v2472
                  %v2474 = vld [vmem:[%s2462 + $0x50] sm:%s2455]
                  %2475 = vst [vmem:[%s2463 + $0x78] sm:%s2455] %v2474
                  %v2476 = vld [vmem:[%s2462 + $0x60] sm:%s2455]
                  %2477 = vst [vmem:[%s2463 + $0x90] sm:%s2455] %v2476
                  %v2478 = vld [vmem:[%s2462 + $0x70] sm:%s2455]
                  %2479 = vst [vmem:[%s2463 + $0xa8] sm:%s2455] %v2478
                  %v2480 = vld [vmem:[%s2462 + $0x80] sm:%s2455]
                  %2481 = vst [vmem:[%s2463 + $0xc0] sm:%s2455] %v2480
                  %v2482 = vld [vmem:[%s2462 + $0x90] sm:%s2455]
                  %2483 = vst [vmem:[%s2463 + $0xd8] sm:%s2455] %v2482
                  %v2484 = vld [vmem:[%s2462 + $0xa0] sm:%s2455]
                  %2485 = vst [vmem:[%s2463 + $0xf0] sm:%s2455] %v2484
                  %v2486 = vld [vmem:[%s2462 + $0xb0] sm:%s2455]
                  %2487 = vst [vmem:[%s2463 + $0x108] sm:%s2455] %v2486
                  %v2488 = vld [vmem:[%s2462 + $0xc0] sm:%s2455]
                  %2489 = vst [vmem:[%s2463 + $0x120] sm:%s2455] %v2488
                  %v2490 = vld [vmem:[%s2462 + $0xd0] sm:%s2455]
                  %2491 = vst [vmem:[%s2463 + $0x138] sm:%s2455] %v2490
                  %v2492 = vld [vmem:[%s2462 + $0xe0] sm:%s2455]
                  %2493 = vst [vmem:[%s2463 + $0x150] sm:%s2455] %v2492
                  %v2494 = vld [vmem:[%s2462 + $0xf0] sm:%s2455]
                  %2495 = vst [vmem:[%s2463 + $0x168] sm:%s2455] %v2494
                  %v2496 = vld [vmem:[%s2462 + $0x100] sm:%s2455]
                  %2497 = vst [vmem:[%s2463 + $0x180] sm:%s2455] %v2496
                  %v2498 = vld [vmem:[%s2462 + $0x110] sm:%s2455]
                  %2499 = vst [vmem:[%s2463 + $0x198] sm:%s2455] %v2498
                  %v2500 = vld [vmem:[%s2462 + $0x120] sm:%s2455]
                  %2501 = vst [vmem:[%s2463 + $0x1b0] sm:%s2455] %v2500
                  %v2502 = vld [vmem:[%s2462 + $0x130] sm:%s2455]
                  %2503 = vst [vmem:[%s2463 + $0x1c8] sm:%s2455] %v2502
                  %v2504 = vld [vmem:[%s2462 + $0x140] sm:%s2455]
                  %2505 = vst [vmem:[%s2463 + $0x1e0] sm:%s2455] %v2504
                  %v2506 = vld [vmem:[%s2462 + $0x150] sm:%s2455]
                  %2507 = vst [vmem:[%s2463 + $0x1f8] sm:%s2455] %v2506
                  %v2508 = vld [vmem:[%s2462 + $0x160] sm:%s2455]
                  %2509 = vst [vmem:[%s2463 + $0x210] sm:%s2455] %v2508
                  %v2510 = vld [vmem:[%s2462 + $0x170] sm:%s2455]
                  %2511 = vst [vmem:[%s2463 + $0x228] sm:%s2455] %v2510
                  %v2512 = vld [vmem:[%s2462 + $0x180] sm:%s2455]
                  %2513 = vst [vmem:[%s2463 + $0x240] sm:%s2455] %v2512
                  %v2514 = vld [vmem:[%s2462 + $0x190] sm:%s2455]
                  %2515 = vst [vmem:[%s2463 + $0x258] sm:%s2455] %v2514
                  %v2516 = vld [vmem:[%s2462 + $0x1a0] sm:%s2455]
                  %2517 = vst [vmem:[%s2463 + $0x270] sm:%s2455] %v2516
                  %v2518 = vld [vmem:[%s2462 + $0x1b0] sm:%s2455]
                  %2519 = vst [vmem:[%s2463 + $0x288] sm:%s2455] %v2518
                  %v2520 = vld [vmem:[%s2462 + $0x1c0] sm:%s2455]
                  %2521 = vst [vmem:[%s2463 + $0x2a0] sm:%s2455] %v2520
                  %v2522 = vld [vmem:[%s2462 + $0x1d0] sm:%s2455]
                  %2523 = vst [vmem:[%s2463 + $0x2b8] sm:%s2455] %v2522
                  %v2524 = vld [vmem:[%s2462 + $0x1e0] sm:%s2455]
                  %2525 = vst [vmem:[%s2463 + $0x2d0] sm:%s2455] %v2524
                  %v2526 = vld [vmem:[%s2462 + $0x1f0] sm:%s2455]
                  %2527 = vst [vmem:[%s2463 + $0x2e8] sm:%s2455] %v2526
                  %v2528 = vld [vmem:[%s2462 + $0x200] sm:%s2455]
                  %2529 = vst [vmem:[%s2463 + $0x300] sm:%s2455] %v2528
                  %v2530 = vld [vmem:[%s2462 + $0x210] sm:%s2455]
                  %2531 = vst [vmem:[%s2463 + $0x318] sm:%s2455] %v2530
                  %v2532 = vld [vmem:[%s2462 + $0x220] sm:%s2455]
                  %2533 = vst [vmem:[%s2463 + $0x330] sm:%s2455] %v2532
                  %v2534 = vld [vmem:[%s2462 + $0x230] sm:%s2455]
                  %2535 = vst [vmem:[%s2463 + $0x348] sm:%s2455] %v2534
                  %v2536 = vld [vmem:[%s2462 + $0x240] sm:%s2455]
                  %2537 = vst [vmem:[%s2463 + $0x360] sm:%s2455] %v2536
                  %v2538 = vld [vmem:[%s2462 + $0x250] sm:%s2455]
                  %2539 = vst [vmem:[%s2463 + $0x378] sm:%s2455] %v2538
                $region207: #{_linear_2d.1} parent=187 // loop_footer
                  %s2461 = sadd.s32 1, %s2457
                $region208: #{_linear_2d.1} parent=187 // loop_footer_branch
                  %2456 = sbr.rel target = $region204
                $region209: #{_linear_2d.1} parent=187 // loop_exit
                  _
              $region188: #{_linear_2d.1} parent=154 // pred_fallthru
                _
            $region155: #{_linear_2d.1} parent=150 // pred_fallthru
              _
            // Predicated region
            $region156: #{_linear_2d.1} parent=150 // pred_check
              %p1804 = pneg %p1800
            $region157: #{_linear_2d.1} parent=150 // pred_check_branch
              %1806 = sbr.rel (%p1804) target = $region159
            $region158: #{_linear_2d.1} parent=150 // pred_region
              %s1807 = sshllo.u32 0, %s1796
              loop: start=0, step=1, limit=1
              $region160: #{_linear_2d.1} parent=158 // loop_pre_header
                _
              $region161: #{_linear_2d.1} parent=158 // loop_header
                %s1809 = sphi 0, %s1813
                %p1810 = scmp.ge.s32.totalorder %s1809, 1
                %s1814 = sphi %s1781, %s1781
                %s1815 = sphi %s1795, %s1795
              $region162: #{_linear_2d.1} parent=158 // loop_header_branch
                %1812 = sbr.rel (%p1810) target = $region166
              $region163: #{_linear_2d.1} parent=158 // loop_body
                %v1816 = vld [vmem:[%s1814] sm:%s1807]
                %1817 = vst [vmem:[%s1815] sm:%s1807] %v1816
                %v1818 = vld [vmem:[%s1814 + $0x10] sm:%s1807]
                %1819 = vst [vmem:[%s1815 + $0x18] sm:%s1807] %v1818
                %v1820 = vld [vmem:[%s1814 + $0x20] sm:%s1807]
                %1821 = vst [vmem:[%s1815 + $0x30] sm:%s1807] %v1820
                %v1822 = vld [vmem:[%s1814 + $0x30] sm:%s1807]
                %1823 = vst [vmem:[%s1815 + $0x48] sm:%s1807] %v1822
                %v1824 = vld [vmem:[%s1814 + $0x40] sm:%s1807]
                %1825 = vst [vmem:[%s1815 + $0x60] sm:%s1807] %v1824
                %v1826 = vld [vmem:[%s1814 + $0x50] sm:%s1807]
                %1827 = vst [vmem:[%s1815 + $0x78] sm:%s1807] %v1826
                %v1828 = vld [vmem:[%s1814 + $0x60] sm:%s1807]
                %1829 = vst [vmem:[%s1815 + $0x90] sm:%s1807] %v1828
                %v1830 = vld [vmem:[%s1814 + $0x70] sm:%s1807]
                %1831 = vst [vmem:[%s1815 + $0xa8] sm:%s1807] %v1830
                %v1832 = vld [vmem:[%s1814 + $0x80] sm:%s1807]
                %1833 = vst [vmem:[%s1815 + $0xc0] sm:%s1807] %v1832
                %v1834 = vld [vmem:[%s1814 + $0x90] sm:%s1807]
                %1835 = vst [vmem:[%s1815 + $0xd8] sm:%s1807] %v1834
                %v1836 = vld [vmem:[%s1814 + $0xa0] sm:%s1807]
                %1837 = vst [vmem:[%s1815 + $0xf0] sm:%s1807] %v1836
                %v1838 = vld [vmem:[%s1814 + $0xb0] sm:%s1807]
                %1839 = vst [vmem:[%s1815 + $0x108] sm:%s1807] %v1838
                %v1840 = vld [vmem:[%s1814 + $0xc0] sm:%s1807]
                %1841 = vst [vmem:[%s1815 + $0x120] sm:%s1807] %v1840
                %v1842 = vld [vmem:[%s1814 + $0xd0] sm:%s1807]
                %1843 = vst [vmem:[%s1815 + $0x138] sm:%s1807] %v1842
                %v1844 = vld [vmem:[%s1814 + $0xe0] sm:%s1807]
                %1845 = vst [vmem:[%s1815 + $0x150] sm:%s1807] %v1844
                %v1846 = vld [vmem:[%s1814 + $0xf0] sm:%s1807]
                %1847 = vst [vmem:[%s1815 + $0x168] sm:%s1807] %v1846
                %v1848 = vld [vmem:[%s1814 + $0x100] sm:%s1807]
                %1849 = vst [vmem:[%s1815 + $0x180] sm:%s1807] %v1848
                %v1850 = vld [vmem:[%s1814 + $0x110] sm:%s1807]
                %1851 = vst [vmem:[%s1815 + $0x198] sm:%s1807] %v1850
                %v1852 = vld [vmem:[%s1814 + $0x120] sm:%s1807]
                %1853 = vst [vmem:[%s1815 + $0x1b0] sm:%s1807] %v1852
                %v1854 = vld [vmem:[%s1814 + $0x130] sm:%s1807]
                %1855 = vst [vmem:[%s1815 + $0x1c8] sm:%s1807] %v1854
                %v1856 = vld [vmem:[%s1814 + $0x140] sm:%s1807]
                %1857 = vst [vmem:[%s1815 + $0x1e0] sm:%s1807] %v1856
                %v1858 = vld [vmem:[%s1814 + $0x150] sm:%s1807]
                %1859 = vst [vmem:[%s1815 + $0x1f8] sm:%s1807] %v1858
                %v1860 = vld [vmem:[%s1814 + $0x160] sm:%s1807]
                %1861 = vst [vmem:[%s1815 + $0x210] sm:%s1807] %v1860
                %v1862 = vld [vmem:[%s1814 + $0x170] sm:%s1807]
                %1863 = vst [vmem:[%s1815 + $0x228] sm:%s1807] %v1862
                %v1864 = vld [vmem:[%s1814 + $0x180] sm:%s1807]
                %1865 = vst [vmem:[%s1815 + $0x240] sm:%s1807] %v1864
                %v1866 = vld [vmem:[%s1814 + $0x190] sm:%s1807]
                %1867 = vst [vmem:[%s1815 + $0x258] sm:%s1807] %v1866
                %v1868 = vld [vmem:[%s1814 + $0x1a0] sm:%s1807]
                %1869 = vst [vmem:[%s1815 + $0x270] sm:%s1807] %v1868
                %v1870 = vld [vmem:[%s1814 + $0x1b0] sm:%s1807]
                %1871 = vst [vmem:[%s1815 + $0x288] sm:%s1807] %v1870
                %v1872 = vld [vmem:[%s1814 + $0x1c0] sm:%s1807]
                %1873 = vst [vmem:[%s1815 + $0x2a0] sm:%s1807] %v1872
                %v1874 = vld [vmem:[%s1814 + $0x1d0] sm:%s1807]
                %1875 = vst [vmem:[%s1815 + $0x2b8] sm:%s1807] %v1874
                %v1876 = vld [vmem:[%s1814 + $0x1e0] sm:%s1807]
                %1877 = vst [vmem:[%s1815 + $0x2d0] sm:%s1807] %v1876
                %v1878 = vld [vmem:[%s1814 + $0x1f0] sm:%s1807]
                %1879 = vst [vmem:[%s1815 + $0x2e8] sm:%s1807] %v1878
                %v1880 = vld [vmem:[%s1814 + $0x200] sm:%s1807]
                %1881 = vst [vmem:[%s1815 + $0x300] sm:%s1807] %v1880
                %v1882 = vld [vmem:[%s1814 + $0x210] sm:%s1807]
                %1883 = vst [vmem:[%s1815 + $0x318] sm:%s1807] %v1882
                %v1884 = vld [vmem:[%s1814 + $0x220] sm:%s1807]
                %1885 = vst [vmem:[%s1815 + $0x330] sm:%s1807] %v1884
                %v1886 = vld [vmem:[%s1814 + $0x230] sm:%s1807]
                %1887 = vst [vmem:[%s1815 + $0x348] sm:%s1807] %v1886
                %v1888 = vld [vmem:[%s1814 + $0x240] sm:%s1807]
                %1889 = vst [vmem:[%s1815 + $0x360] sm:%s1807] %v1888
                %v1890 = vld [vmem:[%s1814 + $0x250] sm:%s1807]
                %1891 = vst [vmem:[%s1815 + $0x378] sm:%s1807] %v1890
              $region164: #{_linear_2d.1} parent=158 // loop_footer
                %s1813 = sadd.s32 1, %s1809
              $region165: #{_linear_2d.1} parent=158 // loop_footer_branch
                %1808 = sbr.rel target = $region161
              $region166: #{_linear_2d.1} parent=158 // loop_exit
                _
            $region159: #{_linear_2d.1} parent=150 // pred_fallthru
              _
          $region151: #{_linear_2d.1} parent=146 // pred_fallthru
            _
          %2540 = vnop
        $region147: #{_linear_2d.1} parent=130 // pred_fallthru
          _
      $region131: #{_linear_2d.1} parent=5 // pred_fallthru
        _
      %p2541 = scmp.le.s32.totalorder 2, %s9
      // Predicated region
      $region210: #{_linear_2d.1} parent=5 // pred_check
        %p2542 = pneg %p2541
      $region211: #{_linear_2d.1} parent=5 // pred_check_branch
        %2544 = sbr.rel (%p2542) target = $region213
      $region212: #{_linear_2d.1} parent=5 // pred_region
        %s2545 = ssub.s32 %s9, 2
        // Predicated region
        $region214: #{_linear_2d.1} parent=212 // pred_check
          %p2546 = pneg %p141
        $region215: #{_linear_2d.1} parent=212 // pred_check_branch
          %2548 = sbr.rel (%p2546) target = $region217
        $region216: #{_linear_2d.1} parent=212 // pred_region
          %s2549 = sand.u32 %s126, 1
          %s2550 = sand.u32 %s126, 1
          %s2551 = smul.addr %s2550, 608
          %s2552 = scalar_lea.vmem [#allocation4], %s2551
        $region217: #{_linear_2d.1} parent=212 // pred_fallthru
          _
      $region213: #{_linear_2d.1} parent=5 // pred_fallthru
        _
    $region6: #{_linear_2d.1} parent=1 // loop_footer
      %s13 = sadd.s32 1, %s9
    $region7: #{_linear_2d.1} parent=1 // loop_footer_branch
      %8 = sbr.rel target = $region3
    $region8: #{_linear_2d.1} parent=1 // loop_exit
      _

</llo_original>
